<compile_context>
chip_gen: v7x
topology: tpu7x:2x2x1
jax: 0.10.0
libtpu: 0.0.40
codegen_flags: <defaults>
</compile_context>

<pallas_src>
import jax
import jax.numpy as jnp
import numpy as np
from jax.experimental import pallas as pl
from jax.experimental.pallas import tpu as pltpu

C1 = 32  # spatial_channels (hard-coded in the PyTorch module)


def _make_kernel(corr1: bool, corr2: bool):
    """Build the fused kernel. corr1/corr2: whether the channel-align path of
    TimeBlock 1/2 carries a bias (conv_down case) needing boundary bias fixes."""

    def kernel(x_ref, sk_ref,
               w1m_ref, w10_ref, w1p_ref, b1_ref,
               th_ref,
               w2m_ref, w20_ref, w2p_ref, b2_ref,
               mp_ref, mn_ref, bns_ref, bnb_ref,
               o_ref):
        f32, bf16 = jnp.float32, jnp.bfloat16

        mprev = mp_ref[...]          # (NT,1) f32: 0 where t==0  (prev tap invalid)
        mnext = mn_ref[...]          # (NT,1) f32: 0 where t==T-1 (next tap invalid)

        def glu(x_in, wm_ref, w0_ref, wp_ref, b_ref, c, corr):
            # x_in: (NT, K) f32.  Temporal +/-1 shifts via XLU roll + boundary mask
            # (mask also kills the wrap-around / cross-node rows).
            n = x_in.shape[0]
            prev = pltpu.roll(x_in, shift=1, axis=0) * mprev       # row t <- x[t-1]
            nxt = pltpu.roll(x_in, shift=n - 1, axis=0) * mnext    # row t <- x[t+1]
            # Three accumulating bf16 matmuls against fused [P|Q] tap weights
            # (channel-align matrix and the GLU residual are folded in already).
            pq = (jnp.dot(prev.astype(bf16), wm_ref[...], preferred_element_type=f32)
                  + jnp.dot(x_in.astype(bf16), w0_ref[...], preferred_element_type=f32)
                  + jnp.dot(nxt.astype(bf16), wp_ref[...], preferred_element_type=f32))
            b = b_ref[...]                                         # (3, 2C) f32
            pq = pq + b[0:1, :]
            if corr:  # only needed when the align path has a bias (conv_down)
                pq = pq + mprev * b[1:2, :] + mnext * b[2:3, :]
            return pq[:, :c] * jax.nn.sigmoid(pq[:, c:])           # (P+X)*sigmoid(Q)

        x = x_ref[0].astype(f32)                                   # (NT, c_in)

        # --- temporal block 1 (align + residual folded into the tap weights) ---
        t1 = glu(x, w1m_ref, w10_ref, w1p_ref, b1_ref, C1, corr1)  # (NT, 32)

        # --- graph conv: kron(supports, I_T) @ t1, then Theta1 + residual + relu
        lfs = jnp.dot(sk_ref[...], t1.astype(bf16), preferred_element_type=f32)
        t2 = jnp.maximum(
            jnp.dot(lfs.astype(bf16), th_ref[...], preferred_element_type=f32) + t1,
            0.0)

        # --- temporal block 2 ---
        c_out = o_ref.shape[-1]
        t3 = glu(t2, w2m_ref, w20_ref, w2p_ref, b2_ref, c_out, corr2)

        # --- BatchNorm2d over the node axis, folded to a per-row affine ---
        o_ref[0] = (t3 * bns_ref[...] + bnb_ref[...]).astype(o_ref.dtype)

    return kernel


def _align_affine(c_in, c_out, w_down, b_down):
    """Channel alignment of TimeBlock_padding as an affine (A, a_b)."""
    f32 = jnp.float32
    if c_in == c_out:
        return jnp.eye(c_in, dtype=f32), jnp.zeros((1, c_out), f32)
    if c_in < c_out:
        A = jnp.concatenate(
            [jnp.eye(c_in, dtype=f32), jnp.zeros((c_in, c_out - c_in), f32)], axis=1)
        return A, jnp.zeros((1, c_out), f32)
    # c_in > c_out: 1x1 conv_down (weight (c_out, c_in, 1, 1), bias (c_out,))
    return (jnp.transpose(w_down[:, :, 0, 0]).astype(f32),
            b_down.reshape(1, c_out).astype(f32))


def _folded_glu(c_in, c_out, w_glu, b_glu, w_down, b_down):
    """Fold channel-align + GLU residual into fused [P|Q] per-tap weights.

    Returns Wm, W0, Wp: (c_in, 2*c_out) bf16 (taps t-1 / t / t+1, raw-input basis)
    and bias (3, 2*c_out) f32: [base, prev-valid correction, next-valid correction].
    """
    f32 = jnp.float32
    A, a_b = _align_affine(c_in, c_out, w_down, b_down)
    # conv weight (2*c_out, c_out, 1, 3): tap k acts on X_input[t + k - 1].
    taps = [jnp.transpose(w_glu[:, :, 0, k]).astype(f32) for k in range(3)]
    Wm = A @ taps[0]
    W0 = A @ taps[1]
    Wp = A @ taps[2]
    # Residual (P + X_input), X_input = x @ A + a_b: fold A into centre-tap P half,
    # a_b into the base bias P half.
    W0 = W0.at[:, :c_out].add(A)
    base = (b_glu.reshape(1, 2 * c_out).astype(f32)
            + a_b @ taps[1]
            + jnp.concatenate([a_b, jnp.zeros((1, c_out), f32)], axis=1))
    bias = jnp.concatenate([base, a_b @ taps[0], a_b @ taps[2]], axis=0)  # (3, 2C)
    bf16 = jnp.bfloat16
    return Wm.astype(bf16), W0.astype(bf16), Wp.astype(bf16), bias


@jax.jit
def st_block_4(x, supports, params):
    """x: (B, N, T, c_in); supports: (N, N); params: dict of module weights."""
    f32, bf16 = jnp.float32, jnp.bfloat16
    B, N, T, c_in = x.shape
    c_out = params['w_glu2'].shape[0] // 2
    NT = N * T

    # ---------------- wrapper-side layout plumbing (free in XLA) ----------------
    x_flat = x.reshape(B, NT, c_in).astype(f32)

    w1m, w10, w1p, b1 = _folded_glu(c_in, C1, params['w_glu1'], params['b_glu1'],
                                    params['w_down1'], params['b_down1'])
    w2m, w20, w2p, b2 = _folded_glu(C1, c_out, params['w_glu2'], params['b_glu2'],
                                    params['w_down2'], params['b_down2'])
    theta = params['theta'].astype(bf16)

    # Graph-conv operator as kron(supports, I_T) so the kernel stays (NT, C)
    # 2-D and reshape-free; bf16 halves its resident footprint.
    sk = jnp.kron(supports.astype(f32), jnp.eye(T, dtype=f32)).astype(bf16)

    # Boundary masks for the +/-1 temporal rolls (rows are ordered n*T + t).
    t_idx = jnp.arange(NT, dtype=jnp.int32) % T
    mask_prev = (t_idx != 0).astype(f32).reshape(NT, 1)
    mask_next = (t_idx != T - 1).astype(f32).reshape(NT, 1)

    # BatchNorm2d(num_nodes), inference-mode, folded to a per-row affine.
    eps = 1e-5
    scale = params['bn_gamma'] / jnp.sqrt(params['bn_var'] + eps)
    shift = params['bn_beta'] - params['bn_mean'] * scale
    bns = jnp.repeat(scale, T).reshape(NT, 1).astype(f32)
    bnb = jnp.repeat(shift, T).reshape(NT, 1).astype(f32)

    kernel = _make_kernel(bool(c_in > C1), bool(C1 > c_out))

    def resident(shape):
        # whole-array block, same block index every grid step -> stays in VMEM
        return pl.BlockSpec(shape, lambda b: (0,) * len(shape))

    out = pl.pallas_call(
        kernel,
        out_shape=jax.ShapeDtypeStruct((B, NT, c_out), f32),
        grid=(B,),
        in_specs=[
            pl.BlockSpec((1, NT, c_in), lambda b: (b, 0, 0)),
            resident((NT, NT)),                                   # sk (bf16)
            resident((c_in, 2 * C1)), resident((c_in, 2 * C1)), resident((c_in, 2 * C1)),
            resident((3, 2 * C1)),
            resident((C1, C1)),                                   # theta (bf16)
            resident((C1, 2 * c_out)), resident((C1, 2 * c_out)), resident((C1, 2 * c_out)),
            resident((3, 2 * c_out)),
            resident((NT, 1)), resident((NT, 1)),                 # roll masks
            resident((NT, 1)), resident((NT, 1)),                 # BN affine
        ],
        out_specs=pl.BlockSpec((1, NT, c_out), lambda b: (b, 0, 0)),
        compiler_params=pltpu.CompilerParams(
            dimension_semantics=("parallel",)),
    )(x_flat, sk, w1m, w10, w1p, b1, theta, w2m, w20, w2p, b2,
      mask_prev, mask_next, bns, bnb)

    return out.reshape(B, N, T, c_out)


# --------------------------- pure-JAX reference -----------------------------
def _conv2d_nchw(x, w, b, pad_w):
    out = jax.lax.conv_general_dilated(
        x, w, window_strides=(1, 1), padding=((0, 0), (pad_w, pad_w)),
        dimension_numbers=('NCHW', 'OIHW', 'NCHW'),
        precision=jax.lax.Precision.HIGHEST)
    return out + b[None, :, None, None]


def _time_block_ref(X, out_ch, w_glu, b_glu, w_down, b_down):
    Xp = jnp.transpose(X, (0, 3, 1, 2))                         # (B, C, N, T)
    c_in = Xp.shape[1]
    if c_in == out_ch:
        Xi = Xp
    elif c_in < out_ch:
        pad = jnp.zeros((Xp.shape[0], out_ch - c_in) + Xp.shape[2:], Xp.dtype)
        Xi = jnp.concatenate([Xp, pad], axis=1)
    else:
        Xi = _conv2d_nchw(Xp, w_down, b_down, 0)
    temp = _conv2d_nchw(Xi, w_glu, b_glu, 1)
    P, Q = temp[:, :out_ch], temp[:, out_ch:]
    out = (P + Xi) * jax.nn.sigmoid(Q)
    return jnp.transpose(out, (0, 2, 3, 1))                     # (B, N, T, out_ch)


def st_block_4_ref(x, supports, params):
    c_out = params['w_glu2'].shape[0] // 2
    t = _time_block_ref(x, C1, params['w_glu1'], params['b_glu1'],
                        params['w_down1'], params['b_down1'])
    lfs = jnp.einsum('ij,bjlm->bilm', supports, t,
                     precision=jax.lax.Precision.HIGHEST)
    t2 = jax.nn.relu(jnp.matmul(lfs, params['theta'],
                                precision=jax.lax.Precision.HIGHEST) + t)
    t3 = _time_block_ref(t2, c_out, params['w_glu2'], params['b_glu2'],
                         params['w_down2'], params['b_down2'])
    eps = 1e-5
    mean = params['bn_mean'][None, :, None, None]
    var = params['bn_var'][None, :, None, None]
    gamma = params['bn_gamma'][None, :, None, None]
    beta = params['bn_beta'][None, :, None, None]
    return (t3 - mean) / jnp.sqrt(var + eps) * gamma + beta


if __name__ == "__main__":
    B, N, T = 2, 16, 16          # batch, num_nodes, tem_size
    c_in, c_out = 4, 64

    key = jax.random.PRNGKey(0)
    ks = jax.random.split(key, 16)

    def unif(k, shape, fan_in):
        bound = 1.0 / np.sqrt(fan_in)
        return jax.random.uniform(k, shape, jnp.float32, -bound, bound)

    x = jax.random.normal(ks[0], (B, N, T, c_in), jnp.float32)
    A = jax.random.uniform(ks[1], (N, N), jnp.float32, 0.0, 1.0)
    supports = A / jnp.sum(A, axis=1, keepdims=True)

    params = dict(
        # TimeBlock_padding(c_in -> 32)
        w_glu1=unif(ks[2], (2 * C1, C1, 1, 3), C1 * 3),
        b_glu1=unif(ks[3], (2 * C1,), C1 * 3),
        w_down1=unif(ks[4], (C1, c_in, 1, 1), c_in),
        b_down1=unif(ks[5], (C1,), c_in),
        # graph-conv parameter
        theta=unif(ks[6], (C1, C1), C1),
        # TimeBlock_padding(32 -> c_out)
        w_glu2=unif(ks[7], (2 * c_out, c_out, 1, 3), c_out * 3),
        b_glu2=unif(ks[8], (2 * c_out,), c_out * 3),
        w_down2=unif(ks[9], (c_out, C1, 1, 1), C1),
        b_down2=unif(ks[10], (c_out,), C1),
        # BatchNorm2d(num_nodes), inference-mode parameters
        bn_gamma=jax.random.uniform(ks[11], (N,), jnp.float32, 0.5, 1.5),
        bn_beta=0.1 * jax.random.normal(ks[12], (N,), jnp.float32),
        bn_mean=0.1 * jax.random.normal(ks[13], (N,), jnp.float32),
        bn_var=jax.random.uniform(ks[14], (N,), jnp.float32, 0.5, 1.5),
    )

    out = jax.block_until_ready(st_block_4(x, supports, params))
    ref = jax.block_until_ready(st_block_4_ref(x, supports, params))

    assert out.shape == (B, N, T, c_out), out.shape
    max_err = float(jnp.max(jnp.abs(out - ref)))
    # Tolerance relaxed from 5e-3: MXU operands are bf16 (f32 accumulation and
    # f32 elementwise math), per the performance review; reference is f32-exact.
    assert max_err < 4e-2, f"mismatch vs reference: {max_err}"

    print("KERNEL_OK")
</pallas_src>

<mosaic_0001>
module attributes {stable_mosaic.version = 11 : i64} {
  func.func @kernel(%arg0: i32, %arg1: memref<1x256x4xf32, #tpu.memory_space<vmem>>, %arg2: memref<256x256xbf16, #tpu.memory_space<vmem>>, %arg3: memref<4x64xbf16, #tpu.memory_space<vmem>>, %arg4: memref<4x64xbf16, #tpu.memory_space<vmem>>, %arg5: memref<4x64xbf16, #tpu.memory_space<vmem>>, %arg6: memref<3x64xf32, #tpu.memory_space<vmem>>, %arg7: memref<32x32xbf16, #tpu.memory_space<vmem>>, %arg8: memref<32x128xbf16, #tpu.memory_space<vmem>>, %arg9: memref<32x128xbf16, #tpu.memory_space<vmem>>, %arg10: memref<32x128xbf16, #tpu.memory_space<vmem>>, %arg11: memref<3x128xf32, #tpu.memory_space<vmem>>, %arg12: memref<256x1xf32, #tpu.memory_space<vmem>>, %arg13: memref<256x1xf32, #tpu.memory_space<vmem>>, %arg14: memref<256x1xf32, #tpu.memory_space<vmem>>, %arg15: memref<256x1xf32, #tpu.memory_space<vmem>>, %arg16: memref<1x256x64xf32, #tpu.memory_space<vmem>>) attributes {dimension_semantics = [#tpu.dimension_semantics<parallel>], iteration_bounds = array<i64: 2>, scalar_prefetch = 0 : i64, scratch_operands = 0 : i64, tpu.core_type = #tpu.core_type<tc>, window_params = [{transform_indices = @transform_0, window_bounds = array<i64: 1, 256, 4>}, {pipeline_mode = #tpu.pipeline_mode<synchronous>, transform_indices = @transform_1, window_bounds = array<i64: 256, 256>}, {pipeline_mode = #tpu.pipeline_mode<synchronous>, transform_indices = @transform_2, window_bounds = array<i64: 4, 64>}, {pipeline_mode = #tpu.pipeline_mode<synchronous>, transform_indices = @transform_3, window_bounds = array<i64: 4, 64>}, {pipeline_mode = #tpu.pipeline_mode<synchronous>, transform_indices = @transform_4, window_bounds = array<i64: 4, 64>}, {pipeline_mode = #tpu.pipeline_mode<synchronous>, transform_indices = @transform_5, window_bounds = array<i64: 3, 64>}, {pipeline_mode = #tpu.pipeline_mode<synchronous>, transform_indices = @transform_6, window_bounds = array<i64: 32, 32>}, {pipeline_mode = #tpu.pipeline_mode<synchronous>, transform_indices = @transform_7, window_bounds = array<i64: 32, 128>}, {pipeline_mode = #tpu.pipeline_mode<synchronous>, transform_indices = @transform_8, window_bounds = array<i64: 32, 128>}, {pipeline_mode = #tpu.pipeline_mode<synchronous>, transform_indices = @transform_9, window_bounds = array<i64: 32, 128>}, {pipeline_mode = #tpu.pipeline_mode<synchronous>, transform_indices = @transform_10, window_bounds = array<i64: 3, 128>}, {pipeline_mode = #tpu.pipeline_mode<synchronous>, transform_indices = @transform_11, window_bounds = array<i64: 256, 1>}, {pipeline_mode = #tpu.pipeline_mode<synchronous>, transform_indices = @transform_12, window_bounds = array<i64: 256, 1>}, {pipeline_mode = #tpu.pipeline_mode<synchronous>, transform_indices = @transform_13, window_bounds = array<i64: 256, 1>}, {pipeline_mode = #tpu.pipeline_mode<synchronous>, transform_indices = @transform_14, window_bounds = array<i64: 256, 1>}, {transform_indices = @transform_15, window_bounds = array<i64: 1, 256, 64>}]} {
    %c0 = arith.constant 0 : index
    %c0_0 = arith.constant 0 : index
    %0 = vector.load %arg12[%c0, %c0_0] : memref<256x1xf32, #tpu.memory_space<vmem>>, vector<256x1xf32>
    %c0_1 = arith.constant 0 : index
    %c0_2 = arith.constant 0 : index
    %1 = vector.load %arg13[%c0_1, %c0_2] : memref<256x1xf32, #tpu.memory_space<vmem>>, vector<256x1xf32>
    %c0_3 = arith.constant 0 : index
    %c0_4 = arith.constant 0 : index
    %c0_5 = arith.constant 0 : index
    %2 = vector.load %arg1[%c0_3, %c0_4, %c0_5] : memref<1x256x4xf32, #tpu.memory_space<vmem>>, vector<1x256x4xf32>
    %3 = vector.shape_cast %2 : vector<1x256x4xf32> to vector<256x4xf32>
    %c1_i32 = arith.constant 1 : i32
    %4 = tpu.dynamic_rotate %3 by %c1_i32 dim 0 : vector<256x4xf32>, i32 -> vector<256x4xf32>
    %5 = vector.broadcast %0 : vector<256x1xf32> to vector<256x4xf32>
    %6 = arith.mulf %4, %5 : vector<256x4xf32>
    %c255_i32 = arith.constant 255 : i32
    %7 = tpu.dynamic_rotate %3 by %c255_i32 dim 0 : vector<256x4xf32>, i32 -> vector<256x4xf32>
    %8 = vector.broadcast %1 : vector<256x1xf32> to vector<256x4xf32>
    %9 = arith.mulf %7, %8 : vector<256x4xf32>
    %10 = arith.truncf %6 : vector<256x4xf32> to vector<256x4xbf16>
    %c0_6 = arith.constant 0 : index
    %c0_7 = arith.constant 0 : index
    %11 = vector.load %arg3[%c0_6, %c0_7] : memref<4x64xbf16, #tpu.memory_space<vmem>>, vector<4x64xbf16>
    %cst = arith.constant dense<0.000000e+00> : vector<256x64xf32>
    %12 = tpu.matmul %10, %11, %cst {dimension_numbers = #tpu.dot_dimension_numbers<[1], [0], [0], [1], [0, 0, 1, 1], [], []>} : vector<256x4xbf16>, vector<4x64xbf16>, vector<256x64xf32> -> vector<256x64xf32>
    %13 = arith.truncf %3 : vector<256x4xf32> to vector<256x4xbf16>
    %c0_8 = arith.constant 0 : index
    %c0_9 = arith.constant 0 : index
    %14 = vector.load %arg4[%c0_8, %c0_9] : memref<4x64xbf16, #tpu.memory_space<vmem>>, vector<4x64xbf16>
    %cst_10 = arith.constant dense<0.000000e+00> : vector<256x64xf32>
    %15 = tpu.matmul %13, %14, %cst_10 {dimension_numbers = #tpu.dot_dimension_numbers<[1], [0], [0], [1], [0, 0, 1, 1], [], []>} : vector<256x4xbf16>, vector<4x64xbf16>, vector<256x64xf32> -> vector<256x64xf32>
    %16 = arith.addf %12, %15 : vector<256x64xf32>
    %17 = arith.truncf %9 : vector<256x4xf32> to vector<256x4xbf16>
    %c0_11 = arith.constant 0 : index
    %c0_12 = arith.constant 0 : index
    %18 = vector.load %arg5[%c0_11, %c0_12] : memref<4x64xbf16, #tpu.memory_space<vmem>>, vector<4x64xbf16>
    %cst_13 = arith.constant dense<0.000000e+00> : vector<256x64xf32>
    %19 = tpu.matmul %17, %18, %cst_13 {dimension_numbers = #tpu.dot_dimension_numbers<[1], [0], [0], [1], [0, 0, 1, 1], [], []>} : vector<256x4xbf16>, vector<4x64xbf16>, vector<256x64xf32> -> vector<256x64xf32>
    %20 = arith.addf %16, %19 : vector<256x64xf32>
    %c0_14 = arith.constant 0 : index
    %c0_15 = arith.constant 0 : index
    %21 = vector.load %arg6[%c0_14, %c0_15] : memref<3x64xf32, #tpu.memory_space<vmem>>, vector<3x64xf32>
    %22 = vector.extract_strided_slice %21 {offsets = [0, 0], sizes = [1, 64], strides = [1, 1]} : vector<3x64xf32> to vector<1x64xf32>
    %23 = vector.broadcast %22 : vector<1x64xf32> to vector<256x64xf32>
    %24 = arith.addf %20, %23 : vector<256x64xf32>
    %25 = vector.extract_strided_slice %24 {offsets = [0, 0], sizes = [256, 32], strides = [1, 1]} : vector<256x64xf32> to vector<256x32xf32>
    %26 = vector.extract_strided_slice %24 {offsets = [0, 32], sizes = [256, 32], strides = [1, 1]} : vector<256x64xf32> to vector<256x32xf32>
    %27 = arith.negf %26 : vector<256x32xf32>
    %28 = math.exp %27 : vector<256x32xf32>
    %cst_16 = arith.constant 1.000000e+00 : f32
    %29 = vector.broadcast %cst_16 : f32 to vector<256x32xf32>
    %30 = arith.addf %29, %28 : vector<256x32xf32>
    %31 = arith.divf %29, %30 : vector<256x32xf32>
    %32 = arith.mulf %25, %31 : vector<256x32xf32>
    %c0_17 = arith.constant 0 : index
    %c0_18 = arith.constant 0 : index
    %33 = vector.load %arg2[%c0_17, %c0_18] : memref<256x256xbf16, #tpu.memory_space<vmem>>, vector<256x256xbf16>
    %34 = arith.truncf %32 : vector<256x32xf32> to vector<256x32xbf16>
    %cst_19 = arith.constant dense<0.000000e+00> : vector<256x32xf32>
    %35 = tpu.matmul %33, %34, %cst_19 {dimension_numbers = #tpu.dot_dimension_numbers<[1], [0], [0], [1], [0, 0, 1, 1], [], []>} : vector<256x256xbf16>, vector<256x32xbf16>, vector<256x32xf32> -> vector<256x32xf32>
    %36 = arith.truncf %35 : vector<256x32xf32> to vector<256x32xbf16>
    %c0_20 = arith.constant 0 : index
    %c0_21 = arith.constant 0 : index
    %37 = vector.load %arg7[%c0_20, %c0_21] : memref<32x32xbf16, #tpu.memory_space<vmem>>, vector<32x32xbf16>
    %cst_22 = arith.constant dense<0.000000e+00> : vector<256x32xf32>
    %38 = tpu.matmul %36, %37, %cst_22 {dimension_numbers = #tpu.dot_dimension_numbers<[1], [0], [0], [1], [0, 0, 1, 1], [], []>} : vector<256x32xbf16>, vector<32x32xbf16>, vector<256x32xf32> -> vector<256x32xf32>
    %39 = arith.addf %38, %32 : vector<256x32xf32>
    %cst_23 = arith.constant 0.000000e+00 : f32
    %40 = vector.broadcast %cst_23 : f32 to vector<256x32xf32>
    %41 = arith.maximumf %39, %40 : vector<256x32xf32>
    %c1_i32_24 = arith.constant 1 : i32
    %42 = tpu.dynamic_rotate %41 by %c1_i32_24 dim 0 : vector<256x32xf32>, i32 -> vector<256x32xf32>
    %43 = vector.broadcast %0 : vector<256x1xf32> to vector<256x32xf32>
    %44 = arith.mulf %42, %43 : vector<256x32xf32>
    %c255_i32_25 = arith.constant 255 : i32
    %45 = tpu.dynamic_rotate %41 by %c255_i32_25 dim 0 : vector<256x32xf32>, i32 -> vector<256x32xf32>
    %46 = vector.broadcast %1 : vector<256x1xf32> to vector<256x32xf32>
    %47 = arith.mulf %45, %46 : vector<256x32xf32>
    %48 = arith.truncf %44 : vector<256x32xf32> to vector<256x32xbf16>
    %c0_26 = arith.constant 0 : index
    %c0_27 = arith.constant 0 : index
    %49 = vector.load %arg8[%c0_26, %c0_27] : memref<32x128xbf16, #tpu.memory_space<vmem>>, vector<32x128xbf16>
    %cst_28 = arith.constant dense<0.000000e+00> : vector<256x128xf32>
    %50 = tpu.matmul %48, %49, %cst_28 {dimension_numbers = #tpu.dot_dimension_numbers<[1], [0], [0], [1], [0, 0, 1, 1], [], []>} : vector<256x32xbf16>, vector<32x128xbf16>, vector<256x128xf32> -> vector<256x128xf32>
    %51 = arith.truncf %41 : vector<256x32xf32> to vector<256x32xbf16>
    %c0_29 = arith.constant 0 : index
    %c0_30 = arith.constant 0 : index
    %52 = vector.load %arg9[%c0_29, %c0_30] : memref<32x128xbf16, #tpu.memory_space<vmem>>, vector<32x128xbf16>
    %cst_31 = arith.constant dense<0.000000e+00> : vector<256x128xf32>
    %53 = tpu.matmul %51, %52, %cst_31 {dimension_numbers = #tpu.dot_dimension_numbers<[1], [0], [0], [1], [0, 0, 1, 1], [], []>} : vector<256x32xbf16>, vector<32x128xbf16>, vector<256x128xf32> -> vector<256x128xf32>
    %54 = arith.addf %50, %53 : vector<256x128xf32>
    %55 = arith.truncf %47 : vector<256x32xf32> to vector<256x32xbf16>
    %c0_32 = arith.constant 0 : index
    %c0_33 = arith.constant 0 : index
    %56 = vector.load %arg10[%c0_32, %c0_33] : memref<32x128xbf16, #tpu.memory_space<vmem>>, vector<32x128xbf16>
    %cst_34 = arith.constant dense<0.000000e+00> : vector<256x128xf32>
    %57 = tpu.matmul %55, %56, %cst_34 {dimension_numbers = #tpu.dot_dimension_numbers<[1], [0], [0], [1], [0, 0, 1, 1], [], []>} : vector<256x32xbf16>, vector<32x128xbf16>, vector<256x128xf32> -> vector<256x128xf32>
    %58 = arith.addf %54, %57 : vector<256x128xf32>
    %c0_35 = arith.constant 0 : index
    %c0_36 = arith.constant 0 : index
    %59 = vector.load %arg11[%c0_35, %c0_36] : memref<3x128xf32, #tpu.memory_space<vmem>>, vector<3x128xf32>
    %60 = vector.extract_strided_slice %59 {offsets = [0, 0], sizes = [1, 128], strides = [1, 1]} : vector<3x128xf32> to vector<1x128xf32>
    %61 = vector.broadcast %60 : vector<1x128xf32> to vector<256x128xf32>
    %62 = arith.addf %58, %61 : vector<256x128xf32>
    %63 = vector.extract_strided_slice %62 {offsets = [0, 0], sizes = [256, 64], strides = [1, 1]} : vector<256x128xf32> to vector<256x64xf32>
    %64 = vector.extract_strided_slice %62 {offsets = [0, 64], sizes = [256, 64], strides = [1, 1]} : vector<256x128xf32> to vector<256x64xf32>
    %65 = arith.negf %64 : vector<256x64xf32>
    %66 = math.exp %65 : vector<256x64xf32>
    %cst_37 = arith.constant 1.000000e+00 : f32
    %67 = vector.broadcast %cst_37 : f32 to vector<256x64xf32>
    %68 = arith.addf %67, %66 : vector<256x64xf32>
    %69 = arith.divf %67, %68 : vector<256x64xf32>
    %70 = arith.mulf %63, %69 : vector<256x64xf32>
    %c0_38 = arith.constant 0 : index
    %c0_39 = arith.constant 0 : index
    %71 = vector.load %arg14[%c0_38, %c0_39] : memref<256x1xf32, #tpu.memory_space<vmem>>, vector<256x1xf32>
    %72 = vector.broadcast %71 : vector<256x1xf32> to vector<256x64xf32>
    %73 = arith.mulf %70, %72 : vector<256x64xf32>
    %c0_40 = arith.constant 0 : index
    %c0_41 = arith.constant 0 : index
    %74 = vector.load %arg15[%c0_40, %c0_41] : memref<256x1xf32, #tpu.memory_space<vmem>>, vector<256x1xf32>
    %75 = vector.broadcast %74 : vector<256x1xf32> to vector<256x64xf32>
    %76 = arith.addf %73, %75 : vector<256x64xf32>
    %c0_42 = arith.constant 0 : index
    %c0_43 = arith.constant 0 : index
    %c0_44 = arith.constant 0 : index
    %77 = vector.load %arg16[%c0_42, %c0_43, %c0_44] : memref<1x256x64xf32, #tpu.memory_space<vmem>>, vector<1x256x64xf32>
    %78 = vector.shape_cast %77 : vector<1x256x64xf32> to vector<256x64xf32>
    %79 = vector.shape_cast %76 : vector<256x64xf32> to vector<1x256x64xf32>
    tpu.vector_store %arg16[%c0_42, %c0_43, %c0_44], %79 {strides = array<i32>} : memref<1x256x64xf32, #tpu.memory_space<vmem>>, vector<1x256x64xf32>,
    return
  }
  func.func @transform_0(%arg0: i32) -> (i32, i32, i32) {
    %c0_i32 = arith.constant 0 : i32
    %c0_i32_0 = arith.constant 0 : i32
    %c0_i32_1 = arith.constant 0 : i32
    return %arg0, %c0_i32, %c0_i32_0 : i32, i32, i32
  }
  func.func @transform_1(%arg0: i32) -> (i32, i32) {
    %c0_i32 = arith.constant 0 : i32
    %c0_i32_0 = arith.constant 0 : i32
    %c0_i32_1 = arith.constant 0 : i32
    return %c0_i32, %c0_i32_0 : i32, i32
  }
  func.func @transform_2(%arg0: i32) -> (i32, i32) {
    %c0_i32 = arith.constant 0 : i32
    %c0_i32_0 = arith.constant 0 : i32
    %c0_i32_1 = arith.constant 0 : i32
    return %c0_i32, %c0_i32_0 : i32, i32
  }
  func.func @transform_3(%arg0: i32) -> (i32, i32) {
    %c0_i32 = arith.constant 0 : i32
    %c0_i32_0 = arith.constant 0 : i32
    %c0_i32_1 = arith.constant 0 : i32
    return %c0_i32, %c0_i32_0 : i32, i32
  }
  func.func @transform_4(%arg0: i32) -> (i32, i32) {
    %c0_i32 = arith.constant 0 : i32
    %c0_i32_0 = arith.constant 0 : i32
    %c0_i32_1 = arith.constant 0 : i32
    return %c0_i32, %c0_i32_0 : i32, i32
  }
  func.func @transform_5(%arg0: i32) -> (i32, i32) {
    %c0_i32 = arith.constant 0 : i32
    %c0_i32_0 = arith.constant 0 : i32
    %c0_i32_1 = arith.constant 0 : i32
    return %c0_i32, %c0_i32_0 : i32, i32
  }
  func.func @transform_6(%arg0: i32) -> (i32, i32) {
    %c0_i32 = arith.constant 0 : i32
    %c0_i32_0 = arith.constant 0 : i32
    %c0_i32_1 = arith.constant 0 : i32
    return %c0_i32, %c0_i32_0 : i32, i32
  }
  func.func @transform_7(%arg0: i32) -> (i32, i32) {
    %c0_i32 = arith.constant 0 : i32
    %c0_i32_0 = arith.constant 0 : i32
    %c0_i32_1 = arith.constant 0 : i32
    return %c0_i32, %c0_i32_0 : i32, i32
  }
  func.func @transform_8(%arg0: i32) -> (i32, i32) {
    %c0_i32 = arith.constant 0 : i32
    %c0_i32_0 = arith.constant 0 : i32
    %c0_i32_1 = arith.constant 0 : i32
    return %c0_i32, %c0_i32_0 : i32, i32
  }
  func.func @transform_9(%arg0: i32) -> (i32, i32) {
    %c0_i32 = arith.constant 0 : i32
    %c0_i32_0 = arith.constant 0 : i32
    %c0_i32_1 = arith.constant 0 : i32
    return %c0_i32, %c0_i32_0 : i32, i32
  }
  func.func @transform_10(%arg0: i32) -> (i32, i32) {
    %c0_i32 = arith.constant 0 : i32
    %c0_i32_0 = arith.constant 0 : i32
    %c0_i32_1 = arith.constant 0 : i32
    return %c0_i32, %c0_i32_0 : i32, i32
  }
  func.func @transform_11(%arg0: i32) -> (i32, i32) {
    %c0_i32 = arith.constant 0 : i32
    %c0_i32_0 = arith.constant 0 : i32
    %c0_i32_1 = arith.constant 0 : i32
    return %c0_i32, %c0_i32_0 : i32, i32
  }
  func.func @transform_12(%arg0: i32) -> (i32, i32) {
    %c0_i32 = arith.constant 0 : i32
    %c0_i32_0 = arith.constant 0 : i32
    %c0_i32_1 = arith.constant 0 : i32
    return %c0_i32, %c0_i32_0 : i32, i32
  }
  func.func @transform_13(%arg0: i32) -> (i32, i32) {
    %c0_i32 = arith.constant 0 : i32
    %c0_i32_0 = arith.constant 0 : i32
    %c0_i32_1 = arith.constant 0 : i32
    return %c0_i32, %c0_i32_0 : i32, i32
  }
  func.func @transform_14(%arg0: i32) -> (i32, i32) {
    %c0_i32 = arith.constant 0 : i32
    %c0_i32_0 = arith.constant 0 : i32
    %c0_i32_1 = arith.constant 0 : i32
    return %c0_i32, %c0_i32_0 : i32, i32
  }
  func.func @transform_15(%arg0: i32) -> (i32, i32, i32) {
    %c0_i32 = arith.constant 0 : i32
    %c0_i32_0 = arith.constant 0 : i32
    %c0_i32_1 = arith.constant 0 : i32
    return %arg0, %c0_i32, %c0_i32_0 : i32, i32, i32
  }
}

</mosaic_0001>

<llo_original>
// kernel: st_block_4.1
$region0: #{st_block_4.1}
  #allocation0 [shape = 'u32[]', space=smem, size = 0x4, offset = 0x4, fixed_abs, tag = 'smem constant byte address 0x4 - core index']
  #allocation1 [shape = 'u32[144,128]{1,0:T(1,128)}', space=vmem, size = 0x12000, scoped, tag = 'internal scratch']
  %s0 = inlined_call_operand.vmem [shape: f32[2,256,4], index: 0, kind: input, shape index: {}]
  %s1 = inlined_call_operand.vmem [shape: bf16[256,256], index: 1, kind: input, shape index: {}]
  %s2 = inlined_call_operand.vmem [shape: bf16[4,64], index: 2, kind: input, shape index: {}]
  %s3 = inlined_call_operand.vmem [shape: bf16[4,64], index: 3, kind: input, shape index: {}]
  %s4 = inlined_call_operand.vmem [shape: bf16[4,64], index: 4, kind: input, shape index: {}]
  %s5 = inlined_call_operand.vmem [shape: f32[3,64], index: 5, kind: input, shape index: {}]
  %s6 = inlined_call_operand.vmem [shape: bf16[32,32], index: 6, kind: input, shape index: {}]
  %s7 = inlined_call_operand.vmem [shape: bf16[32,128], index: 7, kind: input, shape index: {}]
  %s8 = inlined_call_operand.vmem [shape: bf16[32,128], index: 8, kind: input, shape index: {}]
  %s9 = inlined_call_operand.vmem [shape: bf16[32,128], index: 9, kind: input, shape index: {}]
  %s10 = inlined_call_operand.vmem [shape: f32[3,128], index: 10, kind: input, shape index: {}]
  %s11 = inlined_call_operand.vmem [shape: f32[256,1], index: 11, kind: input, shape index: {}]
  %s12 = inlined_call_operand.vmem [shape: f32[256,1], index: 12, kind: input, shape index: {}]
  %s13 = inlined_call_operand.vmem [shape: f32[256,1], index: 13, kind: input, shape index: {}]
  %s14 = inlined_call_operand.vmem [shape: f32[256,1], index: 14, kind: input, shape index: {}]
  %s15 = inlined_call_operand.hbm [shape: f32[2,256,64], index: 15, kind: output, shape index: {}]
  %s16 = sld [smem:[#allocation0]]
  $region93: #{st_block_4.1} parent=0
    _
  %s18 = ssub.s32 1, %s16
  %s19 = scalar_select 0, %s18, %s16
  $region1: #{st_block_4.1} parent=0
    #allocation2 [shape = 'u8[262144]{0}', space=vmem, size = 0x40000, scoped, tag = 'output window, operand 0']
    #allocation3 [shape = 's32[2]{0}', space=sflag, size = 0x8, scoped, tag = 'scoped memory for st_block_4.1']
    %20 = vsyncpa [#allocation3], 0
    %s21 = scalar_lea.sflag [#allocation3], 1
    %22 = vsyncpa %s21, 0
    loop: start=0, step=1, limit=4
    $region2: #{st_block_4.1} parent=1 // loop_pre_header
      _
    $region3: #{st_block_4.1} parent=1 // loop_header
      %s24 = sphi 0, %s28
      %p25 = scmp.ge.s32.totalorder %s24, 4
      %s34 = sphi 0, %s36
      %s37 = sphi 0, %s34
      %s38 = sphi 0, %s37
      %s54 = sphi 0, %s38
      %s58 = sphi 0, %s58
      %s60 = sphi 0, %s58
      %s61 = sphi 0, %s60
      %s75 = sphi 0, %s61
      %s79 = sphi 0, %s79
      %s81 = sphi 0, %s79
      %s82 = sphi 0, %s81
      %s96 = sphi 0, %s82
      %s100 = sphi 0, %s100
      %s102 = sphi 0, %s100
      %s103 = sphi 0, %s102
      %s117 = sphi 0, %s103
      %s121 = sphi 0, %s121
      %s123 = sphi 0, %s121
      %s124 = sphi 0, %s123
      %s138 = sphi 0, %s124
      %s142 = sphi 0, %s142
      %s144 = sphi 0, %s142
      %s145 = sphi 0, %s144
      %s159 = sphi 0, %s145
      %s163 = sphi 0, %s163
      %s165 = sphi 0, %s163
      %s166 = sphi 0, %s165
      %s180 = sphi 0, %s166
      %s184 = sphi 0, %s184
      %s186 = sphi 0, %s184
      %s187 = sphi 0, %s186
      %s201 = sphi 0, %s187
      %s205 = sphi 0, %s205
      %s207 = sphi 0, %s205
      %s208 = sphi 0, %s207
      %s222 = sphi 0, %s208
      %s226 = sphi 0, %s226
      %s228 = sphi 0, %s226
      %s229 = sphi 0, %s228
      %s243 = sphi 0, %s229
      %s247 = sphi 0, %s247
      %s249 = sphi 0, %s247
      %s250 = sphi 0, %s249
      %s264 = sphi 0, %s250
      %s268 = sphi 0, %s268
      %s270 = sphi 0, %s268
      %s271 = sphi 0, %s270
      %s285 = sphi 0, %s271
      %s289 = sphi 0, %s289
      %s291 = sphi 0, %s289
      %s292 = sphi 0, %s291
      %s306 = sphi 0, %s292
      %s310 = sphi 0, %s310
      %s312 = sphi 0, %s310
      %s313 = sphi 0, %s312
      %s327 = sphi 0, %s313
      %s331 = sphi 0, %s331
      %s333 = sphi 0, %s331
      %s334 = sphi 0, %s333
      %s348 = sphi 0, %s334
      %s354 = sphi 0, %s356
      %s357 = sphi 0, %s354
      %s358 = sphi 0, %s357
      %s374 = sphi 0, %s358
    $region4: #{st_block_4.1} parent=1 // loop_header_branch
      %27 = sbr.rel (%p25) target = $region8
    $region5: #{st_block_4.1} parent=1 // loop_body
      %s29 = ssub.s32 %s24, 1
      %s30 = ssub.s32 %s24, 2
      %s31 = sadd.s32 %s24, 1
      %s32 = ssub.s32 %s24, %s31
      %p33 = scmp.eq.s32.totalorder %s32, 0
      %s35 = sadd.s32 %s34, 1
      %s36 = scalar_select %p33, %s34, %s35
      %p39 = pneg %p33
      %p40 = scmp.eq.s32.totalorder %s24, 1
      %p41 = por %p39, %p40
      %p42 = scmp.ne.s32.totalorder %s34, %s37
      %p43 = scmp.eq.s32.totalorder %s24, 0
      %p44 = por %p42, %p43
      %p45 = scmp.ne.s32.totalorder %s34, %s37
      %p46 = scmp.eq.s32.totalorder %s29, 1
      %p47 = por %p45, %p46
      %p48 = scmp.ne.s32.totalorder %s37, %s38
      %p49 = scmp.eq.s32.totalorder %s29, 0
      %p50 = por %p48, %p49
      %p51 = scmp.ne.s32.totalorder %s37, %s38
      %p52 = scmp.eq.s32.totalorder %s30, 1
      %p53 = por %p51, %p52
      %p55 = scmp.ne.s32.totalorder %s38, %s54
      %p56 = scmp.eq.s32.totalorder %s30, 0
      %p57 = por %p55, %p56
      %s59 = sadd.s32 %s58, 1
      %p62 = scmp.eq.s32.totalorder %s24, 1
      %p63 = scmp.ne.s32.totalorder %s58, %s60
      %p64 = scmp.eq.s32.totalorder %s24, 0
      %p65 = por %p63, %p64
      %p66 = scmp.ne.s32.totalorder %s58, %s60
      %p67 = scmp.eq.s32.totalorder %s29, 1
      %p68 = por %p66, %p67
      %p69 = scmp.ne.s32.totalorder %s60, %s61
      %p70 = scmp.eq.s32.totalorder %s29, 0
      %p71 = por %p69, %p70
      %p72 = scmp.ne.s32.totalorder %s60, %s61
      %p73 = scmp.eq.s32.totalorder %s30, 1
      %p74 = por %p72, %p73
      %p76 = scmp.ne.s32.totalorder %s61, %s75
      %p77 = scmp.eq.s32.totalorder %s30, 0
      %p78 = por %p76, %p77
      %s80 = sadd.s32 %s79, 1
      %p83 = scmp.eq.s32.totalorder %s24, 1
      %p84 = scmp.ne.s32.totalorder %s79, %s81
      %p85 = scmp.eq.s32.totalorder %s24, 0
      %p86 = por %p84, %p85
      %p87 = scmp.ne.s32.totalorder %s79, %s81
      %p88 = scmp.eq.s32.totalorder %s29, 1
      %p89 = por %p87, %p88
      %p90 = scmp.ne.s32.totalorder %s81, %s82
      %p91 = scmp.eq.s32.totalorder %s29, 0
      %p92 = por %p90, %p91
      %p93 = scmp.ne.s32.totalorder %s81, %s82
      %p94 = scmp.eq.s32.totalorder %s30, 1
      %p95 = por %p93, %p94
      %p97 = scmp.ne.s32.totalorder %s82, %s96
      %p98 = scmp.eq.s32.totalorder %s30, 0
      %p99 = por %p97, %p98
      %s101 = sadd.s32 %s100, 1
      %p104 = scmp.eq.s32.totalorder %s24, 1
      %p105 = scmp.ne.s32.totalorder %s100, %s102
      %p106 = scmp.eq.s32.totalorder %s24, 0
      %p107 = por %p105, %p106
      %p108 = scmp.ne.s32.totalorder %s100, %s102
      %p109 = scmp.eq.s32.totalorder %s29, 1
      %p110 = por %p108, %p109
      %p111 = scmp.ne.s32.totalorder %s102, %s103
      %p112 = scmp.eq.s32.totalorder %s29, 0
      %p113 = por %p111, %p112
      %p114 = scmp.ne.s32.totalorder %s102, %s103
      %p115 = scmp.eq.s32.totalorder %s30, 1
      %p116 = por %p114, %p115
      %p118 = scmp.ne.s32.totalorder %s103, %s117
      %p119 = scmp.eq.s32.totalorder %s30, 0
      %p120 = por %p118, %p119
      %s122 = sadd.s32 %s121, 1
      %p125 = scmp.eq.s32.totalorder %s24, 1
      %p126 = scmp.ne.s32.totalorder %s121, %s123
      %p127 = scmp.eq.s32.totalorder %s24, 0
      %p128 = por %p126, %p127
      %p129 = scmp.ne.s32.totalorder %s121, %s123
      %p130 = scmp.eq.s32.totalorder %s29, 1
      %p131 = por %p129, %p130
      %p132 = scmp.ne.s32.totalorder %s123, %s124
      %p133 = scmp.eq.s32.totalorder %s29, 0
      %p134 = por %p132, %p133
      %p135 = scmp.ne.s32.totalorder %s123, %s124
      %p136 = scmp.eq.s32.totalorder %s30, 1
      %p137 = por %p135, %p136
      %p139 = scmp.ne.s32.totalorder %s124, %s138
      %p140 = scmp.eq.s32.totalorder %s30, 0
      %p141 = por %p139, %p140
      %s143 = sadd.s32 %s142, 1
      %p146 = scmp.eq.s32.totalorder %s24, 1
      %p147 = scmp.ne.s32.totalorder %s142, %s144
      %p148 = scmp.eq.s32.totalorder %s24, 0
      %p149 = por %p147, %p148
      %p150 = scmp.ne.s32.totalorder %s142, %s144
      %p151 = scmp.eq.s32.totalorder %s29, 1
      %p152 = por %p150, %p151
      %p153 = scmp.ne.s32.totalorder %s144, %s145
      %p154 = scmp.eq.s32.totalorder %s29, 0
      %p155 = por %p153, %p154
      %p156 = scmp.ne.s32.totalorder %s144, %s145
      %p157 = scmp.eq.s32.totalorder %s30, 1
      %p158 = por %p156, %p157
      %p160 = scmp.ne.s32.totalorder %s145, %s159
      %p161 = scmp.eq.s32.totalorder %s30, 0
      %p162 = por %p160, %p161
      %s164 = sadd.s32 %s163, 1
      %p167 = scmp.eq.s32.totalorder %s24, 1
      %p168 = scmp.ne.s32.totalorder %s163, %s165
      %p169 = scmp.eq.s32.totalorder %s24, 0
      %p170 = por %p168, %p169
      %p171 = scmp.ne.s32.totalorder %s163, %s165
      %p172 = scmp.eq.s32.totalorder %s29, 1
      %p173 = por %p171, %p172
      %p174 = scmp.ne.s32.totalorder %s165, %s166
      %p175 = scmp.eq.s32.totalorder %s29, 0
      %p176 = por %p174, %p175
      %p177 = scmp.ne.s32.totalorder %s165, %s166
      %p178 = scmp.eq.s32.totalorder %s30, 1
      %p179 = por %p177, %p178
      %p181 = scmp.ne.s32.totalorder %s166, %s180
      %p182 = scmp.eq.s32.totalorder %s30, 0
      %p183 = por %p181, %p182
      %s185 = sadd.s32 %s184, 1
      %p188 = scmp.eq.s32.totalorder %s24, 1
      %p189 = scmp.ne.s32.totalorder %s184, %s186
      %p190 = scmp.eq.s32.totalorder %s24, 0
      %p191 = por %p189, %p190
      %p192 = scmp.ne.s32.totalorder %s184, %s186
      %p193 = scmp.eq.s32.totalorder %s29, 1
      %p194 = por %p192, %p193
      %p195 = scmp.ne.s32.totalorder %s186, %s187
      %p196 = scmp.eq.s32.totalorder %s29, 0
      %p197 = por %p195, %p196
      %p198 = scmp.ne.s32.totalorder %s186, %s187
      %p199 = scmp.eq.s32.totalorder %s30, 1
      %p200 = por %p198, %p199
      %p202 = scmp.ne.s32.totalorder %s187, %s201
      %p203 = scmp.eq.s32.totalorder %s30, 0
      %p204 = por %p202, %p203
      %s206 = sadd.s32 %s205, 1
      %p209 = scmp.eq.s32.totalorder %s24, 1
      %p210 = scmp.ne.s32.totalorder %s205, %s207
      %p211 = scmp.eq.s32.totalorder %s24, 0
      %p212 = por %p210, %p211
      %p213 = scmp.ne.s32.totalorder %s205, %s207
      %p214 = scmp.eq.s32.totalorder %s29, 1
      %p215 = por %p213, %p214
      %p216 = scmp.ne.s32.totalorder %s207, %s208
      %p217 = scmp.eq.s32.totalorder %s29, 0
      %p218 = por %p216, %p217
      %p219 = scmp.ne.s32.totalorder %s207, %s208
      %p220 = scmp.eq.s32.totalorder %s30, 1
      %p221 = por %p219, %p220
      %p223 = scmp.ne.s32.totalorder %s208, %s222
      %p224 = scmp.eq.s32.totalorder %s30, 0
      %p225 = por %p223, %p224
      %s227 = sadd.s32 %s226, 1
      %p230 = scmp.eq.s32.totalorder %s24, 1
      %p231 = scmp.ne.s32.totalorder %s226, %s228
      %p232 = scmp.eq.s32.totalorder %s24, 0
      %p233 = por %p231, %p232
      %p234 = scmp.ne.s32.totalorder %s226, %s228
      %p235 = scmp.eq.s32.totalorder %s29, 1
      %p236 = por %p234, %p235
      %p237 = scmp.ne.s32.totalorder %s228, %s229
      %p238 = scmp.eq.s32.totalorder %s29, 0
      %p239 = por %p237, %p238
      %p240 = scmp.ne.s32.totalorder %s228, %s229
      %p241 = scmp.eq.s32.totalorder %s30, 1
      %p242 = por %p240, %p241
      %p244 = scmp.ne.s32.totalorder %s229, %s243
      %p245 = scmp.eq.s32.totalorder %s30, 0
      %p246 = por %p244, %p245
      %s248 = sadd.s32 %s247, 1
      %p251 = scmp.eq.s32.totalorder %s24, 1
      %p252 = scmp.ne.s32.totalorder %s247, %s249
      %p253 = scmp.eq.s32.totalorder %s24, 0
      %p254 = por %p252, %p253
      %p255 = scmp.ne.s32.totalorder %s247, %s249
      %p256 = scmp.eq.s32.totalorder %s29, 1
      %p257 = por %p255, %p256
      %p258 = scmp.ne.s32.totalorder %s249, %s250
      %p259 = scmp.eq.s32.totalorder %s29, 0
      %p260 = por %p258, %p259
      %p261 = scmp.ne.s32.totalorder %s249, %s250
      %p262 = scmp.eq.s32.totalorder %s30, 1
      %p263 = por %p261, %p262
      %p265 = scmp.ne.s32.totalorder %s250, %s264
      %p266 = scmp.eq.s32.totalorder %s30, 0
      %p267 = por %p265, %p266
      %s269 = sadd.s32 %s268, 1
      %p272 = scmp.eq.s32.totalorder %s24, 1
      %p273 = scmp.ne.s32.totalorder %s268, %s270
      %p274 = scmp.eq.s32.totalorder %s24, 0
      %p275 = por %p273, %p274
      %p276 = scmp.ne.s32.totalorder %s268, %s270
      %p277 = scmp.eq.s32.totalorder %s29, 1
      %p278 = por %p276, %p277
      %p279 = scmp.ne.s32.totalorder %s270, %s271
      %p280 = scmp.eq.s32.totalorder %s29, 0
      %p281 = por %p279, %p280
      %p282 = scmp.ne.s32.totalorder %s270, %s271
      %p283 = scmp.eq.s32.totalorder %s30, 1
      %p284 = por %p282, %p283
      %p286 = scmp.ne.s32.totalorder %s271, %s285
      %p287 = scmp.eq.s32.totalorder %s30, 0
      %p288 = por %p286, %p287
      %s290 = sadd.s32 %s289, 1
      %p293 = scmp.eq.s32.totalorder %s24, 1
      %p294 = scmp.ne.s32.totalorder %s289, %s291
      %p295 = scmp.eq.s32.totalorder %s24, 0
      %p296 = por %p294, %p295
      %p297 = scmp.ne.s32.totalorder %s289, %s291
      %p298 = scmp.eq.s32.totalorder %s29, 1
      %p299 = por %p297, %p298
      %p300 = scmp.ne.s32.totalorder %s291, %s292
      %p301 = scmp.eq.s32.totalorder %s29, 0
      %p302 = por %p300, %p301
      %p303 = scmp.ne.s32.totalorder %s291, %s292
      %p304 = scmp.eq.s32.totalorder %s30, 1
      %p305 = por %p303, %p304
      %p307 = scmp.ne.s32.totalorder %s292, %s306
      %p308 = scmp.eq.s32.totalorder %s30, 0
      %p309 = por %p307, %p308
      %s311 = sadd.s32 %s310, 1
      %p314 = scmp.eq.s32.totalorder %s24, 1
      %p315 = scmp.ne.s32.totalorder %s310, %s312
      %p316 = scmp.eq.s32.totalorder %s24, 0
      %p317 = por %p315, %p316
      %p318 = scmp.ne.s32.totalorder %s310, %s312
      %p319 = scmp.eq.s32.totalorder %s29, 1
      %p320 = por %p318, %p319
      %p321 = scmp.ne.s32.totalorder %s312, %s313
      %p322 = scmp.eq.s32.totalorder %s29, 0
      %p323 = por %p321, %p322
      %p324 = scmp.ne.s32.totalorder %s312, %s313
      %p325 = scmp.eq.s32.totalorder %s30, 1
      %p326 = por %p324, %p325
      %p328 = scmp.ne.s32.totalorder %s313, %s327
      %p329 = scmp.eq.s32.totalorder %s30, 0
      %p330 = por %p328, %p329
      %s332 = sadd.s32 %s331, 1
      %p335 = scmp.eq.s32.totalorder %s24, 1
      %p336 = scmp.ne.s32.totalorder %s331, %s333
      %p337 = scmp.eq.s32.totalorder %s24, 0
      %p338 = por %p336, %p337
      %p339 = scmp.ne.s32.totalorder %s331, %s333
      %p340 = scmp.eq.s32.totalorder %s29, 1
      %p341 = por %p339, %p340
      %p342 = scmp.ne.s32.totalorder %s333, %s334
      %p343 = scmp.eq.s32.totalorder %s29, 0
      %p344 = por %p342, %p343
      %p345 = scmp.ne.s32.totalorder %s333, %s334
      %p346 = scmp.eq.s32.totalorder %s30, 1
      %p347 = por %p345, %p346
      %p349 = scmp.ne.s32.totalorder %s334, %s348
      %p350 = scmp.eq.s32.totalorder %s30, 0
      %p351 = por %p349, %p350
      %s352 = ssub.s32 %s24, %s31
      %p353 = scmp.eq.s32.totalorder %s352, 0
      %s355 = sadd.s32 %s354, 1
      %s356 = scalar_select %p353, %s354, %s355
      %p359 = pneg %p353
      %p360 = scmp.eq.s32.totalorder %s24, 1
      %p361 = por %p359, %p360
      %p362 = scmp.ne.s32.totalorder %s354, %s357
      %p363 = scmp.eq.s32.totalorder %s24, 0
      %p364 = por %p362, %p363
      %p365 = scmp.ne.s32.totalorder %s354, %s357
      %p366 = scmp.eq.s32.totalorder %s29, 1
      %p367 = por %p365, %p366
      %p368 = scmp.ne.s32.totalorder %s357, %s358
      %p369 = scmp.eq.s32.totalorder %s29, 0
      %p370 = por %p368, %p369
      %p371 = scmp.ne.s32.totalorder %s357, %s358
      %p372 = scmp.eq.s32.totalorder %s30, 1
      %p373 = por %p371, %p372
      %p375 = scmp.ne.s32.totalorder %s358, %s374
      %p376 = scmp.eq.s32.totalorder %s30, 0
      %p377 = por %p375, %p376
      %p378 = scmp.le.s32.totalorder 1, %s24
      %p379 = scmp.lt.s32.totalorder %s24, 3
      %p380 = pnand %p378, %p379
      %p381 = pneg %p380
      // Predicated region
      $region9: #{st_block_4.1} parent=5 // pred_check
        _
      $region10: #{st_block_4.1} parent=5 // pred_check_branch
        %383 = sbr.rel (%p380) target = $region12
      $region11: #{st_block_4.1} parent=5 // pred_region
        %s384 = ssub.s32 %s24, 1
        // Predicated region
        $region13: #{st_block_4.1} parent=11 // pred_check
          %p385 = pneg %p71
        $region14: #{st_block_4.1} parent=11 // pred_check_branch
          %387 = sbr.rel (%p385) target = $region16
        $region15: #{st_block_4.1} parent=11 // pred_region
          _
        $region16: #{st_block_4.1} parent=11 // pred_fallthru
          _
        // Predicated region
        $region17: #{st_block_4.1} parent=11 // pred_check
          %p388 = pneg %p92
        $region18: #{st_block_4.1} parent=11 // pred_check_branch
          %390 = sbr.rel (%p388) target = $region20
        $region19: #{st_block_4.1} parent=11 // pred_region
          _
        $region20: #{st_block_4.1} parent=11 // pred_fallthru
          _
        // Predicated region
        $region21: #{st_block_4.1} parent=11 // pred_check
          %p391 = pneg %p113
        $region22: #{st_block_4.1} parent=11 // pred_check_branch
          %393 = sbr.rel (%p391) target = $region24
        $region23: #{st_block_4.1} parent=11 // pred_region
          _
        $region24: #{st_block_4.1} parent=11 // pred_fallthru
          _
        // Predicated region
        $region25: #{st_block_4.1} parent=11 // pred_check
          %p394 = pneg %p134
        $region26: #{st_block_4.1} parent=11 // pred_check_branch
          %396 = sbr.rel (%p394) target = $region28
        $region27: #{st_block_4.1} parent=11 // pred_region
          _
        $region28: #{st_block_4.1} parent=11 // pred_fallthru
          _
        // Predicated region
        $region29: #{st_block_4.1} parent=11 // pred_check
          %p397 = pneg %p155
        $region30: #{st_block_4.1} parent=11 // pred_check_branch
          %399 = sbr.rel (%p397) target = $region32
        $region31: #{st_block_4.1} parent=11 // pred_region
          _
        $region32: #{st_block_4.1} parent=11 // pred_fallthru
          _
        // Predicated region
        $region33: #{st_block_4.1} parent=11 // pred_check
          %p400 = pneg %p176
        $region34: #{st_block_4.1} parent=11 // pred_check_branch
          %402 = sbr.rel (%p400) target = $region36
        $region35: #{st_block_4.1} parent=11 // pred_region
          _
        $region36: #{st_block_4.1} parent=11 // pred_fallthru
          _
        // Predicated region
        $region37: #{st_block_4.1} parent=11 // pred_check
          %p403 = pneg %p197
        $region38: #{st_block_4.1} parent=11 // pred_check_branch
          %405 = sbr.rel (%p403) target = $region40
        $region39: #{st_block_4.1} parent=11 // pred_region
          _
        $region40: #{st_block_4.1} parent=11 // pred_fallthru
          _
        // Predicated region
        $region41: #{st_block_4.1} parent=11 // pred_check
          %p406 = pneg %p218
        $region42: #{st_block_4.1} parent=11 // pred_check_branch
          %408 = sbr.rel (%p406) target = $region44
        $region43: #{st_block_4.1} parent=11 // pred_region
          _
        $region44: #{st_block_4.1} parent=11 // pred_fallthru
          _
        // Predicated region
        $region45: #{st_block_4.1} parent=11 // pred_check
          %p409 = pneg %p239
        $region46: #{st_block_4.1} parent=11 // pred_check_branch
          %411 = sbr.rel (%p409) target = $region48
        $region47: #{st_block_4.1} parent=11 // pred_region
          _
        $region48: #{st_block_4.1} parent=11 // pred_fallthru
          _
        // Predicated region
        $region49: #{st_block_4.1} parent=11 // pred_check
          %p412 = pneg %p260
        $region50: #{st_block_4.1} parent=11 // pred_check_branch
          %414 = sbr.rel (%p412) target = $region52
        $region51: #{st_block_4.1} parent=11 // pred_region
          _
        $region52: #{st_block_4.1} parent=11 // pred_fallthru
          _
        // Predicated region
        $region53: #{st_block_4.1} parent=11 // pred_check
          %p415 = pneg %p281
        $region54: #{st_block_4.1} parent=11 // pred_check_branch
          %417 = sbr.rel (%p415) target = $region56
        $region55: #{st_block_4.1} parent=11 // pred_region
          _
        $region56: #{st_block_4.1} parent=11 // pred_fallthru
          _
        // Predicated region
        $region57: #{st_block_4.1} parent=11 // pred_check
          %p418 = pneg %p302
        $region58: #{st_block_4.1} parent=11 // pred_check_branch
          %420 = sbr.rel (%p418) target = $region60
        $region59: #{st_block_4.1} parent=11 // pred_region
          _
        $region60: #{st_block_4.1} parent=11 // pred_fallthru
          _
        // Predicated region
        $region61: #{st_block_4.1} parent=11 // pred_check
          %p421 = pneg %p323
        $region62: #{st_block_4.1} parent=11 // pred_check_branch
          %423 = sbr.rel (%p421) target = $region64
        $region63: #{st_block_4.1} parent=11 // pred_region
          _
        $region64: #{st_block_4.1} parent=11 // pred_fallthru
          _
        // Predicated region
        $region65: #{st_block_4.1} parent=11 // pred_check
          %p424 = pneg %p344
        $region66: #{st_block_4.1} parent=11 // pred_check_branch
          %426 = sbr.rel (%p424) target = $region68
        $region67: #{st_block_4.1} parent=11 // pred_region
          _
        $region68: #{st_block_4.1} parent=11 // pred_fallthru
          _
      $region12: #{st_block_4.1} parent=5 // pred_fallthru
        _
      %p427 = scmp.lt.s32.totalorder %s24, 2
      // Predicated region
      $region69: #{st_block_4.1} parent=5 // pred_check
        %p428 = pneg %p427
      $region70: #{st_block_4.1} parent=5 // pred_check_branch
        %430 = sbr.rel (%p428) target = $region72
      $region71: #{st_block_4.1} parent=5 // pred_region
        // Predicated region
        $region73: #{st_block_4.1} parent=71 // pred_check
          %p431 = pneg %p44
        $region74: #{st_block_4.1} parent=71 // pred_check_branch
          %433 = sbr.rel (%p431) target = $region76
        $region75: #{st_block_4.1} parent=71 // pred_region
          %p434 = scmp.lt.s32.totalorder %s24, 1
          %s435 = scalar_select %p434, %s24, 1
          %s436 = smul.addr %s435, 32
          %s437 = smul.addr %s436, 8
          %s438 = scalar_lea.vmem %s0, %s437
        $region76: #{st_block_4.1} parent=71 // pred_fallthru
          _
      $region72: #{st_block_4.1} parent=5 // pred_fallthru
        _
      %p439 = scmp.le.s32.totalorder 1, %s24
      %p440 = scmp.lt.s32.totalorder %s24, 3
      %p441 = pnand %p439, %p440
      %p442 = pneg %p441
      // Predicated region
      $region77: #{st_block_4.1} parent=5 // pred_check
        _
      $region78: #{st_block_4.1} parent=5 // pred_check_branch
        %444 = sbr.rel (%p441) target = $region80
      $region79: #{st_block_4.1} parent=5 // pred_region
        %s445 = ssub.s32 %s24, 1
        %p446 = scmp.lt.s32.totalorder %s29, 1
        %s447 = scalar_select %p446, %s29, 1
        %s448 = smul.addr %s447, 32
        %s449 = smul.addr %s448, 8
        %s450 = scalar_lea.vmem %s0, %s449
        %p451 = pneg %p50
        %p452 = pneg %p47
        %p453 = pneg %p71
        %p454 = pneg %p68
        %p455 = pneg %p92
        %p456 = pneg %p89
        %p457 = pneg %p113
        %p458 = pneg %p110
        %p459 = pneg %p134
        %p460 = pneg %p131
        %p461 = pneg %p155
        %p462 = pneg %p152
        %p463 = pneg %p176
        %p464 = pneg %p173
        %p465 = pneg %p197
        %p466 = pneg %p194
        %p467 = pneg %p218
        %p468 = pneg %p215
        %p469 = pneg %p239
        %p470 = pneg %p236
        %p471 = pneg %p260
        %p472 = pneg %p257
        %p473 = pneg %p281
        %p474 = pneg %p278
        %p475 = pneg %p302
        %p476 = pneg %p299
        %p477 = pneg %p323
        %p478 = pneg %p320
        %p479 = pneg %p344
        %p480 = pneg %p341
        %p481 = pneg %p370
        %p482 = pneg %p367
        %s483 = sand.u32 %s357, 1
        %s484 = scalar_lea.sflag [#allocation3], %s483
        %s485 = sand.u32 %s357, 1
        %s486 = smul.addr %s485, 256
        %s487 = scalar_lea.vmem [#allocation2], %s486
        %p488 = scmp.lt.s32.totalorder %s29, 1
        %s489 = scalar_select %p488, %s29, 1
        %s490 = smul.addr %s489, 32
        %s491 = smul.addr %s490, 8
        %s492 = scalar_lea.vmem %s0, %s491
        %v494 = vld [vmem:[%s11] sm:$0xff]
        %v495 = vld [vmem:[%s11 + $0x8] sm:$0xff]
        %v496 = vld [vmem:[%s11 + $0x10] sm:$0xff]
        %v497 = vld [vmem:[%s11 + $0x18] sm:$0xff]
        %v498 = vld [vmem:[%s11 + $0x20] sm:$0xff]
        %v499 = vld [vmem:[%s11 + $0x28] sm:$0xff]
        %v500 = vld [vmem:[%s11 + $0x30] sm:$0xff]
        %v501 = vld [vmem:[%s11 + $0x38] sm:$0xff]
        %v502 = vld [vmem:[%s11 + $0x40] sm:$0xff]
        %v503 = vld [vmem:[%s11 + $0x48] sm:$0xff]
        %v504 = vld [vmem:[%s11 + $0x50] sm:$0xff]
        %v505 = vld [vmem:[%s11 + $0x58] sm:$0xff]
        %v506 = vld [vmem:[%s11 + $0x60] sm:$0xff]
        %v507 = vld [vmem:[%s11 + $0x68] sm:$0xff]
        %v508 = vld [vmem:[%s11 + $0x70] sm:$0xff]
        %v509 = vld [vmem:[%s11 + $0x78] sm:$0xff]
        %v510 = vld [vmem:[%s11 + $0x80] sm:$0xff]
        %v511 = vld [vmem:[%s11 + $0x88] sm:$0xff]
        %v512 = vld [vmem:[%s11 + $0x90] sm:$0xff]
        %v513 = vld [vmem:[%s11 + $0x98] sm:$0xff]
        %v514 = vld [vmem:[%s11 + $0xa0] sm:$0xff]
        %v515 = vld [vmem:[%s11 + $0xa8] sm:$0xff]
        %v516 = vld [vmem:[%s11 + $0xb0] sm:$0xff]
        %v517 = vld [vmem:[%s11 + $0xb8] sm:$0xff]
        %v518 = vld [vmem:[%s11 + $0xc0] sm:$0xff]
        %v519 = vld [vmem:[%s11 + $0xc8] sm:$0xff]
        %v520 = vld [vmem:[%s11 + $0xd0] sm:$0xff]
        %v521 = vld [vmem:[%s11 + $0xd8] sm:$0xff]
        %v522 = vld [vmem:[%s11 + $0xe0] sm:$0xff]
        %v523 = vld [vmem:[%s11 + $0xe8] sm:$0xff]
        %v524 = vld [vmem:[%s11 + $0xf0] sm:$0xff]
        %v525 = vld [vmem:[%s11 + $0xf8] sm:$0xff]
        %v526 = vld [vmem:[%s12] sm:$0xff]
        %v527 = vld [vmem:[%s12 + $0x8] sm:$0xff]
        %v528 = vld [vmem:[%s12 + $0x10] sm:$0xff]
        %v529 = vld [vmem:[%s12 + $0x18] sm:$0xff]
        %v530 = vld [vmem:[%s12 + $0x20] sm:$0xff]
        %v531 = vld [vmem:[%s12 + $0x28] sm:$0xff]
        %v532 = vld [vmem:[%s12 + $0x30] sm:$0xff]
        %v533 = vld [vmem:[%s12 + $0x38] sm:$0xff]
        %v534 = vld [vmem:[%s12 + $0x40] sm:$0xff]
        %v535 = vld [vmem:[%s12 + $0x48] sm:$0xff]
        %v536 = vld [vmem:[%s12 + $0x50] sm:$0xff]
        %v537 = vld [vmem:[%s12 + $0x58] sm:$0xff]
        %v538 = vld [vmem:[%s12 + $0x60] sm:$0xff]
        %v539 = vld [vmem:[%s12 + $0x68] sm:$0xff]
        %v540 = vld [vmem:[%s12 + $0x70] sm:$0xff]
        %v541 = vld [vmem:[%s12 + $0x78] sm:$0xff]
        %v542 = vld [vmem:[%s12 + $0x80] sm:$0xff]
        %v543 = vld [vmem:[%s12 + $0x88] sm:$0xff]
        %v544 = vld [vmem:[%s12 + $0x90] sm:$0xff]
        %v545 = vld [vmem:[%s12 + $0x98] sm:$0xff]
        %v546 = vld [vmem:[%s12 + $0xa0] sm:$0xff]
        %v547 = vld [vmem:[%s12 + $0xa8] sm:$0xff]
        %v548 = vld [vmem:[%s12 + $0xb0] sm:$0xff]
        %v549 = vld [vmem:[%s12 + $0xb8] sm:$0xff]
        %v550 = vld [vmem:[%s12 + $0xc0] sm:$0xff]
        %v551 = vld [vmem:[%s12 + $0xc8] sm:$0xff]
        %v552 = vld [vmem:[%s12 + $0xd0] sm:$0xff]
        %v553 = vld [vmem:[%s12 + $0xd8] sm:$0xff]
        %v554 = vld [vmem:[%s12 + $0xe0] sm:$0xff]
        %v555 = vld [vmem:[%s12 + $0xe8] sm:$0xff]
        %v556 = vld [vmem:[%s12 + $0xf0] sm:$0xff]
        %v557 = vld [vmem:[%s12 + $0xf8] sm:$0xff]
        %v558 = vld [vmem:[%s492] sm:$0xff]
        %v559 = vld [vmem:[%s492 + $0x8] sm:$0xff]
        %v560 = vld [vmem:[%s492 + $0x10] sm:$0xff]
        %v561 = vld [vmem:[%s492 + $0x18] sm:$0xff]
        %v562 = vld [vmem:[%s492 + $0x20] sm:$0xff]
        %v563 = vld [vmem:[%s492 + $0x28] sm:$0xff]
        %v564 = vld [vmem:[%s492 + $0x30] sm:$0xff]
        %v565 = vld [vmem:[%s492 + $0x38] sm:$0xff]
        %v566 = vld [vmem:[%s492 + $0x40] sm:$0xff]
        %v567 = vld [vmem:[%s492 + $0x48] sm:$0xff]
        %v568 = vld [vmem:[%s492 + $0x50] sm:$0xff]
        %v569 = vld [vmem:[%s492 + $0x58] sm:$0xff]
        %v570 = vld [vmem:[%s492 + $0x60] sm:$0xff]
        %v571 = vld [vmem:[%s492 + $0x68] sm:$0xff]
        %v572 = vld [vmem:[%s492 + $0x70] sm:$0xff]
        %v573 = vld [vmem:[%s492 + $0x78] sm:$0xff]
        %v574 = vld [vmem:[%s492 + $0x80] sm:$0xff]
        %v575 = vld [vmem:[%s492 + $0x88] sm:$0xff]
        %v576 = vld [vmem:[%s492 + $0x90] sm:$0xff]
        %v577 = vld [vmem:[%s492 + $0x98] sm:$0xff]
        %v578 = vld [vmem:[%s492 + $0xa0] sm:$0xff]
        %v579 = vld [vmem:[%s492 + $0xa8] sm:$0xff]
        %v580 = vld [vmem:[%s492 + $0xb0] sm:$0xff]
        %v581 = vld [vmem:[%s492 + $0xb8] sm:$0xff]
        %v582 = vld [vmem:[%s492 + $0xc0] sm:$0xff]
        %v583 = vld [vmem:[%s492 + $0xc8] sm:$0xff]
        %v584 = vld [vmem:[%s492 + $0xd0] sm:$0xff]
        %v585 = vld [vmem:[%s492 + $0xd8] sm:$0xff]
        %v586 = vld [vmem:[%s492 + $0xe0] sm:$0xff]
        %v587 = vld [vmem:[%s492 + $0xe8] sm:$0xff]
        %v588 = vld [vmem:[%s492 + $0xf0] sm:$0xff]
        %v589 = vld [vmem:[%s492 + $0xf8] sm:$0xff]
        %v590 = vrot.slane %v558, 7
        %v591 = vrot.slane %v559, 7
        %v592 = vrot.slane %v560, 7
        %v593 = vrot.slane %v561, 7
        %v594 = vrot.slane %v562, 7
        %v595 = vrot.slane %v563, 7
        %v596 = vrot.slane %v564, 7
        %v597 = vrot.slane %v565, 7
        %v598 = vrot.slane %v566, 7
        %v599 = vrot.slane %v567, 7
        %v600 = vrot.slane %v568, 7
        %v601 = vrot.slane %v569, 7
        %v602 = vrot.slane %v570, 7
        %v603 = vrot.slane %v571, 7
        %v604 = vrot.slane %v572, 7
        %v605 = vrot.slane %v573, 7
        %v606 = vrot.slane %v574, 7
        %v607 = vrot.slane %v575, 7
        %v608 = vrot.slane %v576, 7
        %v609 = vrot.slane %v577, 7
        %v610 = vrot.slane %v578, 7
        %v611 = vrot.slane %v579, 7
        %v612 = vrot.slane %v580, 7
        %v613 = vrot.slane %v581, 7
        %v614 = vrot.slane %v582, 7
        %v615 = vrot.slane %v583, 7
        %v616 = vrot.slane %v584, 7
        %v617 = vrot.slane %v585, 7
        %v618 = vrot.slane %v586, 7
        %v619 = vrot.slane %v587, 7
        %v620 = vrot.slane %v588, 7
        %v621 = vrot.slane %v589, 7
        %v622 = vlaneseq
        %v623 = vshrl.u32 %v622, 7
        %vm624 = vcmp.lt.s32.totalorder %v623, 1
        %v625 = vsel %vm624, %v620, %v621
        %v626 = vsel %vm624, %v619, %v620
        %v627 = vsel %vm624, %v618, %v619
        %v628 = vsel %vm624, %v617, %v618
        %v629 = vsel %vm624, %v616, %v617
        %v630 = vsel %vm624, %v615, %v616
        %v631 = vsel %vm624, %v614, %v615
        %v632 = vsel %vm624, %v613, %v614
        %v633 = vsel %vm624, %v612, %v613
        %v634 = vsel %vm624, %v611, %v612
        %v635 = vsel %vm624, %v610, %v611
        %v636 = vsel %vm624, %v609, %v610
        %v637 = vsel %vm624, %v608, %v609
        %v638 = vsel %vm624, %v607, %v608
        %v639 = vsel %vm624, %v606, %v607
        %v640 = vsel %vm624, %v605, %v606
        %v641 = vsel %vm624, %v604, %v605
        %v642 = vsel %vm624, %v603, %v604
        %v643 = vsel %vm624, %v602, %v603
        %v644 = vsel %vm624, %v601, %v602
        %v645 = vsel %vm624, %v600, %v601
        %v646 = vsel %vm624, %v599, %v600
        %v647 = vsel %vm624, %v598, %v599
        %v648 = vsel %vm624, %v597, %v598
        %v649 = vsel %vm624, %v596, %v597
        %v650 = vsel %vm624, %v595, %v596
        %v651 = vsel %vm624, %v594, %v595
        %v652 = vsel %vm624, %v593, %v594
        %v653 = vsel %vm624, %v592, %v593
        %v654 = vsel %vm624, %v591, %v592
        %v655 = vsel %vm624, %v590, %v591
        %v656 = vsel %vm624, %v621, %v590
        %658 = vset.pattern.permute.xlu0 0
        %659 = vperm.xlu0 %658, %v494
        %v660 = vpop.permute.xlu0 %659
        %663 = vset.pattern.permute.xlu0 0
        %664 = vperm.xlu0 %663, %v495
        %v665 = vpop.permute.xlu0 %664
        %668 = vset.pattern.permute.xlu0 0
        %669 = vperm.xlu0 %668, %v496
        %v670 = vpop.permute.xlu0 %669
        %673 = vset.pattern.permute.xlu0 0
        %674 = vperm.xlu0 %673, %v497
        %v675 = vpop.permute.xlu0 %674
        %678 = vset.pattern.permute.xlu0 0
        %679 = vperm.xlu0 %678, %v498
        %v680 = vpop.permute.xlu0 %679
        %683 = vset.pattern.permute.xlu0 0
        %684 = vperm.xlu0 %683, %v499
        %v685 = vpop.permute.xlu0 %684
        %688 = vset.pattern.permute.xlu0 0
        %689 = vperm.xlu0 %688, %v500
        %v690 = vpop.permute.xlu0 %689
        %693 = vset.pattern.permute.xlu0 0
        %694 = vperm.xlu0 %693, %v501
        %v695 = vpop.permute.xlu0 %694
        %698 = vset.pattern.permute.xlu0 0
        %699 = vperm.xlu0 %698, %v502
        %v700 = vpop.permute.xlu0 %699
        %703 = vset.pattern.permute.xlu0 0
        %704 = vperm.xlu0 %703, %v503
        %v705 = vpop.permute.xlu0 %704
        %708 = vset.pattern.permute.xlu0 0
        %709 = vperm.xlu0 %708, %v504
        %v710 = vpop.permute.xlu0 %709
        %713 = vset.pattern.permute.xlu0 0
        %714 = vperm.xlu0 %713, %v505
        %v715 = vpop.permute.xlu0 %714
        %718 = vset.pattern.permute.xlu0 0
        %719 = vperm.xlu0 %718, %v506
        %v720 = vpop.permute.xlu0 %719
        %723 = vset.pattern.permute.xlu0 0
        %724 = vperm.xlu0 %723, %v507
        %v725 = vpop.permute.xlu0 %724
        %728 = vset.pattern.permute.xlu0 0
        %729 = vperm.xlu0 %728, %v508
        %v730 = vpop.permute.xlu0 %729
        %733 = vset.pattern.permute.xlu0 0
        %734 = vperm.xlu0 %733, %v509
        %v735 = vpop.permute.xlu0 %734
        %738 = vset.pattern.permute.xlu0 0
        %739 = vperm.xlu0 %738, %v510
        %v740 = vpop.permute.xlu0 %739
        %743 = vset.pattern.permute.xlu0 0
        %744 = vperm.xlu0 %743, %v511
        %v745 = vpop.permute.xlu0 %744
        %748 = vset.pattern.permute.xlu0 0
        %749 = vperm.xlu0 %748, %v512
        %v750 = vpop.permute.xlu0 %749
        %753 = vset.pattern.permute.xlu0 0
        %754 = vperm.xlu0 %753, %v513
        %v755 = vpop.permute.xlu0 %754
        %758 = vset.pattern.permute.xlu0 0
        %759 = vperm.xlu0 %758, %v514
        %v760 = vpop.permute.xlu0 %759
        %763 = vset.pattern.permute.xlu0 0
        %764 = vperm.xlu0 %763, %v515
        %v765 = vpop.permute.xlu0 %764
        %768 = vset.pattern.permute.xlu0 0
        %769 = vperm.xlu0 %768, %v516
        %v770 = vpop.permute.xlu0 %769
        %773 = vset.pattern.permute.xlu0 0
        %774 = vperm.xlu0 %773, %v517
        %v775 = vpop.permute.xlu0 %774
        %778 = vset.pattern.permute.xlu0 0
        %779 = vperm.xlu0 %778, %v518
        %v780 = vpop.permute.xlu0 %779
        %783 = vset.pattern.permute.xlu0 0
        %784 = vperm.xlu0 %783, %v519
        %v785 = vpop.permute.xlu0 %784
        %788 = vset.pattern.permute.xlu0 0
        %789 = vperm.xlu0 %788, %v520
        %v790 = vpop.permute.xlu0 %789
        %793 = vset.pattern.permute.xlu0 0
        %794 = vperm.xlu0 %793, %v521
        %v795 = vpop.permute.xlu0 %794
        %798 = vset.pattern.permute.xlu0 0
        %799 = vperm.xlu0 %798, %v522
        %v800 = vpop.permute.xlu0 %799
        %803 = vset.pattern.permute.xlu0 0
        %804 = vperm.xlu0 %803, %v523
        %v805 = vpop.permute.xlu0 %804
        %808 = vset.pattern.permute.xlu0 0
        %809 = vperm.xlu0 %808, %v524
        %v810 = vpop.permute.xlu0 %809
        %813 = vset.pattern.permute.xlu0 0
        %814 = vperm.xlu0 %813, %v525
        %v815 = vpop.permute.xlu0 %814
        %v817 = vmul.f32 %v656, %v660
        %v818 = vmul.f32 %v655, %v665
        %v819 = vmul.f32 %v654, %v670
        %v820 = vmul.f32 %v653, %v675
        %v821 = vmul.f32 %v652, %v680
        %v822 = vmul.f32 %v651, %v685
        %v823 = vmul.f32 %v650, %v690
        %v824 = vmul.f32 %v649, %v695
        %v825 = vmul.f32 %v648, %v700
        %v826 = vmul.f32 %v647, %v705
        %v827 = vmul.f32 %v646, %v710
        %v828 = vmul.f32 %v645, %v715
        %v829 = vmul.f32 %v644, %v720
        %v830 = vmul.f32 %v643, %v725
        %v831 = vmul.f32 %v642, %v730
        %v832 = vmul.f32 %v641, %v735
        %v833 = vmul.f32 %v640, %v740
        %v834 = vmul.f32 %v639, %v745
        %v835 = vmul.f32 %v638, %v750
        %v836 = vmul.f32 %v637, %v755
        %v837 = vmul.f32 %v636, %v760
        %v838 = vmul.f32 %v635, %v765
        %v839 = vmul.f32 %v634, %v770
        %v840 = vmul.f32 %v633, %v775
        %v841 = vmul.f32 %v632, %v780
        %v842 = vmul.f32 %v631, %v785
        %v843 = vmul.f32 %v630, %v790
        %v844 = vmul.f32 %v629, %v795
        %v845 = vmul.f32 %v628, %v800
        %v846 = vmul.f32 %v627, %v805
        %v847 = vmul.f32 %v626, %v810
        %v848 = vmul.f32 %v625, %v815
        %v849 = vrot.slane %v558, 1
        %v850 = vrot.slane %v559, 1
        %v851 = vrot.slane %v560, 1
        %v852 = vrot.slane %v561, 1
        %v853 = vrot.slane %v562, 1
        %v854 = vrot.slane %v563, 1
        %v855 = vrot.slane %v564, 1
        %v856 = vrot.slane %v565, 1
        %v857 = vrot.slane %v566, 1
        %v858 = vrot.slane %v567, 1
        %v859 = vrot.slane %v568, 1
        %v860 = vrot.slane %v569, 1
        %v861 = vrot.slane %v570, 1
        %v862 = vrot.slane %v571, 1
        %v863 = vrot.slane %v572, 1
        %v864 = vrot.slane %v573, 1
        %v865 = vrot.slane %v574, 1
        %v866 = vrot.slane %v575, 1
        %v867 = vrot.slane %v576, 1
        %v868 = vrot.slane %v577, 1
        %v869 = vrot.slane %v578, 1
        %v870 = vrot.slane %v579, 1
        %v871 = vrot.slane %v580, 1
        %v872 = vrot.slane %v581, 1
        %v873 = vrot.slane %v582, 1
        %v874 = vrot.slane %v583, 1
        %v875 = vrot.slane %v584, 1
        %v876 = vrot.slane %v585, 1
        %v877 = vrot.slane %v586, 1
        %v878 = vrot.slane %v587, 1
        %v879 = vrot.slane %v588, 1
        %v880 = vrot.slane %v589, 1
        %vm881 = vcmp.lt.s32.totalorder %v623, 7
        %v882 = vsel %vm881, %v879, %v880
        %v883 = vsel %vm881, %v878, %v879
        %v884 = vsel %vm881, %v877, %v878
        %v885 = vsel %vm881, %v876, %v877
        %v886 = vsel %vm881, %v875, %v876
        %v887 = vsel %vm881, %v874, %v875
        %v888 = vsel %vm881, %v873, %v874
        %v889 = vsel %vm881, %v872, %v873
        %v890 = vsel %vm881, %v871, %v872
        %v891 = vsel %vm881, %v870, %v871
        %v892 = vsel %vm881, %v869, %v870
        %v893 = vsel %vm881, %v868, %v869
        %v894 = vsel %vm881, %v867, %v868
        %v895 = vsel %vm881, %v866, %v867
        %v896 = vsel %vm881, %v865, %v866
        %v897 = vsel %vm881, %v864, %v865
        %v898 = vsel %vm881, %v863, %v864
        %v899 = vsel %vm881, %v862, %v863
        %v900 = vsel %vm881, %v861, %v862
        %v901 = vsel %vm881, %v860, %v861
        %v902 = vsel %vm881, %v859, %v860
        %v903 = vsel %vm881, %v858, %v859
        %v904 = vsel %vm881, %v857, %v858
        %v905 = vsel %vm881, %v856, %v857
        %v906 = vsel %vm881, %v855, %v856
        %v907 = vsel %vm881, %v854, %v855
        %v908 = vsel %vm881, %v853, %v854
        %v909 = vsel %vm881, %v852, %v853
        %v910 = vsel %vm881, %v851, %v852
        %v911 = vsel %vm881, %v850, %v851
        %v912 = vsel %vm881, %v849, %v850
        %v913 = vsel %vm881, %v880, %v849
        %915 = vset.pattern.permute.xlu0 0
        %916 = vperm.xlu0 %915, %v526
        %v917 = vpop.permute.xlu0 %916
        %920 = vset.pattern.permute.xlu0 0
        %921 = vperm.xlu0 %920, %v527
        %v922 = vpop.permute.xlu0 %921
        %925 = vset.pattern.permute.xlu0 0
        %926 = vperm.xlu0 %925, %v528
        %v927 = vpop.permute.xlu0 %926
        %930 = vset.pattern.permute.xlu0 0
        %931 = vperm.xlu0 %930, %v529
        %v932 = vpop.permute.xlu0 %931
        %935 = vset.pattern.permute.xlu0 0
        %936 = vperm.xlu0 %935, %v530
        %v937 = vpop.permute.xlu0 %936
        %940 = vset.pattern.permute.xlu0 0
        %941 = vperm.xlu0 %940, %v531
        %v942 = vpop.permute.xlu0 %941
        %945 = vset.pattern.permute.xlu0 0
        %946 = vperm.xlu0 %945, %v532
        %v947 = vpop.permute.xlu0 %946
        %950 = vset.pattern.permute.xlu0 0
        %951 = vperm.xlu0 %950, %v533
        %v952 = vpop.permute.xlu0 %951
        %955 = vset.pattern.permute.xlu0 0
        %956 = vperm.xlu0 %955, %v534
        %v957 = vpop.permute.xlu0 %956
        %960 = vset.pattern.permute.xlu0 0
        %961 = vperm.xlu0 %960, %v535
        %v962 = vpop.permute.xlu0 %961
        %965 = vset.pattern.permute.xlu0 0
        %966 = vperm.xlu0 %965, %v536
        %v967 = vpop.permute.xlu0 %966
        %970 = vset.pattern.permute.xlu0 0
        %971 = vperm.xlu0 %970, %v537
        %v972 = vpop.permute.xlu0 %971
        %975 = vset.pattern.permute.xlu0 0
        %976 = vperm.xlu0 %975, %v538
        %v977 = vpop.permute.xlu0 %976
        %980 = vset.pattern.permute.xlu0 0
        %981 = vperm.xlu0 %980, %v539
        %v982 = vpop.permute.xlu0 %981
        %985 = vset.pattern.permute.xlu0 0
        %986 = vperm.xlu0 %985, %v540
        %v987 = vpop.permute.xlu0 %986
        %990 = vset.pattern.permute.xlu0 0
        %991 = vperm.xlu0 %990, %v541
        %v992 = vpop.permute.xlu0 %991
        %995 = vset.pattern.permute.xlu0 0
        %996 = vperm.xlu0 %995, %v542
        %v997 = vpop.permute.xlu0 %996
        %1000 = vset.pattern.permute.xlu0 0
        %1001 = vperm.xlu0 %1000, %v543
        %v1002 = vpop.permute.xlu0 %1001
        %1005 = vset.pattern.permute.xlu0 0
        %1006 = vperm.xlu0 %1005, %v544
        %v1007 = vpop.permute.xlu0 %1006
        %1010 = vset.pattern.permute.xlu0 0
        %1011 = vperm.xlu0 %1010, %v545
        %v1012 = vpop.permute.xlu0 %1011
        %1015 = vset.pattern.permute.xlu0 0
        %1016 = vperm.xlu0 %1015, %v546
        %v1017 = vpop.permute.xlu0 %1016
        %1020 = vset.pattern.permute.xlu0 0
        %1021 = vperm.xlu0 %1020, %v547
        %v1022 = vpop.permute.xlu0 %1021
        %1025 = vset.pattern.permute.xlu0 0
        %1026 = vperm.xlu0 %1025, %v548
        %v1027 = vpop.permute.xlu0 %1026
        %1030 = vset.pattern.permute.xlu0 0
        %1031 = vperm.xlu0 %1030, %v549
        %v1032 = vpop.permute.xlu0 %1031
        %1035 = vset.pattern.permute.xlu0 0
        %1036 = vperm.xlu0 %1035, %v550
        %v1037 = vpop.permute.xlu0 %1036
        %1040 = vset.pattern.permute.xlu0 0
        %1041 = vperm.xlu0 %1040, %v551
        %v1042 = vpop.permute.xlu0 %1041
        %1045 = vset.pattern.permute.xlu0 0
        %1046 = vperm.xlu0 %1045, %v552
        %v1047 = vpop.permute.xlu0 %1046
        %1050 = vset.pattern.permute.xlu0 0
        %1051 = vperm.xlu0 %1050, %v553
        %v1052 = vpop.permute.xlu0 %1051
        %1055 = vset.pattern.permute.xlu0 0
        %1056 = vperm.xlu0 %1055, %v554
        %v1057 = vpop.permute.xlu0 %1056
        %1060 = vset.pattern.permute.xlu0 0
        %1061 = vperm.xlu0 %1060, %v555
        %v1062 = vpop.permute.xlu0 %1061
        %1065 = vset.pattern.permute.xlu0 0
        %1066 = vperm.xlu0 %1065, %v556
        %v1067 = vpop.permute.xlu0 %1066
        %1070 = vset.pattern.permute.xlu0 0
        %1071 = vperm.xlu0 %1070, %v557
        %v1072 = vpop.permute.xlu0 %1071
        %v1074 = vmul.f32 %v912, %v917
        %v1075 = vmul.f32 %v911, %v922
        %v1076 = vmul.f32 %v910, %v927
        %v1077 = vmul.f32 %v909, %v932
        %v1078 = vmul.f32 %v908, %v937
        %v1079 = vmul.f32 %v907, %v942
        %v1080 = vmul.f32 %v906, %v947
        %v1081 = vmul.f32 %v905, %v952
        %v1082 = vmul.f32 %v904, %v957
        %v1083 = vmul.f32 %v903, %v962
        %v1084 = vmul.f32 %v902, %v967
        %v1085 = vmul.f32 %v901, %v972
        %v1086 = vmul.f32 %v900, %v977
        %v1087 = vmul.f32 %v899, %v982
        %v1088 = vmul.f32 %v898, %v987
        %v1089 = vmul.f32 %v897, %v992
        %v1090 = vmul.f32 %v896, %v997
        %v1091 = vmul.f32 %v895, %v1002
        %v1092 = vmul.f32 %v894, %v1007
        %v1093 = vmul.f32 %v893, %v1012
        %v1094 = vmul.f32 %v892, %v1017
        %v1095 = vmul.f32 %v891, %v1022
        %v1096 = vmul.f32 %v890, %v1027
        %v1097 = vmul.f32 %v889, %v1032
        %v1098 = vmul.f32 %v888, %v1037
        %v1099 = vmul.f32 %v887, %v1042
        %v1100 = vmul.f32 %v886, %v1047
        %v1101 = vmul.f32 %v885, %v1052
        %v1102 = vmul.f32 %v884, %v1057
        %v1103 = vmul.f32 %v883, %v1062
        %v1104 = vmul.f32 %v882, %v1067
        %v1105 = vmul.f32 %v913, %v1072
        %v1106 = vpack.c.bf16 %v818, %v817
        %v1107 = vpack.c.bf16 %v820, %v819
        %v1108 = vpack.c.bf16 %v822, %v821
        %v1109 = vpack.c.bf16 %v824, %v823
        %v1110 = vpack.c.bf16 %v826, %v825
        %v1111 = vpack.c.bf16 %v828, %v827
        %v1112 = vpack.c.bf16 %v830, %v829
        %v1113 = vpack.c.bf16 %v832, %v831
        %v1114 = vpack.c.bf16 %v834, %v833
        %v1115 = vpack.c.bf16 %v836, %v835
        %v1116 = vpack.c.bf16 %v838, %v837
        %v1117 = vpack.c.bf16 %v840, %v839
        %v1118 = vpack.c.bf16 %v842, %v841
        %v1119 = vpack.c.bf16 %v844, %v843
        %v1120 = vpack.c.bf16 %v846, %v845
        %v1121 = vpack.c.bf16 %v848, %v847
        %v1122 = vld [vmem:[%s2] sm:$0x3]
        %v1123 = vpack.c.bf16 %v559, %v558
        %v1124 = vpack.c.bf16 %v561, %v560
        %v1125 = vpack.c.bf16 %v563, %v562
        %v1126 = vpack.c.bf16 %v565, %v564
        %v1127 = vpack.c.bf16 %v567, %v566
        %v1128 = vpack.c.bf16 %v569, %v568
        %v1129 = vpack.c.bf16 %v571, %v570
        %v1130 = vpack.c.bf16 %v573, %v572
        %v1131 = vpack.c.bf16 %v575, %v574
        %v1132 = vpack.c.bf16 %v577, %v576
        %v1133 = vpack.c.bf16 %v579, %v578
        %v1134 = vpack.c.bf16 %v581, %v580
        %v1135 = vpack.c.bf16 %v583, %v582
        %v1136 = vpack.c.bf16 %v585, %v584
        %v1137 = vpack.c.bf16 %v587, %v586
        %v1138 = vpack.c.bf16 %v589, %v588
        %v1139 = vld [vmem:[%s3] sm:$0x3]
        %vm1140 = vcmask 31744
        %v1142 = vsel %vm1140, %v1123, 0
        %v1145 = vsel %vm1140, %v1124, 0
        %v1148 = vsel %vm1140, %v1125, 0
        %v1151 = vsel %vm1140, %v1126, 0
        %v1154 = vsel %vm1140, %v1127, 0
        %v1157 = vsel %vm1140, %v1128, 0
        %v1160 = vsel %vm1140, %v1129, 0
        %v1163 = vsel %vm1140, %v1130, 0
        %v1166 = vsel %vm1140, %v1131, 0
        %v1169 = vsel %vm1140, %v1132, 0
        %v1172 = vsel %vm1140, %v1133, 0
        %v1175 = vsel %vm1140, %v1134, 0
        %v1178 = vsel %vm1140, %v1135, 0
        %v1181 = vsel %vm1140, %v1136, 0
        %v1184 = vsel %vm1140, %v1137, 0
        %v1187 = vsel %vm1140, %v1138, 0
        %vm1189 = vcmask 1041408
        %v1191 = vsel %vm1189, %v1139, 0
        %1193 = vmatprep.subr.bf16.mxu0 0
        %1194 = vmatpush1.bf16.msra.mxu0 %v1191
        %1195 = vmatprep.subr.bf16.mxu0 0
        %1196 = vmatpush1.bf16.msra.mxu0 0
        %1197 = vmatprep.subr.bf16.mxu0 0
        %1198 = vmatpush1.bf16.msra.mxu0 0
        %1199 = vmatprep.subr.bf16.mxu0 0
        %1200 = vmatpush1.bf16.msra.mxu0 0
        %1201 = vmatprep.subr.bf16.mxu0 0
        %1202 = vmatpush1.bf16.msra.mxu0 0
        %1203 = vmatprep.subr.bf16.mxu0 0
        %1204 = vmatpush1.bf16.msra.mxu0 0
        %1205 = vmatprep.subr.bf16.mxu0 0
        %1206 = vmatpush1.bf16.msra.mxu0 0
        %1207 = vmatprep.subr.bf16.mxu0 0
        %1208 = vmatpush1.bf16.msra.mxu0 0
        %1209 = vmatprep.subr.bf16.mxu0 0
        %1210 = vmatpush1.bf16.msra.mxu0 0
        %1211 = vmatprep.subr.bf16.mxu0 0
        %1212 = vmatpush1.bf16.msra.mxu0 0
        %1213 = vmatprep.subr.bf16.mxu0 0
        %1214 = vmatpush1.bf16.msra.mxu0 0
        %1215 = vmatprep.subr.bf16.mxu0 0
        %1216 = vmatpush1.bf16.msra.mxu0 0
        %1217 = vmatprep.subr.bf16.mxu0 0
        %1218 = vmatpush1.bf16.msra.mxu0 0
        %1219 = vmatprep.subr.bf16.mxu0 0
        %1220 = vmatpush1.bf16.msra.mxu0 0
        %1221 = vmatprep.subr.bf16.mxu0 0
        %1222 = vmatpush1.bf16.msra.mxu0 0
        %1223 = vmatprep.subr.bf16.mxu0 0
        %1224 = vmatpush1.bf16.msra.mxu0 0
        %1225 = vmatprep.mubr.bf16.mxu0 0
        %1226 = vmatmul.mubr.bf16.gmra.mrb[0].mxu0 %v1142
        %v1227 = vpop.f32.mrb[0].mxu0
        %v1228 = vadd.f32 0.0, %v1227
        %v1229 = vpop.f32.mrb[0].mxu0
        %v1230 = vpop.f32.mrb[0].mxu0
        %v1231 = vadd.f32 0.0, %v1230
        %v1232 = vpop.f32.mrb[0].mxu0
        %1233 = vmatprep.mubr.bf16.mxu0 0
        %1234 = vmatmul.mubr.bf16.gmra.mrb[0].mxu0 %v1145
        %v1235 = vpop.f32.mrb[0].mxu0
        %v1236 = vadd.f32 0.0, %v1235
        %v1237 = vpop.f32.mrb[0].mxu0
        %v1238 = vpop.f32.mrb[0].mxu0
        %v1239 = vadd.f32 0.0, %v1238
        %v1240 = vpop.f32.mrb[0].mxu0
        %1241 = vmatprep.mubr.bf16.mxu0 0
        %1242 = vmatmul.mubr.bf16.gmra.mrb[0].mxu0 %v1148
        %v1243 = vpop.f32.mrb[0].mxu0
        %v1244 = vadd.f32 0.0, %v1243
        %v1245 = vpop.f32.mrb[0].mxu0
        %v1246 = vpop.f32.mrb[0].mxu0
        %v1247 = vadd.f32 0.0, %v1246
        %v1248 = vpop.f32.mrb[0].mxu0
        %1249 = vmatprep.mubr.bf16.mxu0 0
        %1250 = vmatmul.mubr.bf16.gmra.mrb[0].mxu0 %v1151
        %v1251 = vpop.f32.mrb[0].mxu0
        %v1252 = vadd.f32 0.0, %v1251
        %v1253 = vpop.f32.mrb[0].mxu0
        %v1254 = vpop.f32.mrb[0].mxu0
        %v1255 = vadd.f32 0.0, %v1254
        %v1256 = vpop.f32.mrb[0].mxu0
        %1257 = vmatprep.mubr.bf16.mxu0 0
        %1258 = vmatmul.mubr.bf16.gmra.mrb[0].mxu0 %v1154
        %v1259 = vpop.f32.mrb[0].mxu0
        %v1260 = vadd.f32 0.0, %v1259
        %v1261 = vpop.f32.mrb[0].mxu0
        %v1262 = vpop.f32.mrb[0].mxu0
        %v1263 = vadd.f32 0.0, %v1262
        %v1264 = vpop.f32.mrb[0].mxu0
        %1265 = vmatprep.mubr.bf16.mxu0 0
        %1266 = vmatmul.mubr.bf16.gmra.mrb[0].mxu0 %v1157
        %v1267 = vpop.f32.mrb[0].mxu0
        %v1268 = vadd.f32 0.0, %v1267
        %v1269 = vpop.f32.mrb[0].mxu0
        %v1270 = vpop.f32.mrb[0].mxu0
        %v1271 = vadd.f32 0.0, %v1270
        %v1272 = vpop.f32.mrb[0].mxu0
        %1273 = vmatprep.mubr.bf16.mxu0 0
        %1274 = vmatmul.mubr.bf16.gmra.mrb[0].mxu0 %v1160
        %v1275 = vpop.f32.mrb[0].mxu0
        %v1276 = vadd.f32 0.0, %v1275
        %v1277 = vpop.f32.mrb[0].mxu0
        %v1278 = vpop.f32.mrb[0].mxu0
        %v1279 = vadd.f32 0.0, %v1278
        %v1280 = vpop.f32.mrb[0].mxu0
        %1281 = vmatprep.mubr.bf16.mxu0 0
        %1282 = vmatmul.mubr.bf16.gmra.mrb[0].mxu0 %v1163
        %v1283 = vpop.f32.mrb[0].mxu0
        %v1284 = vadd.f32 0.0, %v1283
        %v1285 = vpop.f32.mrb[0].mxu0
        %v1286 = vpop.f32.mrb[0].mxu0
        %v1287 = vadd.f32 0.0, %v1286
        %v1288 = vpop.f32.mrb[0].mxu0
        %1289 = vmatprep.mubr.bf16.mxu0 0
        %1290 = vmatmul.mubr.bf16.gmra.mrb[0].mxu0 %v1166
        %v1291 = vpop.f32.mrb[0].mxu0
        %v1292 = vadd.f32 0.0, %v1291
        %v1293 = vpop.f32.mrb[0].mxu0
        %v1294 = vpop.f32.mrb[0].mxu0
        %v1295 = vadd.f32 0.0, %v1294
        %v1296 = vpop.f32.mrb[0].mxu0
        %1297 = vmatprep.mubr.bf16.mxu0 0
        %1298 = vmatmul.mubr.bf16.gmra.mrb[0].mxu0 %v1169
        %v1299 = vpop.f32.mrb[0].mxu0
        %v1300 = vadd.f32 0.0, %v1299
        %v1301 = vpop.f32.mrb[0].mxu0
        %v1302 = vpop.f32.mrb[0].mxu0
        %v1303 = vadd.f32 0.0, %v1302
        %v1304 = vpop.f32.mrb[0].mxu0
        %1305 = vmatprep.mubr.bf16.mxu0 0
        %1306 = vmatmul.mubr.bf16.gmra.mrb[0].mxu0 %v1172
        %v1307 = vpop.f32.mrb[0].mxu0
        %v1308 = vadd.f32 0.0, %v1307
        %v1309 = vpop.f32.mrb[0].mxu0
        %v1310 = vpop.f32.mrb[0].mxu0
        %v1311 = vadd.f32 0.0, %v1310
        %v1312 = vpop.f32.mrb[0].mxu0
        %1313 = vmatprep.mubr.bf16.mxu0 0
        %1314 = vmatmul.mubr.bf16.gmra.mrb[0].mxu0 %v1175
        %v1315 = vpop.f32.mrb[0].mxu0
        %v1316 = vadd.f32 0.0, %v1315
        %v1317 = vpop.f32.mrb[0].mxu0
        %v1318 = vpop.f32.mrb[0].mxu0
        %v1319 = vadd.f32 0.0, %v1318
        %v1320 = vpop.f32.mrb[0].mxu0
        %1321 = vmatprep.mubr.bf16.mxu0 0
        %1322 = vmatmul.mubr.bf16.gmra.mrb[0].mxu0 %v1178
        %v1323 = vpop.f32.mrb[0].mxu0
        %v1324 = vadd.f32 0.0, %v1323
        %v1325 = vpop.f32.mrb[0].mxu0
        %v1326 = vpop.f32.mrb[0].mxu0
        %v1327 = vadd.f32 0.0, %v1326
        %v1328 = vpop.f32.mrb[0].mxu0
        %1329 = vmatprep.mubr.bf16.mxu0 0
        %1330 = vmatmul.mubr.bf16.gmra.mrb[0].mxu0 %v1181
        %v1331 = vpop.f32.mrb[0].mxu0
        %v1332 = vadd.f32 0.0, %v1331
        %v1333 = vpop.f32.mrb[0].mxu0
        %v1334 = vpop.f32.mrb[0].mxu0
        %v1335 = vadd.f32 0.0, %v1334
        %v1336 = vpop.f32.mrb[0].mxu0
        %1337 = vmatprep.mubr.bf16.mxu0 0
        %1338 = vmatmul.mubr.bf16.gmra.mrb[0].mxu0 %v1184
        %v1339 = vpop.f32.mrb[0].mxu0
        %v1340 = vadd.f32 0.0, %v1339
        %v1341 = vpop.f32.mrb[0].mxu0
        %v1342 = vpop.f32.mrb[0].mxu0
        %v1343 = vadd.f32 0.0, %v1342
        %v1344 = vpop.f32.mrb[0].mxu0
        %1345 = vmatprep.mubr.bf16.mxu0 0
        %1346 = vmatmul.mubr.bf16.gmra.mrb[0].mxu0 %v1187
        %v1347 = vpop.f32.mrb[0].mxu0
        %v1348 = vadd.f32 0.0, %v1347
        %v1349 = vpop.f32.mrb[0].mxu0
        %v1350 = vpop.f32.mrb[0].mxu0
        %v1351 = vadd.f32 0.0, %v1350
        %v1352 = vpop.f32.mrb[0].mxu0
        %1353 = vdwg.mxu0
        %v1355 = vsel %vm1140, %v1106, 0
        %v1358 = vsel %vm1140, %v1107, 0
        %v1361 = vsel %vm1140, %v1108, 0
        %v1364 = vsel %vm1140, %v1109, 0
        %v1367 = vsel %vm1140, %v1110, 0
        %v1370 = vsel %vm1140, %v1111, 0
        %v1373 = vsel %vm1140, %v1112, 0
        %v1376 = vsel %vm1140, %v1113, 0
        %v1379 = vsel %vm1140, %v1114, 0
        %v1382 = vsel %vm1140, %v1115, 0
        %v1385 = vsel %vm1140, %v1116, 0
        %v1388 = vsel %vm1140, %v1117, 0
        %v1391 = vsel %vm1140, %v1118, 0
        %v1394 = vsel %vm1140, %v1119, 0
        %v1397 = vsel %vm1140, %v1120, 0
        %v1400 = vsel %vm1140, %v1121, 0
        %v1403 = vsel %vm1189, %v1122, 0
        %1405 = vmatprep.subr.bf16.mxu0 0
        %1406 = vmatpush1.bf16.msra.mxu0 %v1403
        %1407 = vmatprep.subr.bf16.mxu0 0
        %1408 = vmatpush1.bf16.msra.mxu0 0
        %1409 = vmatprep.subr.bf16.mxu0 0
        %1410 = vmatpush1.bf16.msra.mxu0 0
        %1411 = vmatprep.subr.bf16.mxu0 0
        %1412 = vmatpush1.bf16.msra.mxu0 0
        %1413 = vmatprep.subr.bf16.mxu0 0
        %1414 = vmatpush1.bf16.msra.mxu0 0
        %1415 = vmatprep.subr.bf16.mxu0 0
        %1416 = vmatpush1.bf16.msra.mxu0 0
        %1417 = vmatprep.subr.bf16.mxu0 0
        %1418 = vmatpush1.bf16.msra.mxu0 0
        %1419 = vmatprep.subr.bf16.mxu0 0
        %1420 = vmatpush1.bf16.msra.mxu0 0
        %1421 = vmatprep.subr.bf16.mxu0 0
        %1422 = vmatpush1.bf16.msra.mxu0 0
        %1423 = vmatprep.subr.bf16.mxu0 0
        %1424 = vmatpush1.bf16.msra.mxu0 0
        %1425 = vmatprep.subr.bf16.mxu0 0
        %1426 = vmatpush1.bf16.msra.mxu0 0
        %1427 = vmatprep.subr.bf16.mxu0 0
        %1428 = vmatpush1.bf16.msra.mxu0 0
        %1429 = vmatprep.subr.bf16.mxu0 0
        %1430 = vmatpush1.bf16.msra.mxu0 0
        %1431 = vmatprep.subr.bf16.mxu0 0
        %1432 = vmatpush1.bf16.msra.mxu0 0
        %1433 = vmatprep.subr.bf16.mxu0 0
        %1434 = vmatpush1.bf16.msra.mxu0 0
        %1435 = vmatprep.subr.bf16.mxu0 0
        %1436 = vmatpush1.bf16.msra.mxu0 0
        %1437 = vmatprep.mubr.bf16.mxu0 0
        %1438 = vmatmul.mubr.bf16.gmra.mrb[0].mxu0 %v1355
        %v1439 = vpop.f32.mrb[0].mxu0
        %v1440 = vadd.f32 %v1228, %v1439
        %v1441 = vpop.f32.mrb[0].mxu0
        %v1442 = vpop.f32.mrb[0].mxu0
        %v1443 = vadd.f32 %v1231, %v1442
        %v1444 = vpop.f32.mrb[0].mxu0
        %1445 = vmatprep.mubr.bf16.mxu0 0
        %1446 = vmatmul.mubr.bf16.gmra.mrb[0].mxu0 %v1358
        %v1447 = vpop.f32.mrb[0].mxu0
        %v1448 = vadd.f32 %v1236, %v1447
        %v1449 = vpop.f32.mrb[0].mxu0
        %v1450 = vpop.f32.mrb[0].mxu0
        %v1451 = vadd.f32 %v1239, %v1450
        %v1452 = vpop.f32.mrb[0].mxu0
        %1453 = vmatprep.mubr.bf16.mxu0 0
        %1454 = vmatmul.mubr.bf16.gmra.mrb[0].mxu0 %v1361
        %v1455 = vpop.f32.mrb[0].mxu0
        %v1456 = vadd.f32 %v1244, %v1455
        %v1457 = vpop.f32.mrb[0].mxu0
        %v1458 = vpop.f32.mrb[0].mxu0
        %v1459 = vadd.f32 %v1247, %v1458
        %v1460 = vpop.f32.mrb[0].mxu0
        %1461 = vmatprep.mubr.bf16.mxu0 0
        %1462 = vmatmul.mubr.bf16.gmra.mrb[0].mxu0 %v1364
        %v1463 = vpop.f32.mrb[0].mxu0
        %v1464 = vadd.f32 %v1252, %v1463
        %v1465 = vpop.f32.mrb[0].mxu0
        %v1466 = vpop.f32.mrb[0].mxu0
        %v1467 = vadd.f32 %v1255, %v1466
        %v1468 = vpop.f32.mrb[0].mxu0
        %1469 = vmatprep.mubr.bf16.mxu0 0
        %1470 = vmatmul.mubr.bf16.gmra.mrb[0].mxu0 %v1367
        %v1471 = vpop.f32.mrb[0].mxu0
        %v1472 = vadd.f32 %v1260, %v1471
        %v1473 = vpop.f32.mrb[0].mxu0
        %v1474 = vpop.f32.mrb[0].mxu0
        %v1475 = vadd.f32 %v1263, %v1474
        %v1476 = vpop.f32.mrb[0].mxu0
        %1477 = vmatprep.mubr.bf16.mxu0 0
        %1478 = vmatmul.mubr.bf16.gmra.mrb[0].mxu0 %v1370
        %v1479 = vpop.f32.mrb[0].mxu0
        %v1480 = vadd.f32 %v1268, %v1479
        %v1481 = vpop.f32.mrb[0].mxu0
        %v1482 = vpop.f32.mrb[0].mxu0
        %v1483 = vadd.f32 %v1271, %v1482
        %v1484 = vpop.f32.mrb[0].mxu0
        %1485 = vmatprep.mubr.bf16.mxu0 0
        %1486 = vmatmul.mubr.bf16.gmra.mrb[0].mxu0 %v1373
        %v1487 = vpop.f32.mrb[0].mxu0
        %v1488 = vadd.f32 %v1276, %v1487
        %v1489 = vpop.f32.mrb[0].mxu0
        %v1490 = vpop.f32.mrb[0].mxu0
        %v1491 = vadd.f32 %v1279, %v1490
        %v1492 = vpop.f32.mrb[0].mxu0
        %1493 = vmatprep.mubr.bf16.mxu0 0
        %1494 = vmatmul.mubr.bf16.gmra.mrb[0].mxu0 %v1376
        %v1495 = vpop.f32.mrb[0].mxu0
        %v1496 = vadd.f32 %v1284, %v1495
        %v1497 = vpop.f32.mrb[0].mxu0
        %v1498 = vpop.f32.mrb[0].mxu0
        %v1499 = vadd.f32 %v1287, %v1498
        %v1500 = vpop.f32.mrb[0].mxu0
        %1501 = vmatprep.mubr.bf16.mxu0 0
        %1502 = vmatmul.mubr.bf16.gmra.mrb[0].mxu0 %v1379
        %v1503 = vpop.f32.mrb[0].mxu0
        %v1504 = vadd.f32 %v1292, %v1503
        %v1505 = vpop.f32.mrb[0].mxu0
        %v1506 = vpop.f32.mrb[0].mxu0
        %v1507 = vadd.f32 %v1295, %v1506
        %v1508 = vpop.f32.mrb[0].mxu0
        %1509 = vmatprep.mubr.bf16.mxu0 0
        %1510 = vmatmul.mubr.bf16.gmra.mrb[0].mxu0 %v1382
        %v1511 = vpop.f32.mrb[0].mxu0
        %v1512 = vadd.f32 %v1300, %v1511
        %v1513 = vpop.f32.mrb[0].mxu0
        %v1514 = vpop.f32.mrb[0].mxu0
        %v1515 = vadd.f32 %v1303, %v1514
        %v1516 = vpop.f32.mrb[0].mxu0
        %1517 = vmatprep.mubr.bf16.mxu0 0
        %1518 = vmatmul.mubr.bf16.gmra.mrb[0].mxu0 %v1385
        %v1519 = vpop.f32.mrb[0].mxu0
        %v1520 = vadd.f32 %v1308, %v1519
        %v1521 = vpop.f32.mrb[0].mxu0
        %v1522 = vpop.f32.mrb[0].mxu0
        %v1523 = vadd.f32 %v1311, %v1522
        %v1524 = vpop.f32.mrb[0].mxu0
        %1525 = vmatprep.mubr.bf16.mxu0 0
        %1526 = vmatmul.mubr.bf16.gmra.mrb[0].mxu0 %v1388
        %v1527 = vpop.f32.mrb[0].mxu0
        %v1528 = vadd.f32 %v1316, %v1527
        %v1529 = vpop.f32.mrb[0].mxu0
        %v1530 = vpop.f32.mrb[0].mxu0
        %v1531 = vadd.f32 %v1319, %v1530
        %v1532 = vpop.f32.mrb[0].mxu0
        %1533 = vmatprep.mubr.bf16.mxu0 0
        %1534 = vmatmul.mubr.bf16.gmra.mrb[0].mxu0 %v1391
        %v1535 = vpop.f32.mrb[0].mxu0
        %v1536 = vadd.f32 %v1324, %v1535
        %v1537 = vpop.f32.mrb[0].mxu0
        %v1538 = vpop.f32.mrb[0].mxu0
        %v1539 = vadd.f32 %v1327, %v1538
        %v1540 = vpop.f32.mrb[0].mxu0
        %1541 = vmatprep.mubr.bf16.mxu0 0
        %1542 = vmatmul.mubr.bf16.gmra.mrb[0].mxu0 %v1394
        %v1543 = vpop.f32.mrb[0].mxu0
        %v1544 = vadd.f32 %v1332, %v1543
        %v1545 = vpop.f32.mrb[0].mxu0
        %v1546 = vpop.f32.mrb[0].mxu0
        %v1547 = vadd.f32 %v1335, %v1546
        %v1548 = vpop.f32.mrb[0].mxu0
        %1549 = vmatprep.mubr.bf16.mxu0 0
        %1550 = vmatmul.mubr.bf16.gmra.mrb[0].mxu0 %v1397
        %v1551 = vpop.f32.mrb[0].mxu0
        %v1552 = vadd.f32 %v1340, %v1551
        %v1553 = vpop.f32.mrb[0].mxu0
        %v1554 = vpop.f32.mrb[0].mxu0
        %v1555 = vadd.f32 %v1343, %v1554
        %v1556 = vpop.f32.mrb[0].mxu0
        %1557 = vmatprep.mubr.bf16.mxu0 0
        %1558 = vmatmul.mubr.bf16.gmra.mrb[0].mxu0 %v1400
        %v1559 = vpop.f32.mrb[0].mxu0
        %v1560 = vadd.f32 %v1348, %v1559
        %v1561 = vpop.f32.mrb[0].mxu0
        %v1562 = vpop.f32.mrb[0].mxu0
        %v1563 = vadd.f32 %v1351, %v1562
        %v1564 = vpop.f32.mrb[0].mxu0
        %1565 = vdwg.mxu0
        %v1566 = vpack.c.bf16 %v1075, %v1074
        %v1567 = vpack.c.bf16 %v1077, %v1076
        %v1568 = vpack.c.bf16 %v1079, %v1078
        %v1569 = vpack.c.bf16 %v1081, %v1080
        %v1570 = vpack.c.bf16 %v1083, %v1082
        %v1571 = vpack.c.bf16 %v1085, %v1084
        %v1572 = vpack.c.bf16 %v1087, %v1086
        %v1573 = vpack.c.bf16 %v1089, %v1088
        %v1574 = vpack.c.bf16 %v1091, %v1090
        %v1575 = vpack.c.bf16 %v1093, %v1092
        %v1576 = vpack.c.bf16 %v1095, %v1094
        %v1577 = vpack.c.bf16 %v1097, %v1096
        %v1578 = vpack.c.bf16 %v1099, %v1098
        %v1579 = vpack.c.bf16 %v1101, %v1100
        %v1580 = vpack.c.bf16 %v1103, %v1102
        %v1581 = vpack.c.bf16 %v1105, %v1104
        %v1582 = vld [vmem:[%s4] sm:$0x3]
        %v1584 = vsel %vm1140, %v1566, 0
        %v1587 = vsel %vm1140, %v1567, 0
        %v1590 = vsel %vm1140, %v1568, 0
        %v1593 = vsel %vm1140, %v1569, 0
        %v1596 = vsel %vm1140, %v1570, 0
        %v1599 = vsel %vm1140, %v1571, 0
        %v1602 = vsel %vm1140, %v1572, 0
        %v1605 = vsel %vm1140, %v1573, 0
        %v1608 = vsel %vm1140, %v1574, 0
        %v1611 = vsel %vm1140, %v1575, 0
        %v1614 = vsel %vm1140, %v1576, 0
        %v1617 = vsel %vm1140, %v1577, 0
        %v1620 = vsel %vm1140, %v1578, 0
        %v1623 = vsel %vm1140, %v1579, 0
        %v1626 = vsel %vm1140, %v1580, 0
        %v1629 = vsel %vm1140, %v1581, 0
        %v1632 = vsel %vm1189, %v1582, 0
        %1634 = vmatprep.subr.bf16.mxu0 0
        %1635 = vmatpush1.bf16.msra.mxu0 %v1632
        %1636 = vmatprep.subr.bf16.mxu0 0
        %1637 = vmatpush1.bf16.msra.mxu0 0
        %1638 = vmatprep.subr.bf16.mxu0 0
        %1639 = vmatpush1.bf16.msra.mxu0 0
        %1640 = vmatprep.subr.bf16.mxu0 0
        %1641 = vmatpush1.bf16.msra.mxu0 0
        %1642 = vmatprep.subr.bf16.mxu0 0
        %1643 = vmatpush1.bf16.msra.mxu0 0
        %1644 = vmatprep.subr.bf16.mxu0 0
        %1645 = vmatpush1.bf16.msra.mxu0 0
        %1646 = vmatprep.subr.bf16.mxu0 0
        %1647 = vmatpush1.bf16.msra.mxu0 0
        %1648 = vmatprep.subr.bf16.mxu0 0
        %1649 = vmatpush1.bf16.msra.mxu0 0
        %1650 = vmatprep.subr.bf16.mxu0 0
        %1651 = vmatpush1.bf16.msra.mxu0 0
        %1652 = vmatprep.subr.bf16.mxu0 0
        %1653 = vmatpush1.bf16.msra.mxu0 0
        %1654 = vmatprep.subr.bf16.mxu0 0
        %1655 = vmatpush1.bf16.msra.mxu0 0
        %1656 = vmatprep.subr.bf16.mxu0 0
        %1657 = vmatpush1.bf16.msra.mxu0 0
        %1658 = vmatprep.subr.bf16.mxu0 0
        %1659 = vmatpush1.bf16.msra.mxu0 0
        %1660 = vmatprep.subr.bf16.mxu0 0
        %1661 = vmatpush1.bf16.msra.mxu0 0
        %1662 = vmatprep.subr.bf16.mxu0 0
        %1663 = vmatpush1.bf16.msra.mxu0 0
        %1664 = vmatprep.subr.bf16.mxu0 0
        %1665 = vmatpush1.bf16.msra.mxu0 0
        %1666 = vmatprep.mubr.bf16.mxu0 0
        %1667 = vmatmul.mubr.bf16.gmra.mrb[0].mxu0 %v1584
        %v1668 = vpop.f32.mrb[0].mxu0
        %v1669 = vadd.f32 0.0, %v1668
        %v1670 = vpop.f32.mrb[0].mxu0
        %v1671 = vpop.f32.mrb[0].mxu0
        %v1672 = vadd.f32 0.0, %v1671
        %v1673 = vpop.f32.mrb[0].mxu0
        %1674 = vmatprep.mubr.bf16.mxu0 0
        %1675 = vmatmul.mubr.bf16.gmra.mrb[0].mxu0 %v1587
        %v1676 = vpop.f32.mrb[0].mxu0
        %v1677 = vadd.f32 0.0, %v1676
        %v1678 = vpop.f32.mrb[0].mxu0
        %v1679 = vpop.f32.mrb[0].mxu0
        %v1680 = vadd.f32 0.0, %v1679
        %v1681 = vpop.f32.mrb[0].mxu0
        %1682 = vmatprep.mubr.bf16.mxu0 0
        %1683 = vmatmul.mubr.bf16.gmra.mrb[0].mxu0 %v1590
        %v1684 = vpop.f32.mrb[0].mxu0
        %v1685 = vadd.f32 0.0, %v1684
        %v1686 = vpop.f32.mrb[0].mxu0
        %v1687 = vpop.f32.mrb[0].mxu0
        %v1688 = vadd.f32 0.0, %v1687
        %v1689 = vpop.f32.mrb[0].mxu0
        %1690 = vmatprep.mubr.bf16.mxu0 0
        %1691 = vmatmul.mubr.bf16.gmra.mrb[0].mxu0 %v1593
        %v1692 = vpop.f32.mrb[0].mxu0
        %v1693 = vadd.f32 0.0, %v1692
        %v1694 = vpop.f32.mrb[0].mxu0
        %v1695 = vpop.f32.mrb[0].mxu0
        %v1696 = vadd.f32 0.0, %v1695
        %v1697 = vpop.f32.mrb[0].mxu0
        %1698 = vmatprep.mubr.bf16.mxu0 0
        %1699 = vmatmul.mubr.bf16.gmra.mrb[0].mxu0 %v1596
        %v1700 = vpop.f32.mrb[0].mxu0
        %v1701 = vadd.f32 0.0, %v1700
        %v1702 = vpop.f32.mrb[0].mxu0
        %v1703 = vpop.f32.mrb[0].mxu0
        %v1704 = vadd.f32 0.0, %v1703
        %v1705 = vpop.f32.mrb[0].mxu0
        %1706 = vmatprep.mubr.bf16.mxu0 0
        %1707 = vmatmul.mubr.bf16.gmra.mrb[0].mxu0 %v1599
        %v1708 = vpop.f32.mrb[0].mxu0
        %v1709 = vadd.f32 0.0, %v1708
        %v1710 = vpop.f32.mrb[0].mxu0
        %v1711 = vpop.f32.mrb[0].mxu0
        %v1712 = vadd.f32 0.0, %v1711
        %v1713 = vpop.f32.mrb[0].mxu0
        %1714 = vmatprep.mubr.bf16.mxu0 0
        %1715 = vmatmul.mubr.bf16.gmra.mrb[0].mxu0 %v1602
        %v1716 = vpop.f32.mrb[0].mxu0
        %v1717 = vadd.f32 0.0, %v1716
        %v1718 = vpop.f32.mrb[0].mxu0
        %v1719 = vpop.f32.mrb[0].mxu0
        %v1720 = vadd.f32 0.0, %v1719
        %v1721 = vpop.f32.mrb[0].mxu0
        %1722 = vmatprep.mubr.bf16.mxu0 0
        %1723 = vmatmul.mubr.bf16.gmra.mrb[0].mxu0 %v1605
        %v1724 = vpop.f32.mrb[0].mxu0
        %v1725 = vadd.f32 0.0, %v1724
        %v1726 = vpop.f32.mrb[0].mxu0
        %v1727 = vpop.f32.mrb[0].mxu0
        %v1728 = vadd.f32 0.0, %v1727
        %v1729 = vpop.f32.mrb[0].mxu0
        %1730 = vmatprep.mubr.bf16.mxu0 0
        %1731 = vmatmul.mubr.bf16.gmra.mrb[0].mxu0 %v1608
        %v1732 = vpop.f32.mrb[0].mxu0
        %v1733 = vadd.f32 0.0, %v1732
        %v1734 = vpop.f32.mrb[0].mxu0
        %v1735 = vpop.f32.mrb[0].mxu0
        %v1736 = vadd.f32 0.0, %v1735
        %v1737 = vpop.f32.mrb[0].mxu0
        %1738 = vmatprep.mubr.bf16.mxu0 0
        %1739 = vmatmul.mubr.bf16.gmra.mrb[0].mxu0 %v1611
        %v1740 = vpop.f32.mrb[0].mxu0
        %v1741 = vadd.f32 0.0, %v1740
        %v1742 = vpop.f32.mrb[0].mxu0
        %v1743 = vpop.f32.mrb[0].mxu0
        %v1744 = vadd.f32 0.0, %v1743
        %v1745 = vpop.f32.mrb[0].mxu0
        %1746 = vmatprep.mubr.bf16.mxu0 0
        %1747 = vmatmul.mubr.bf16.gmra.mrb[0].mxu0 %v1614
        %v1748 = vpop.f32.mrb[0].mxu0
        %v1749 = vadd.f32 0.0, %v1748
        %v1750 = vpop.f32.mrb[0].mxu0
        %v1751 = vpop.f32.mrb[0].mxu0
        %v1752 = vadd.f32 0.0, %v1751
        %v1753 = vpop.f32.mrb[0].mxu0
        %1754 = vmatprep.mubr.bf16.mxu0 0
        %1755 = vmatmul.mubr.bf16.gmra.mrb[0].mxu0 %v1617
        %v1756 = vpop.f32.mrb[0].mxu0
        %v1757 = vadd.f32 0.0, %v1756
        %v1758 = vpop.f32.mrb[0].mxu0
        %v1759 = vpop.f32.mrb[0].mxu0
        %v1760 = vadd.f32 0.0, %v1759
        %v1761 = vpop.f32.mrb[0].mxu0
        %1762 = vmatprep.mubr.bf16.mxu0 0
        %1763 = vmatmul.mubr.bf16.gmra.mrb[0].mxu0 %v1620
        %v1764 = vpop.f32.mrb[0].mxu0
        %v1765 = vadd.f32 0.0, %v1764
        %v1766 = vpop.f32.mrb[0].mxu0
        %v1767 = vpop.f32.mrb[0].mxu0
        %v1768 = vadd.f32 0.0, %v1767
        %v1769 = vpop.f32.mrb[0].mxu0
        %1770 = vmatprep.mubr.bf16.mxu0 0
        %1771 = vmatmul.mubr.bf16.gmra.mrb[0].mxu0 %v1623
        %v1772 = vpop.f32.mrb[0].mxu0
        %v1773 = vadd.f32 0.0, %v1772
        %v1774 = vpop.f32.mrb[0].mxu0
        %v1775 = vpop.f32.mrb[0].mxu0
        %v1776 = vadd.f32 0.0, %v1775
        %v1777 = vpop.f32.mrb[0].mxu0
        %1778 = vmatprep.mubr.bf16.mxu0 0
        %1779 = vmatmul.mubr.bf16.gmra.mrb[0].mxu0 %v1626
        %v1780 = vpop.f32.mrb[0].mxu0
        %v1781 = vadd.f32 0.0, %v1780
        %v1782 = vpop.f32.mrb[0].mxu0
        %v1783 = vpop.f32.mrb[0].mxu0
        %v1784 = vadd.f32 0.0, %v1783
        %v1785 = vpop.f32.mrb[0].mxu0
        %1786 = vmatprep.mubr.bf16.mxu0 0
        %1787 = vmatmul.mubr.bf16.gmra.mrb[0].mxu0 %v1629
        %v1788 = vpop.f32.mrb[0].mxu0
        %v1789 = vadd.f32 0.0, %v1788
        %v1790 = vpop.f32.mrb[0].mxu0
        %v1791 = vpop.f32.mrb[0].mxu0
        %v1792 = vadd.f32 0.0, %v1791
        %v1793 = vpop.f32.mrb[0].mxu0
        %1794 = vdwg.mxu0
        %v1795 = vadd.f32 %v1440, %v1669
        %v1796 = vadd.f32 %v1443, %v1672
        %v1797 = vadd.f32 %v1448, %v1677
        %v1798 = vadd.f32 %v1451, %v1680
        %v1799 = vadd.f32 %v1456, %v1685
        %v1800 = vadd.f32 %v1459, %v1688
        %v1801 = vadd.f32 %v1464, %v1693
        %v1802 = vadd.f32 %v1467, %v1696
        %v1803 = vadd.f32 %v1472, %v1701
        %v1804 = vadd.f32 %v1475, %v1704
        %v1805 = vadd.f32 %v1480, %v1709
        %v1806 = vadd.f32 %v1483, %v1712
        %v1807 = vadd.f32 %v1488, %v1717
        %v1808 = vadd.f32 %v1491, %v1720
        %v1809 = vadd.f32 %v1496, %v1725
        %v1810 = vadd.f32 %v1499, %v1728
        %v1811 = vadd.f32 %v1504, %v1733
        %v1812 = vadd.f32 %v1507, %v1736
        %v1813 = vadd.f32 %v1512, %v1741
        %v1814 = vadd.f32 %v1515, %v1744
        %v1815 = vadd.f32 %v1520, %v1749
        %v1816 = vadd.f32 %v1523, %v1752
        %v1817 = vadd.f32 %v1528, %v1757
        %v1818 = vadd.f32 %v1531, %v1760
        %v1819 = vadd.f32 %v1536, %v1765
        %v1820 = vadd.f32 %v1539, %v1768
        %v1821 = vadd.f32 %v1544, %v1773
        %v1822 = vadd.f32 %v1547, %v1776
        %v1823 = vadd.f32 %v1552, %v1781
        %v1824 = vadd.f32 %v1555, %v1784
        %v1825 = vadd.f32 %v1560, %v1789
        %v1826 = vadd.f32 %v1563, %v1792
        %v1827 = vld [vmem:[%s5] sm:$0x7]
        %v1828 = vlaneseq
        %v1829 = vshrl.u32 %v1828, 7
        %v1830 = vsub.s32 0, %v1829
        %v1831 = vrot.slane %v1827, %v1830
        %v1832 = vadd.f32 %v1795, %v1831
        %v1833 = vadd.f32 %v1796, %v1831
        %v1834 = vadd.f32 %v1797, %v1831
        %v1835 = vadd.f32 %v1798, %v1831
        %v1836 = vadd.f32 %v1799, %v1831
        %v1837 = vadd.f32 %v1800, %v1831
        %v1838 = vadd.f32 %v1801, %v1831
        %v1839 = vadd.f32 %v1802, %v1831
        %v1840 = vadd.f32 %v1803, %v1831
        %v1841 = vadd.f32 %v1804, %v1831
        %v1842 = vadd.f32 %v1805, %v1831
        %v1843 = vadd.f32 %v1806, %v1831
        %v1844 = vadd.f32 %v1807, %v1831
        %v1845 = vadd.f32 %v1808, %v1831
        %v1846 = vadd.f32 %v1809, %v1831
        %v1847 = vadd.f32 %v1810, %v1831
        %v1848 = vadd.f32 %v1811, %v1831
        %v1849 = vadd.f32 %v1812, %v1831
        %v1850 = vadd.f32 %v1813, %v1831
        %v1851 = vadd.f32 %v1814, %v1831
        %v1852 = vadd.f32 %v1815, %v1831
        %v1853 = vadd.f32 %v1816, %v1831
        %v1854 = vadd.f32 %v1817, %v1831
        %v1855 = vadd.f32 %v1818, %v1831
        %v1856 = vadd.f32 %v1819, %v1831
        %v1857 = vadd.f32 %v1820, %v1831
        %v1858 = vadd.f32 %v1821, %v1831
        %v1859 = vadd.f32 %v1822, %v1831
        %v1860 = vadd.f32 %v1823, %v1831
        %v1861 = vadd.f32 %v1824, %v1831
        %v1862 = vadd.f32 %v1825, %v1831
        %v1863 = vadd.f32 %v1826, %v1831
        %v1864 = vxor.u32 %v1832, 2147483648
        %v1865 = vxor.u32 %v1833, 2147483648
        %v1866 = vxor.u32 %v1834, 2147483648
        %v1867 = vxor.u32 %v1835, 2147483648
        %v1868 = vxor.u32 %v1836, 2147483648
        %v1869 = vxor.u32 %v1837, 2147483648
        %v1870 = vxor.u32 %v1838, 2147483648
        %v1871 = vxor.u32 %v1839, 2147483648
        %v1872 = vxor.u32 %v1840, 2147483648
        %v1873 = vxor.u32 %v1841, 2147483648
        %v1874 = vxor.u32 %v1842, 2147483648
        %v1875 = vxor.u32 %v1843, 2147483648
        %v1876 = vxor.u32 %v1844, 2147483648
        %v1877 = vxor.u32 %v1845, 2147483648
        %v1878 = vxor.u32 %v1846, 2147483648
        %v1879 = vxor.u32 %v1847, 2147483648
        %v1880 = vxor.u32 %v1848, 2147483648
        %v1881 = vxor.u32 %v1849, 2147483648
        %v1882 = vxor.u32 %v1850, 2147483648
        %v1883 = vxor.u32 %v1851, 2147483648
        %v1884 = vxor.u32 %v1852, 2147483648
        %v1885 = vxor.u32 %v1853, 2147483648
        %v1886 = vxor.u32 %v1854, 2147483648
        %v1887 = vxor.u32 %v1855, 2147483648
        %v1888 = vxor.u32 %v1856, 2147483648
        %v1889 = vxor.u32 %v1857, 2147483648
        %v1890 = vxor.u32 %v1858, 2147483648
        %v1891 = vxor.u32 %v1859, 2147483648
        %v1892 = vxor.u32 %v1860, 2147483648
        %v1893 = vxor.u32 %v1861, 2147483648
        %v1894 = vxor.u32 %v1862, 2147483648
        %v1895 = vxor.u32 %v1863, 2147483648
        %v1896 = vmul.f32 %v1864, 1.442695
        %v1897 = vpow.pop %v1896
        %v1898 = vmul.f32 %v1865, 1.442695
        %v1899 = vpow.pop %v1898
        %v1900 = vmul.f32 %v1866, 1.442695
        %v1901 = vpow.pop %v1900
        %v1902 = vmul.f32 %v1867, 1.442695
        %v1903 = vpow.pop %v1902
        %v1904 = vmul.f32 %v1868, 1.442695
        %v1905 = vpow.pop %v1904
        %v1906 = vmul.f32 %v1869, 1.442695
        %v1907 = vpow.pop %v1906
        %v1908 = vmul.f32 %v1870, 1.442695
        %v1909 = vpow.pop %v1908
        %v1910 = vmul.f32 %v1871, 1.442695
        %v1911 = vpow.pop %v1910
        %v1912 = vmul.f32 %v1872, 1.442695
        %v1913 = vpow.pop %v1912
        %v1914 = vmul.f32 %v1873, 1.442695
        %v1915 = vpow.pop %v1914
        %v1916 = vmul.f32 %v1874, 1.442695
        %v1917 = vpow.pop %v1916
        %v1918 = vmul.f32 %v1875, 1.442695
        %v1919 = vpow.pop %v1918
        %v1920 = vmul.f32 %v1876, 1.442695
        %v1921 = vpow.pop %v1920
        %v1922 = vmul.f32 %v1877, 1.442695
        %v1923 = vpow.pop %v1922
        %v1924 = vmul.f32 %v1878, 1.442695
        %v1925 = vpow.pop %v1924
        %v1926 = vmul.f32 %v1879, 1.442695
        %v1927 = vpow.pop %v1926
        %v1928 = vmul.f32 %v1880, 1.442695
        %v1929 = vpow.pop %v1928
        %v1930 = vmul.f32 %v1881, 1.442695
        %v1931 = vpow.pop %v1930
        %v1932 = vmul.f32 %v1882, 1.442695
        %v1933 = vpow.pop %v1932
        %v1934 = vmul.f32 %v1883, 1.442695
        %v1935 = vpow.pop %v1934
        %v1936 = vmul.f32 %v1884, 1.442695
        %v1937 = vpow.pop %v1936
        %v1938 = vmul.f32 %v1885, 1.442695
        %v1939 = vpow.pop %v1938
        %v1940 = vmul.f32 %v1886, 1.442695
        %v1941 = vpow.pop %v1940
        %v1942 = vmul.f32 %v1887, 1.442695
        %v1943 = vpow.pop %v1942
        %v1944 = vmul.f32 %v1888, 1.442695
        %v1945 = vpow.pop %v1944
        %v1946 = vmul.f32 %v1889, 1.442695
        %v1947 = vpow.pop %v1946
        %v1948 = vmul.f32 %v1890, 1.442695
        %v1949 = vpow.pop %v1948
        %v1950 = vmul.f32 %v1891, 1.442695
        %v1951 = vpow.pop %v1950
        %v1952 = vmul.f32 %v1892, 1.442695
        %v1953 = vpow.pop %v1952
        %v1954 = vmul.f32 %v1893, 1.442695
        %v1955 = vpow.pop %v1954
        %v1956 = vmul.f32 %v1894, 1.442695
        %v1957 = vpow.pop %v1956
        %v1958 = vmul.f32 %v1895, 1.442695
        %v1959 = vpow.pop %v1958
        %v1960 = vadd.f32 %v1897, 1.0
        %v1961 = vadd.f32 %v1899, 1.0
        %v1962 = vadd.f32 %v1901, 1.0
        %v1963 = vadd.f32 %v1903, 1.0
        %v1964 = vadd.f32 %v1905, 1.0
        %v1965 = vadd.f32 %v1907, 1.0
        %v1966 = vadd.f32 %v1909, 1.0
        %v1967 = vadd.f32 %v1911, 1.0
        %v1968 = vadd.f32 %v1913, 1.0
        %v1969 = vadd.f32 %v1915, 1.0
        %v1970 = vadd.f32 %v1917, 1.0
        %v1971 = vadd.f32 %v1919, 1.0
        %v1972 = vadd.f32 %v1921, 1.0
        %v1973 = vadd.f32 %v1923, 1.0
        %v1974 = vadd.f32 %v1925, 1.0
        %v1975 = vadd.f32 %v1927, 1.0
        %v1976 = vadd.f32 %v1929, 1.0
        %v1977 = vadd.f32 %v1931, 1.0
        %v1978 = vadd.f32 %v1933, 1.0
        %v1979 = vadd.f32 %v1935, 1.0
        %v1980 = vadd.f32 %v1937, 1.0
        %v1981 = vadd.f32 %v1939, 1.0
        %v1982 = vadd.f32 %v1941, 1.0
        %v1983 = vadd.f32 %v1943, 1.0
        %v1984 = vadd.f32 %v1945, 1.0
        %v1985 = vadd.f32 %v1947, 1.0
        %v1986 = vadd.f32 %v1949, 1.0
        %v1987 = vadd.f32 %v1951, 1.0
        %v1988 = vadd.f32 %v1953, 1.0
        %v1989 = vadd.f32 %v1955, 1.0
        %v1990 = vadd.f32 %v1957, 1.0
        %v1991 = vadd.f32 %v1959, 1.0
        %v1992 = vrcp.pop %v1960
        %v1993 = vmul.f32 1.0, %v1992
        %v1994 = vrcp.pop %v1961
        %v1995 = vmul.f32 1.0, %v1994
        %v1996 = vrcp.pop %v1962
        %v1997 = vmul.f32 1.0, %v1996
        %v1998 = vrcp.pop %v1963
        %v1999 = vmul.f32 1.0, %v1998
        %v2000 = vrcp.pop %v1964
        %v2001 = vmul.f32 1.0, %v2000
        %v2002 = vrcp.pop %v1965
        %v2003 = vmul.f32 1.0, %v2002
        %v2004 = vrcp.pop %v1966
        %v2005 = vmul.f32 1.0, %v2004
        %v2006 = vrcp.pop %v1967
        %v2007 = vmul.f32 1.0, %v2006
        %v2008 = vrcp.pop %v1968
        %v2009 = vmul.f32 1.0, %v2008
        %v2010 = vrcp.pop %v1969
        %v2011 = vmul.f32 1.0, %v2010
        %v2012 = vrcp.pop %v1970
        %v2013 = vmul.f32 1.0, %v2012
        %v2014 = vrcp.pop %v1971
        %v2015 = vmul.f32 1.0, %v2014
        %v2016 = vrcp.pop %v1972
        %v2017 = vmul.f32 1.0, %v2016
        %v2018 = vrcp.pop %v1973
        %v2019 = vmul.f32 1.0, %v2018
        %v2020 = vrcp.pop %v1974
        %v2021 = vmul.f32 1.0, %v2020
        %v2022 = vrcp.pop %v1975
        %v2023 = vmul.f32 1.0, %v2022
        %v2024 = vrcp.pop %v1976
        %v2025 = vmul.f32 1.0, %v2024
        %v2026 = vrcp.pop %v1977
        %v2027 = vmul.f32 1.0, %v2026
        %v2028 = vrcp.pop %v1978
        %v2029 = vmul.f32 1.0, %v2028
        %v2030 = vrcp.pop %v1979
        %v2031 = vmul.f32 1.0, %v2030
        %v2032 = vrcp.pop %v1980
        %v2033 = vmul.f32 1.0, %v2032
        %v2034 = vrcp.pop %v1981
        %v2035 = vmul.f32 1.0, %v2034
        %v2036 = vrcp.pop %v1982
        %v2037 = vmul.f32 1.0, %v2036
        %v2038 = vrcp.pop %v1983
        %v2039 = vmul.f32 1.0, %v2038
        %v2040 = vrcp.pop %v1984
        %v2041 = vmul.f32 1.0, %v2040
        %v2042 = vrcp.pop %v1985
        %v2043 = vmul.f32 1.0, %v2042
        %v2044 = vrcp.pop %v1986
        %v2045 = vmul.f32 1.0, %v2044
        %v2046 = vrcp.pop %v1987
        %v2047 = vmul.f32 1.0, %v2046
        %v2048 = vrcp.pop %v1988
        %v2049 = vmul.f32 1.0, %v2048
        %v2050 = vrcp.pop %v1989
        %v2051 = vmul.f32 1.0, %v2050
        %v2052 = vrcp.pop %v1990
        %v2053 = vmul.f32 1.0, %v2052
        %v2054 = vrcp.pop %v1991
        %v2055 = vmul.f32 1.0, %v2054
        %2088 = vrot.lane.b32.xlu0 %v1993, 96
        %v2089 = vpop.permute.xlu0 %2088
        %2090 = vrot.lane.b32.xlu0 %v1995, 96
        %v2091 = vpop.permute.xlu0 %2090
        %2092 = vrot.lane.b32.xlu0 %v1997, 96
        %v2093 = vpop.permute.xlu0 %2092
        %2094 = vrot.lane.b32.xlu0 %v1999, 96
        %v2095 = vpop.permute.xlu0 %2094
        %2096 = vrot.lane.b32.xlu0 %v2001, 96
        %v2097 = vpop.permute.xlu0 %2096
        %2098 = vrot.lane.b32.xlu0 %v2003, 96
        %v2099 = vpop.permute.xlu0 %2098
        %2100 = vrot.lane.b32.xlu0 %v2005, 96
        %v2101 = vpop.permute.xlu0 %2100
        %2102 = vrot.lane.b32.xlu0 %v2007, 96
        %v2103 = vpop.permute.xlu0 %2102
        %2104 = vrot.lane.b32.xlu0 %v2009, 96
        %v2105 = vpop.permute.xlu0 %2104
        %2106 = vrot.lane.b32.xlu0 %v2011, 96
        %v2107 = vpop.permute.xlu0 %2106
        %2108 = vrot.lane.b32.xlu0 %v2013, 96
        %v2109 = vpop.permute.xlu0 %2108
        %2110 = vrot.lane.b32.xlu0 %v2015, 96
        %v2111 = vpop.permute.xlu0 %2110
        %2112 = vrot.lane.b32.xlu0 %v2017, 96
        %v2113 = vpop.permute.xlu0 %2112
        %2114 = vrot.lane.b32.xlu0 %v2019, 96
        %v2115 = vpop.permute.xlu0 %2114
        %2116 = vrot.lane.b32.xlu0 %v2021, 96
        %v2117 = vpop.permute.xlu0 %2116
        %2118 = vrot.lane.b32.xlu0 %v2023, 96
        %v2119 = vpop.permute.xlu0 %2118
        %2120 = vrot.lane.b32.xlu0 %v2025, 96
        %v2121 = vpop.permute.xlu0 %2120
        %2122 = vrot.lane.b32.xlu0 %v2027, 96
        %v2123 = vpop.permute.xlu0 %2122
        %2124 = vrot.lane.b32.xlu0 %v2029, 96
        %v2125 = vpop.permute.xlu0 %2124
        %2126 = vrot.lane.b32.xlu0 %v2031, 96
        %v2127 = vpop.permute.xlu0 %2126
        %2128 = vrot.lane.b32.xlu0 %v2033, 96
        %v2129 = vpop.permute.xlu0 %2128
        %2130 = vrot.lane.b32.xlu0 %v2035, 96
        %v2131 = vpop.permute.xlu0 %2130
        %2132 = vrot.lane.b32.xlu0 %v2037, 96
        %v2133 = vpop.permute.xlu0 %2132
        %2134 = vrot.lane.b32.xlu0 %v2039, 96
        %v2135 = vpop.permute.xlu0 %2134
        %2136 = vrot.lane.b32.xlu0 %v2041, 96
        %v2137 = vpop.permute.xlu0 %2136
        %2138 = vrot.lane.b32.xlu0 %v2043, 96
        %v2139 = vpop.permute.xlu0 %2138
        %2140 = vrot.lane.b32.xlu0 %v2045, 96
        %v2141 = vpop.permute.xlu0 %2140
        %2142 = vrot.lane.b32.xlu0 %v2047, 96
        %v2143 = vpop.permute.xlu0 %2142
        %2144 = vrot.lane.b32.xlu0 %v2049, 96
        %v2145 = vpop.permute.xlu0 %2144
        %2146 = vrot.lane.b32.xlu0 %v2051, 96
        %v2147 = vpop.permute.xlu0 %2146
        %2148 = vrot.lane.b32.xlu0 %v2053, 96
        %v2149 = vpop.permute.xlu0 %2148
        %2150 = vrot.lane.b32.xlu0 %v2055, 96
        %v2151 = vpop.permute.xlu0 %2150
        %v2184 = vmul.f32 %v1832, %v2089
        %v2185 = vmul.f32 %v1833, %v2091
        %v2186 = vmul.f32 %v1834, %v2093
        %v2187 = vmul.f32 %v1835, %v2095
        %v2188 = vmul.f32 %v1836, %v2097
        %v2189 = vmul.f32 %v1837, %v2099
        %v2190 = vmul.f32 %v1838, %v2101
        %v2191 = vmul.f32 %v1839, %v2103
        %v2192 = vmul.f32 %v1840, %v2105
        %v2193 = vmul.f32 %v1841, %v2107
        %v2194 = vmul.f32 %v1842, %v2109
        %v2195 = vmul.f32 %v1843, %v2111
        %v2196 = vmul.f32 %v1844, %v2113
        %v2197 = vmul.f32 %v1845, %v2115
        %v2198 = vmul.f32 %v1846, %v2117
        %v2199 = vmul.f32 %v1847, %v2119
        %v2200 = vmul.f32 %v1848, %v2121
        %v2201 = vmul.f32 %v1849, %v2123
        %v2202 = vmul.f32 %v1850, %v2125
        %v2203 = vmul.f32 %v1851, %v2127
        %v2204 = vmul.f32 %v1852, %v2129
        %v2205 = vmul.f32 %v1853, %v2131
        %v2206 = vmul.f32 %v1854, %v2133
        %v2207 = vmul.f32 %v1855, %v2135
        %v2208 = vmul.f32 %v1856, %v2137
        %v2209 = vmul.f32 %v1857, %v2139
        %v2210 = vmul.f32 %v1858, %v2141
        %v2211 = vmul.f32 %v1859, %v2143
        %v2212 = vmul.f32 %v1860, %v2145
        %v2213 = vmul.f32 %v1861, %v2147
        %v2214 = vmul.f32 %v1862, %v2149
        %v2215 = vmul.f32 %v1863, %v2151
        %v2216 = vld [vmem:[%s1] sm:$0xff]
        %v2217 = vld [vmem:[%s1 + $0x8] sm:$0xff]
        %v2218 = vld [vmem:[%s1 + $0x10] sm:$0xff]
        %v2219 = vld [vmem:[%s1 + $0x18] sm:$0xff]
        %v2220 = vld [vmem:[%s1 + $0x20] sm:$0xff]
        %v2221 = vld [vmem:[%s1 + $0x28] sm:$0xff]
        %v2222 = vld [vmem:[%s1 + $0x30] sm:$0xff]
        %v2223 = vld [vmem:[%s1 + $0x38] sm:$0xff]
        %v2224 = vld [vmem:[%s1 + $0x40] sm:$0xff]
        %v2225 = vld [vmem:[%s1 + $0x48] sm:$0xff]
        %v2226 = vld [vmem:[%s1 + $0x50] sm:$0xff]
        %v2227 = vld [vmem:[%s1 + $0x58] sm:$0xff]
        %v2228 = vld [vmem:[%s1 + $0x60] sm:$0xff]
        %v2229 = vld [vmem:[%s1 + $0x68] sm:$0xff]
        %v2230 = vld [vmem:[%s1 + $0x70] sm:$0xff]
        %v2231 = vld [vmem:[%s1 + $0x78] sm:$0xff]
        %v2232 = vld [vmem:[%s1 + $0x80] sm:$0xff]
        %v2233 = vld [vmem:[%s1 + $0x88] sm:$0xff]
        %v2234 = vld [vmem:[%s1 + $0x90] sm:$0xff]
        %v2235 = vld [vmem:[%s1 + $0x98] sm:$0xff]
        %v2236 = vld [vmem:[%s1 + $0xa0] sm:$0xff]
        %v2237 = vld [vmem:[%s1 + $0xa8] sm:$0xff]
        %v2238 = vld [vmem:[%s1 + $0xb0] sm:$0xff]
        %v2239 = vld [vmem:[%s1 + $0xb8] sm:$0xff]
        %v2240 = vld [vmem:[%s1 + $0xc0] sm:$0xff]
        %v2241 = vld [vmem:[%s1 + $0xc8] sm:$0xff]
        %v2242 = vld [vmem:[%s1 + $0xd0] sm:$0xff]
        %v2243 = vld [vmem:[%s1 + $0xd8] sm:$0xff]
        %v2244 = vld [vmem:[%s1 + $0xe0] sm:$0xff]
        %v2245 = vld [vmem:[%s1 + $0xe8] sm:$0xff]
        %v2246 = vld [vmem:[%s1 + $0xf0] sm:$0xff]
        %v2247 = vld [vmem:[%s1 + $0xf8] sm:$0xff]
        %v2248 = vpack.c.bf16 %v2185, %v2184
        %v2249 = vpack.c.bf16 %v2187, %v2186
        %v2250 = vpack.c.bf16 %v2189, %v2188
        %v2251 = vpack.c.bf16 %v2191, %v2190
        %v2252 = vpack.c.bf16 %v2193, %v2192
        %v2253 = vpack.c.bf16 %v2195, %v2194
        %v2254 = vpack.c.bf16 %v2197, %v2196
        %v2255 = vpack.c.bf16 %v2199, %v2198
        %v2256 = vpack.c.bf16 %v2201, %v2200
        %v2257 = vpack.c.bf16 %v2203, %v2202
        %v2258 = vpack.c.bf16 %v2205, %v2204
        %v2259 = vpack.c.bf16 %v2207, %v2206
        %v2260 = vpack.c.bf16 %v2209, %v2208
        %v2261 = vpack.c.bf16 %v2211, %v2210
        %v2262 = vpack.c.bf16 %v2213, %v2212
        %v2263 = vpack.c.bf16 %v2215, %v2214
        %v2296 = vunpack.c.l.b16 %v2216
        %v2297 = vunpack.c.h.b16 %v2216
        %v2298 = vunpack.c.l.b16 %v2217
        %v2299 = vunpack.c.h.b16 %v2217
        %v2300 = vunpack.c.l.b16 %v2218
        %v2301 = vunpack.c.h.b16 %v2218
        %v2302 = vunpack.c.l.b16 %v2219
        %v2303 = vunpack.c.h.b16 %v2219
        %v2304 = vunpack.c.l.b16 %v2220
        %v2305 = vunpack.c.h.b16 %v2220
        %v2306 = vunpack.c.l.b16 %v2221
        %v2307 = vunpack.c.h.b16 %v2221
        %v2308 = vunpack.c.l.b16 %v2222
        %v2309 = vunpack.c.h.b16 %v2222
        %v2310 = vunpack.c.l.b16 %v2223
        %v2311 = vunpack.c.h.b16 %v2223
        %v2312 = vunpack.c.l.b16 %v2224
        %v2313 = vunpack.c.h.b16 %v2224
        %v2314 = vunpack.c.l.b16 %v2225
        %v2315 = vunpack.c.h.b16 %v2225
        %v2316 = vunpack.c.l.b16 %v2226
        %v2317 = vunpack.c.h.b16 %v2226
        %v2318 = vunpack.c.l.b16 %v2227
        %v2319 = vunpack.c.h.b16 %v2227
        %v2320 = vunpack.c.l.b16 %v2228
        %v2321 = vunpack.c.h.b16 %v2228
        %v2322 = vunpack.c.l.b16 %v2229
        %v2323 = vunpack.c.h.b16 %v2229
        %v2324 = vunpack.c.l.b16 %v2230
        %v2325 = vunpack.c.h.b16 %v2230
        %v2326 = vunpack.c.l.b16 %v2231
        %v2327 = vunpack.c.h.b16 %v2231
        %v2328 = vunpack.c.l.b16 %v2232
        %v2329 = vunpack.c.h.b16 %v2232
        %v2330 = vunpack.c.l.b16 %v2233
        %v2331 = vunpack.c.h.b16 %v2233
        %v2332 = vunpack.c.l.b16 %v2234
        %v2333 = vunpack.c.h.b16 %v2234
        %v2334 = vunpack.c.l.b16 %v2235
        %v2335 = vunpack.c.h.b16 %v2235
        %v2336 = vunpack.c.l.b16 %v2236
        %v2337 = vunpack.c.h.b16 %v2236
        %v2338 = vunpack.c.l.b16 %v2237
        %v2339 = vunpack.c.h.b16 %v2237
        %v2340 = vunpack.c.l.b16 %v2238
        %v2341 = vunpack.c.h.b16 %v2238
        %v2342 = vunpack.c.l.b16 %v2239
        %v2343 = vunpack.c.h.b16 %v2239
        %v2344 = vunpack.c.l.b16 %v2240
        %v2345 = vunpack.c.h.b16 %v2240
        %v2346 = vunpack.c.l.b16 %v2241
        %v2347 = vunpack.c.h.b16 %v2241
        %v2348 = vunpack.c.l.b16 %v2242
        %v2349 = vunpack.c.h.b16 %v2242
        %v2350 = vunpack.c.l.b16 %v2243
        %v2351 = vunpack.c.h.b16 %v2243
        %v2352 = vunpack.c.l.b16 %v2244
        %v2353 = vunpack.c.h.b16 %v2244
        %v2354 = vunpack.c.l.b16 %v2245
        %v2355 = vunpack.c.h.b16 %v2245
        %v2356 = vunpack.c.l.b16 %v2246
        %v2357 = vunpack.c.h.b16 %v2246
        %v2358 = vunpack.c.l.b16 %v2247
        %v2359 = vunpack.c.h.b16 %v2247
        %v2360 = vpack.c.b16 %v2298, %v2296
        %v2361 = vpack.c.b16 %v2299, %v2297
        %v2362 = vpack.c.b16 %v2302, %v2300
        %v2363 = vpack.c.b16 %v2303, %v2301
        %v2364 = vpack.c.b16 %v2306, %v2304
        %v2365 = vpack.c.b16 %v2307, %v2305
        %v2366 = vpack.c.b16 %v2310, %v2308
        %v2367 = vpack.c.b16 %v2311, %v2309
        %v2368 = vpack.c.b16 %v2314, %v2312
        %v2369 = vpack.c.b16 %v2315, %v2313
        %v2370 = vpack.c.b16 %v2318, %v2316
        %v2371 = vpack.c.b16 %v2319, %v2317
        %v2372 = vpack.c.b16 %v2322, %v2320
        %v2373 = vpack.c.b16 %v2323, %v2321
        %v2374 = vpack.c.b16 %v2326, %v2324
        %v2375 = vpack.c.b16 %v2327, %v2325
        %v2376 = vpack.c.b16 %v2330, %v2328
        %v2377 = vpack.c.b16 %v2331, %v2329
        %v2378 = vpack.c.b16 %v2334, %v2332
        %v2379 = vpack.c.b16 %v2335, %v2333
        %v2380 = vpack.c.b16 %v2338, %v2336
        %v2381 = vpack.c.b16 %v2339, %v2337
        %v2382 = vpack.c.b16 %v2342, %v2340
        %v2383 = vpack.c.b16 %v2343, %v2341
        %v2384 = vpack.c.b16 %v2346, %v2344
        %v2385 = vpack.c.b16 %v2347, %v2345
        %v2386 = vpack.c.b16 %v2350, %v2348
        %v2387 = vpack.c.b16 %v2351, %v2349
        %v2388 = vpack.c.b16 %v2354, %v2352
        %v2389 = vpack.c.b16 %v2355, %v2353
        %v2390 = vpack.c.b16 %v2358, %v2356
        %v2391 = vpack.c.b16 %v2359, %v2357
        %2424 = vmatprep.subr.bf16.mxu0 0
        %2425 = vmatpush1.bf16.msra.mxu0 %v2248
        %2426 = vmatprep.subr.bf16.mxu0 0
        %2427 = vmatpush1.bf16.msra.mxu0 %v2249
        %2428 = vmatprep.subr.bf16.mxu0 0
        %2429 = vmatpush1.bf16.msra.mxu0 %v2250
        %2430 = vmatprep.subr.bf16.mxu0 0
        %2431 = vmatpush1.bf16.msra.mxu0 %v2251
        %2432 = vmatprep.subr.bf16.mxu0 0
        %2433 = vmatpush1.bf16.msra.mxu0 %v2252
        %2434 = vmatprep.subr.bf16.mxu0 0
        %2435 = vmatpush1.bf16.msra.mxu0 %v2253
        %2436 = vmatprep.subr.bf16.mxu0 0
        %2437 = vmatpush1.bf16.msra.mxu0 %v2254
        %2438 = vmatprep.subr.bf16.mxu0 0
        %2439 = vmatpush1.bf16.msra.mxu0 %v2255
        %2440 = vmatprep.subr.bf16.mxu0 0
        %2441 = vmatpush1.bf16.msra.mxu0 %v2256
        %2442 = vmatprep.subr.bf16.mxu0 0
        %2443 = vmatpush1.bf16.msra.mxu0 %v2257
        %2444 = vmatprep.subr.bf16.mxu0 0
        %2445 = vmatpush1.bf16.msra.mxu0 %v2258
        %2446 = vmatprep.subr.bf16.mxu0 0
        %2447 = vmatpush1.bf16.msra.mxu0 %v2259
        %2448 = vmatprep.subr.bf16.mxu0 0
        %2449 = vmatpush1.bf16.msra.mxu0 %v2260
        %2450 = vmatprep.subr.bf16.mxu0 0
        %2451 = vmatpush1.bf16.msra.mxu0 %v2261
        %2452 = vmatprep.subr.bf16.mxu0 0
        %2453 = vmatpush1.bf16.msra.mxu0 %v2262
        %2454 = vmatprep.subr.bf16.mxu0 0
        %2455 = vmatpush1.bf16.msra.mxu0 %v2263
        %2456 = vmatprep.mubr.bf16.mxu0 %v2361
        %2457 = vmatmul.mubr.bf16.gmra.mrb[0].mxu0 %v2360
        %v2458 = vpop.f32.mrb[0].mxu0
        %v2459 = vadd.f32 0.0, %v2458
        %v2460 = vpop.f32.mrb[0].mxu0
        %v2461 = vpop.f32.mrb[0].mxu0
        %v2462 = vadd.f32 0.0, %v2461
        %v2463 = vpop.f32.mrb[0].mxu0
        %2464 = vmatprep.mubr.bf16.mxu0 %v2363
        %2465 = vmatmul.mubr.bf16.gmra.mrb[0].mxu0 %v2362
        %v2466 = vpop.f32.mrb[0].mxu0
        %v2467 = vadd.f32 0.0, %v2466
        %v2468 = vpop.f32.mrb[0].mxu0
        %v2469 = vpop.f32.mrb[0].mxu0
        %v2470 = vadd.f32 0.0, %v2469
        %v2471 = vpop.f32.mrb[0].mxu0
        %2472 = vmatprep.mubr.bf16.mxu0 %v2365
        %2473 = vmatmul.mubr.bf16.gmra.mrb[0].mxu0 %v2364
        %v2474 = vpop.f32.mrb[0].mxu0
        %v2475 = vadd.f32 0.0, %v2474
        %v2476 = vpop.f32.mrb[0].mxu0
        %v2477 = vpop.f32.mrb[0].mxu0
        %v2478 = vadd.f32 0.0, %v2477
        %v2479 = vpop.f32.mrb[0].mxu0
        %2480 = vmatprep.mubr.bf16.mxu0 %v2367
        %2481 = vmatmul.mubr.bf16.gmra.mrb[0].mxu0 %v2366
        %v2482 = vpop.f32.mrb[0].mxu0
        %v2483 = vadd.f32 0.0, %v2482
        %v2484 = vpop.f32.mrb[0].mxu0
        %v2485 = vpop.f32.mrb[0].mxu0
        %v2486 = vadd.f32 0.0, %v2485
        %v2487 = vpop.f32.mrb[0].mxu0
        %2488 = vmatprep.mubr.bf16.mxu0 %v2369
        %2489 = vmatmul.mubr.bf16.gmra.mrb[0].mxu0 %v2368
        %v2490 = vpop.f32.mrb[0].mxu0
        %v2491 = vadd.f32 0.0, %v2490
        %v2492 = vpop.f32.mrb[0].mxu0
        %v2493 = vpop.f32.mrb[0].mxu0
        %v2494 = vadd.f32 0.0, %v2493
        %v2495 = vpop.f32.mrb[0].mxu0
        %2496 = vmatprep.mubr.bf16.mxu0 %v2371
        %2497 = vmatmul.mubr.bf16.gmra.mrb[0].mxu0 %v2370
        %v2498 = vpop.f32.mrb[0].mxu0
        %v2499 = vadd.f32 0.0, %v2498
        %v2500 = vpop.f32.mrb[0].mxu0
        %v2501 = vpop.f32.mrb[0].mxu0
        %v2502 = vadd.f32 0.0, %v2501
        %v2503 = vpop.f32.mrb[0].mxu0
        %2504 = vmatprep.mubr.bf16.mxu0 %v2373
        %2505 = vmatmul.mubr.bf16.gmra.mrb[0].mxu0 %v2372
        %v2506 = vpop.f32.mrb[0].mxu0
        %v2507 = vadd.f32 0.0, %v2506
        %v2508 = vpop.f32.mrb[0].mxu0
        %v2509 = vpop.f32.mrb[0].mxu0
        %v2510 = vadd.f32 0.0, %v2509
        %v2511 = vpop.f32.mrb[0].mxu0
        %2512 = vmatprep.mubr.bf16.mxu0 %v2375
        %2513 = vmatmul.mubr.bf16.gmra.mrb[0].mxu0 %v2374
        %v2514 = vpop.f32.mrb[0].mxu0
        %v2515 = vadd.f32 0.0, %v2514
        %v2516 = vpop.f32.mrb[0].mxu0
        %v2517 = vpop.f32.mrb[0].mxu0
        %v2518 = vadd.f32 0.0, %v2517
        %v2519 = vpop.f32.mrb[0].mxu0
        %2520 = vmatprep.mubr.bf16.mxu0 %v2377
        %2521 = vmatmul.mubr.bf16.gmra.mrb[0].mxu0 %v2376
        %v2522 = vpop.f32.mrb[0].mxu0
        %v2523 = vadd.f32 0.0, %v2522
        %v2524 = vpop.f32.mrb[0].mxu0
        %v2525 = vpop.f32.mrb[0].mxu0
        %v2526 = vadd.f32 0.0, %v2525
        %v2527 = vpop.f32.mrb[0].mxu0
        %2528 = vmatprep.mubr.bf16.mxu0 %v2379
        %2529 = vmatmul.mubr.bf16.gmra.mrb[0].mxu0 %v2378
        %v2530 = vpop.f32.mrb[0].mxu0
        %v2531 = vadd.f32 0.0, %v2530
        %v2532 = vpop.f32.mrb[0].mxu0
        %v2533 = vpop.f32.mrb[0].mxu0
        %v2534 = vadd.f32 0.0, %v2533
        %v2535 = vpop.f32.mrb[0].mxu0
        %2536 = vmatprep.mubr.bf16.mxu0 %v2381
        %2537 = vmatmul.mubr.bf16.gmra.mrb[0].mxu0 %v2380
        %v2538 = vpop.f32.mrb[0].mxu0
        %v2539 = vadd.f32 0.0, %v2538
        %v2540 = vpop.f32.mrb[0].mxu0
        %v2541 = vpop.f32.mrb[0].mxu0
        %v2542 = vadd.f32 0.0, %v2541
        %v2543 = vpop.f32.mrb[0].mxu0
        %2544 = vmatprep.mubr.bf16.mxu0 %v2383
        %2545 = vmatmul.mubr.bf16.gmra.mrb[0].mxu0 %v2382
        %v2546 = vpop.f32.mrb[0].mxu0
        %v2547 = vadd.f32 0.0, %v2546
        %v2548 = vpop.f32.mrb[0].mxu0
        %v2549 = vpop.f32.mrb[0].mxu0
        %v2550 = vadd.f32 0.0, %v2549
        %v2551 = vpop.f32.mrb[0].mxu0
        %2552 = vmatprep.mubr.bf16.mxu0 %v2385
        %2553 = vmatmul.mubr.bf16.gmra.mrb[0].mxu0 %v2384
        %v2554 = vpop.f32.mrb[0].mxu0
        %v2555 = vadd.f32 0.0, %v2554
        %v2556 = vpop.f32.mrb[0].mxu0
        %v2557 = vpop.f32.mrb[0].mxu0
        %v2558 = vadd.f32 0.0, %v2557
        %v2559 = vpop.f32.mrb[0].mxu0
        %2560 = vmatprep.mubr.bf16.mxu0 %v2387
        %2561 = vmatmul.mubr.bf16.gmra.mrb[0].mxu0 %v2386
        %v2562 = vpop.f32.mrb[0].mxu0
        %v2563 = vadd.f32 0.0, %v2562
        %v2564 = vpop.f32.mrb[0].mxu0
        %v2565 = vpop.f32.mrb[0].mxu0
        %v2566 = vadd.f32 0.0, %v2565
        %v2567 = vpop.f32.mrb[0].mxu0
        %2568 = vmatprep.mubr.bf16.mxu0 %v2389
        %2569 = vmatmul.mubr.bf16.gmra.mrb[0].mxu0 %v2388
        %v2570 = vpop.f32.mrb[0].mxu0
        %v2571 = vadd.f32 0.0, %v2570
        %v2572 = vpop.f32.mrb[0].mxu0
        %v2573 = vpop.f32.mrb[0].mxu0
        %v2574 = vadd.f32 0.0, %v2573
        %v2575 = vpop.f32.mrb[0].mxu0
        %2576 = vmatprep.mubr.bf16.mxu0 %v2391
        %2577 = vmatmul.mubr.bf16.gmra.mrb[0].mxu0 %v2390
        %v2578 = vpop.f32.mrb[0].mxu0
        %v2579 = vadd.f32 0.0, %v2578
        %v2580 = vpop.f32.mrb[0].mxu0
        %v2581 = vpop.f32.mrb[0].mxu0
        %v2582 = vadd.f32 0.0, %v2581
        %v2583 = vpop.f32.mrb[0].mxu0
        %2584 = vdwg.mxu0
        %v2585 = vpack.c.bf16 %v2462, %v2459
        %v2586 = vpack.c.bf16 %v2470, %v2467
        %v2587 = vpack.c.bf16 %v2478, %v2475
        %v2588 = vpack.c.bf16 %v2486, %v2483
        %v2589 = vpack.c.bf16 %v2494, %v2491
        %v2590 = vpack.c.bf16 %v2502, %v2499
        %v2591 = vpack.c.bf16 %v2510, %v2507
        %v2592 = vpack.c.bf16 %v2518, %v2515
        %v2593 = vpack.c.bf16 %v2526, %v2523
        %v2594 = vpack.c.bf16 %v2534, %v2531
        %v2595 = vpack.c.bf16 %v2542, %v2539
        %v2596 = vpack.c.bf16 %v2550, %v2547
        %v2597 = vpack.c.bf16 %v2558, %v2555
        %v2598 = vpack.c.bf16 %v2566, %v2563
        %v2599 = vpack.c.bf16 %v2574, %v2571
        %v2600 = vpack.c.bf16 %v2582, %v2579
        %v2601 = vld [vmem:[%s6] sm:$0xf]
        %v2602 = vld [vmem:[%s6 + $0x4] sm:$0xf]
        %v2603 = vld [vmem:[%s6 + $0x8] sm:$0xf]
        %v2604 = vld [vmem:[%s6 + $0xc] sm:$0xf]
        %v2609 = vunpack.c.l.b16 %v2601
        %v2610 = vunpack.c.l.b16 %v2602
        %v2611 = vunpack.c.l.b16 %v2603
        %v2612 = vunpack.c.l.b16 %v2604
        %v2613 = vpack.c.b16 %v2610, %v2609
        %v2614 = vpack.c.b16 %v2612, %v2611
        %vm2617 = vcmask 261120
        %v2619 = vsel %vm2617, %v2585, 0
        %v2622 = vsel %vm2617, %v2586, 0
        %v2625 = vsel %vm2617, %v2587, 0
        %v2628 = vsel %vm2617, %v2588, 0
        %v2631 = vsel %vm2617, %v2589, 0
        %v2634 = vsel %vm2617, %v2590, 0
        %v2637 = vsel %vm2617, %v2591, 0
        %v2640 = vsel %vm2617, %v2592, 0
        %v2643 = vsel %vm2617, %v2593, 0
        %v2646 = vsel %vm2617, %v2594, 0
        %v2649 = vsel %vm2617, %v2595, 0
        %v2652 = vsel %vm2617, %v2596, 0
        %v2655 = vsel %vm2617, %v2597, 0
        %v2658 = vsel %vm2617, %v2598, 0
        %v2661 = vsel %vm2617, %v2599, 0
        %v2664 = vsel %vm2617, %v2600, 0
        %2666 = vmatprep.subr.bf16.mxu0 0
        %2667 = vmatpush1.bf16.msra.mxu0 %v2613
        %2668 = vmatprep.subr.bf16.mxu0 0
        %2669 = vmatpush1.bf16.msra.mxu0 %v2614
        %2670 = vmatprep.subr.bf16.mxu0 0
        %2671 = vmatpush1.bf16.msra.mxu0 0
        %2672 = vmatprep.subr.bf16.mxu0 0
        %2673 = vmatpush1.bf16.msra.mxu0 0
        %2674 = vmatprep.subr.bf16.mxu0 0
        %2675 = vmatpush1.bf16.msra.mxu0 0
        %2676 = vmatprep.subr.bf16.mxu0 0
        %2677 = vmatpush1.bf16.msra.mxu0 0
        %2678 = vmatprep.subr.bf16.mxu0 0
        %2679 = vmatpush1.bf16.msra.mxu0 0
        %2680 = vmatprep.subr.bf16.mxu0 0
        %2681 = vmatpush1.bf16.msra.mxu0 0
        %2682 = vmatprep.subr.bf16.mxu0 0
        %2683 = vmatpush1.bf16.msra.mxu0 0
        %2684 = vmatprep.subr.bf16.mxu0 0
        %2685 = vmatpush1.bf16.msra.mxu0 0
        %2686 = vmatprep.subr.bf16.mxu0 0
        %2687 = vmatpush1.bf16.msra.mxu0 0
        %2688 = vmatprep.subr.bf16.mxu0 0
        %2689 = vmatpush1.bf16.msra.mxu0 0
        %2690 = vmatprep.subr.bf16.mxu0 0
        %2691 = vmatpush1.bf16.msra.mxu0 0
        %2692 = vmatprep.subr.bf16.mxu0 0
        %2693 = vmatpush1.bf16.msra.mxu0 0
        %2694 = vmatprep.subr.bf16.mxu0 0
        %2695 = vmatpush1.bf16.msra.mxu0 0
        %2696 = vmatprep.subr.bf16.mxu0 0
        %2697 = vmatpush1.bf16.msra.mxu0 0
        %2698 = vmatprep.mubr.bf16.mxu0 0
        %2699 = vmatmul.mubr.bf16.gmra.mrb[0].mxu0 %v2619
        %v2700 = vpop.f32.mrb[0].mxu0
        %v2701 = vadd.f32 %v2184, %v2700
        %v2702 = vpop.f32.mrb[0].mxu0
        %v2703 = vpop.f32.mrb[0].mxu0
        %v2704 = vadd.f32 %v2185, %v2703
        %v2705 = vpop.f32.mrb[0].mxu0
        %2706 = vmatprep.mubr.bf16.mxu0 0
        %2707 = vmatmul.mubr.bf16.gmra.mrb[0].mxu0 %v2622
        %v2708 = vpop.f32.mrb[0].mxu0
        %v2709 = vadd.f32 %v2186, %v2708
        %v2710 = vpop.f32.mrb[0].mxu0
        %v2711 = vpop.f32.mrb[0].mxu0
        %v2712 = vadd.f32 %v2187, %v2711
        %v2713 = vpop.f32.mrb[0].mxu0
        %2714 = vmatprep.mubr.bf16.mxu0 0
        %2715 = vmatmul.mubr.bf16.gmra.mrb[0].mxu0 %v2625
        %v2716 = vpop.f32.mrb[0].mxu0
        %v2717 = vadd.f32 %v2188, %v2716
        %v2718 = vpop.f32.mrb[0].mxu0
        %v2719 = vpop.f32.mrb[0].mxu0
        %v2720 = vadd.f32 %v2189, %v2719
        %v2721 = vpop.f32.mrb[0].mxu0
        %2722 = vmatprep.mubr.bf16.mxu0 0
        %2723 = vmatmul.mubr.bf16.gmra.mrb[0].mxu0 %v2628
        %v2724 = vpop.f32.mrb[0].mxu0
        %v2725 = vadd.f32 %v2190, %v2724
        %v2726 = vpop.f32.mrb[0].mxu0
        %v2727 = vpop.f32.mrb[0].mxu0
        %v2728 = vadd.f32 %v2191, %v2727
        %v2729 = vpop.f32.mrb[0].mxu0
        %2730 = vmatprep.mubr.bf16.mxu0 0
        %2731 = vmatmul.mubr.bf16.gmra.mrb[0].mxu0 %v2631
        %v2732 = vpop.f32.mrb[0].mxu0
        %v2733 = vadd.f32 %v2192, %v2732
        %v2734 = vpop.f32.mrb[0].mxu0
        %v2735 = vpop.f32.mrb[0].mxu0
        %v2736 = vadd.f32 %v2193, %v2735
        %v2737 = vpop.f32.mrb[0].mxu0
        %2738 = vmatprep.mubr.bf16.mxu0 0
        %2739 = vmatmul.mubr.bf16.gmra.mrb[0].mxu0 %v2634
        %v2740 = vpop.f32.mrb[0].mxu0
        %v2741 = vadd.f32 %v2194, %v2740
        %v2742 = vpop.f32.mrb[0].mxu0
        %v2743 = vpop.f32.mrb[0].mxu0
        %v2744 = vadd.f32 %v2195, %v2743
        %v2745 = vpop.f32.mrb[0].mxu0
        %2746 = vmatprep.mubr.bf16.mxu0 0
        %2747 = vmatmul.mubr.bf16.gmra.mrb[0].mxu0 %v2637
        %v2748 = vpop.f32.mrb[0].mxu0
        %v2749 = vadd.f32 %v2196, %v2748
        %v2750 = vpop.f32.mrb[0].mxu0
        %v2751 = vpop.f32.mrb[0].mxu0
        %v2752 = vadd.f32 %v2197, %v2751
        %v2753 = vpop.f32.mrb[0].mxu0
        %2754 = vmatprep.mubr.bf16.mxu0 0
        %2755 = vmatmul.mubr.bf16.gmra.mrb[0].mxu0 %v2640
        %v2756 = vpop.f32.mrb[0].mxu0
        %v2757 = vadd.f32 %v2198, %v2756
        %v2758 = vpop.f32.mrb[0].mxu0
        %v2759 = vpop.f32.mrb[0].mxu0
        %v2760 = vadd.f32 %v2199, %v2759
        %v2761 = vpop.f32.mrb[0].mxu0
        %2762 = vmatprep.mubr.bf16.mxu0 0
        %2763 = vmatmul.mubr.bf16.gmra.mrb[0].mxu0 %v2643
        %v2764 = vpop.f32.mrb[0].mxu0
        %v2765 = vadd.f32 %v2200, %v2764
        %v2766 = vpop.f32.mrb[0].mxu0
        %v2767 = vpop.f32.mrb[0].mxu0
        %v2768 = vadd.f32 %v2201, %v2767
        %v2769 = vpop.f32.mrb[0].mxu0
        %2770 = vmatprep.mubr.bf16.mxu0 0
        %2771 = vmatmul.mubr.bf16.gmra.mrb[0].mxu0 %v2646
        %v2772 = vpop.f32.mrb[0].mxu0
        %v2773 = vadd.f32 %v2202, %v2772
        %v2774 = vpop.f32.mrb[0].mxu0
        %v2775 = vpop.f32.mrb[0].mxu0
        %v2776 = vadd.f32 %v2203, %v2775
        %v2777 = vpop.f32.mrb[0].mxu0
        %2778 = vmatprep.mubr.bf16.mxu0 0
        %2779 = vmatmul.mubr.bf16.gmra.mrb[0].mxu0 %v2649
        %v2780 = vpop.f32.mrb[0].mxu0
        %v2781 = vadd.f32 %v2204, %v2780
        %v2782 = vpop.f32.mrb[0].mxu0
        %v2783 = vpop.f32.mrb[0].mxu0
        %v2784 = vadd.f32 %v2205, %v2783
        %v2785 = vpop.f32.mrb[0].mxu0
        %2786 = vmatprep.mubr.bf16.mxu0 0
        %2787 = vmatmul.mubr.bf16.gmra.mrb[0].mxu0 %v2652
        %v2788 = vpop.f32.mrb[0].mxu0
        %v2789 = vadd.f32 %v2206, %v2788
        %v2790 = vpop.f32.mrb[0].mxu0
        %v2791 = vpop.f32.mrb[0].mxu0
        %v2792 = vadd.f32 %v2207, %v2791
        %v2793 = vpop.f32.mrb[0].mxu0
        %2794 = vmatprep.mubr.bf16.mxu0 0
        %2795 = vmatmul.mubr.bf16.gmra.mrb[0].mxu0 %v2655
        %v2796 = vpop.f32.mrb[0].mxu0
        %v2797 = vadd.f32 %v2208, %v2796
        %v2798 = vpop.f32.mrb[0].mxu0
        %v2799 = vpop.f32.mrb[0].mxu0
        %v2800 = vadd.f32 %v2209, %v2799
        %v2801 = vpop.f32.mrb[0].mxu0
        %2802 = vmatprep.mubr.bf16.mxu0 0
        %2803 = vmatmul.mubr.bf16.gmra.mrb[0].mxu0 %v2658
        %v2804 = vpop.f32.mrb[0].mxu0
        %v2805 = vadd.f32 %v2210, %v2804
        %v2806 = vpop.f32.mrb[0].mxu0
        %v2807 = vpop.f32.mrb[0].mxu0
        %v2808 = vadd.f32 %v2211, %v2807
        %v2809 = vpop.f32.mrb[0].mxu0
        %2810 = vmatprep.mubr.bf16.mxu0 0
        %2811 = vmatmul.mubr.bf16.gmra.mrb[0].mxu0 %v2661
        %v2812 = vpop.f32.mrb[0].mxu0
        %v2813 = vadd.f32 %v2212, %v2812
        %v2814 = vpop.f32.mrb[0].mxu0
        %v2815 = vpop.f32.mrb[0].mxu0
        %v2816 = vadd.f32 %v2213, %v2815
        %v2817 = vpop.f32.mrb[0].mxu0
        %2818 = vmatprep.mubr.bf16.mxu0 0
        %2819 = vmatmul.mubr.bf16.gmra.mrb[0].mxu0 %v2664
        %v2820 = vpop.f32.mrb[0].mxu0
        %v2821 = vadd.f32 %v2214, %v2820
        %v2822 = vpop.f32.mrb[0].mxu0
        %v2823 = vpop.f32.mrb[0].mxu0
        %v2824 = vadd.f32 %v2215, %v2823
        %v2825 = vpop.f32.mrb[0].mxu0
        %2826 = vdwg.mxu0
        %v2827 = vmax.f32 %v2701, 0.0
        %v2828 = vmax.f32 %v2704, 0.0
        %v2829 = vmax.f32 %v2709, 0.0
        %v2830 = vmax.f32 %v2712, 0.0
        %v2831 = vmax.f32 %v2717, 0.0
        %v2832 = vmax.f32 %v2720, 0.0
        %v2833 = vmax.f32 %v2725, 0.0
        %v2834 = vmax.f32 %v2728, 0.0
        %v2835 = vmax.f32 %v2733, 0.0
        %v2836 = vmax.f32 %v2736, 0.0
        %v2837 = vmax.f32 %v2741, 0.0
        %v2838 = vmax.f32 %v2744, 0.0
        %v2839 = vmax.f32 %v2749, 0.0
        %v2840 = vmax.f32 %v2752, 0.0
        %v2841 = vmax.f32 %v2757, 0.0
        %v2842 = vmax.f32 %v2760, 0.0
        %v2843 = vmax.f32 %v2765, 0.0
        %v2844 = vmax.f32 %v2768, 0.0
        %v2845 = vmax.f32 %v2773, 0.0
        %v2846 = vmax.f32 %v2776, 0.0
        %v2847 = vmax.f32 %v2781, 0.0
        %v2848 = vmax.f32 %v2784, 0.0
        %v2849 = vmax.f32 %v2789, 0.0
        %v2850 = vmax.f32 %v2792, 0.0
        %v2851 = vmax.f32 %v2797, 0.0
        %v2852 = vmax.f32 %v2800, 0.0
        %v2853 = vmax.f32 %v2805, 0.0
        %v2854 = vmax.f32 %v2808, 0.0
        %v2855 = vmax.f32 %v2813, 0.0
        %v2856 = vmax.f32 %v2816, 0.0
        %v2857 = vmax.f32 %v2821, 0.0
        %v2858 = vmax.f32 %v2824, 0.0
        %v2859 = vrot.slane %v2827, 7
        %v2860 = vrot.slane %v2828, 7
        %v2861 = vrot.slane %v2829, 7
        %v2862 = vrot.slane %v2830, 7
        %v2863 = vrot.slane %v2831, 7
        %v2864 = vrot.slane %v2832, 7
        %v2865 = vrot.slane %v2833, 7
        %v2866 = vrot.slane %v2834, 7
        %v2867 = vrot.slane %v2835, 7
        %v2868 = vrot.slane %v2836, 7
        %v2869 = vrot.slane %v2837, 7
        %v2870 = vrot.slane %v2838, 7
        %v2871 = vrot.slane %v2839, 7
        %v2872 = vrot.slane %v2840, 7
        %v2873 = vrot.slane %v2841, 7
        %v2874 = vrot.slane %v2842, 7
        %v2875 = vrot.slane %v2843, 7
        %v2876 = vrot.slane %v2844, 7
        %v2877 = vrot.slane %v2845, 7
        %v2878 = vrot.slane %v2846, 7
        %v2879 = vrot.slane %v2847, 7
        %v2880 = vrot.slane %v2848, 7
        %v2881 = vrot.slane %v2849, 7
        %v2882 = vrot.slane %v2850, 7
        %v2883 = vrot.slane %v2851, 7
        %v2884 = vrot.slane %v2852, 7
        %v2885 = vrot.slane %v2853, 7
        %v2886 = vrot.slane %v2854, 7
        %v2887 = vrot.slane %v2855, 7
        %v2888 = vrot.slane %v2856, 7
        %v2889 = vrot.slane %v2857, 7
        %v2890 = vrot.slane %v2858, 7
        %v2891 = vsel %vm624, %v2889, %v2890
        %v2892 = vsel %vm624, %v2888, %v2889
        %v2893 = vsel %vm624, %v2887, %v2888
        %v2894 = vsel %vm624, %v2886, %v2887
        %v2895 = vsel %vm624, %v2885, %v2886
        %v2896 = vsel %vm624, %v2884, %v2885
        %v2897 = vsel %vm624, %v2883, %v2884
        %v2898 = vsel %vm624, %v2882, %v2883
        %v2899 = vsel %vm624, %v2881, %v2882
        %v2900 = vsel %vm624, %v2880, %v2881
        %v2901 = vsel %vm624, %v2879, %v2880
        %v2902 = vsel %vm624, %v2878, %v2879
        %v2903 = vsel %vm624, %v2877, %v2878
        %v2904 = vsel %vm624, %v2876, %v2877
        %v2905 = vsel %vm624, %v2875, %v2876
        %v2906 = vsel %vm624, %v2874, %v2875
        %v2907 = vsel %vm624, %v2873, %v2874
        %v2908 = vsel %vm624, %v2872, %v2873
        %v2909 = vsel %vm624, %v2871, %v2872
        %v2910 = vsel %vm624, %v2870, %v2871
        %v2911 = vsel %vm624, %v2869, %v2870
        %v2912 = vsel %vm624, %v2868, %v2869
        %v2913 = vsel %vm624, %v2867, %v2868
        %v2914 = vsel %vm624, %v2866, %v2867
        %v2915 = vsel %vm624, %v2865, %v2866
        %v2916 = vsel %vm624, %v2864, %v2865
        %v2917 = vsel %vm624, %v2863, %v2864
        %v2918 = vsel %vm624, %v2862, %v2863
        %v2919 = vsel %vm624, %v2861, %v2862
        %v2920 = vsel %vm624, %v2860, %v2861
        %v2921 = vsel %vm624, %v2859, %v2860
        %v2922 = vsel %vm624, %v2890, %v2859
        %v2923 = vmul.f32 %v2922, %v660
        %v2924 = vmul.f32 %v2921, %v665
        %v2925 = vmul.f32 %v2920, %v670
        %v2926 = vmul.f32 %v2919, %v675
        %v2927 = vmul.f32 %v2918, %v680
        %v2928 = vmul.f32 %v2917, %v685
        %v2929 = vmul.f32 %v2916, %v690
        %v2930 = vmul.f32 %v2915, %v695
        %v2931 = vmul.f32 %v2914, %v700
        %v2932 = vmul.f32 %v2913, %v705
        %v2933 = vmul.f32 %v2912, %v710
        %v2934 = vmul.f32 %v2911, %v715
        %v2935 = vmul.f32 %v2910, %v720
        %v2936 = vmul.f32 %v2909, %v725
        %v2937 = vmul.f32 %v2908, %v730
        %v2938 = vmul.f32 %v2907, %v735
        %v2939 = vmul.f32 %v2906, %v740
        %v2940 = vmul.f32 %v2905, %v745
        %v2941 = vmul.f32 %v2904, %v750
        %v2942 = vmul.f32 %v2903, %v755
        %v2943 = vmul.f32 %v2902, %v760
        %v2944 = vmul.f32 %v2901, %v765
        %v2945 = vmul.f32 %v2900, %v770
        %v2946 = vmul.f32 %v2899, %v775
        %v2947 = vmul.f32 %v2898, %v780
        %v2948 = vmul.f32 %v2897, %v785
        %v2949 = vmul.f32 %v2896, %v790
        %v2950 = vmul.f32 %v2895, %v795
        %v2951 = vmul.f32 %v2894, %v800
        %v2952 = vmul.f32 %v2893, %v805
        %v2953 = vmul.f32 %v2892, %v810
        %v2954 = vmul.f32 %v2891, %v815
        %v2955 = vrot.slane %v2827, 1
        %v2956 = vrot.slane %v2828, 1
        %v2957 = vrot.slane %v2829, 1
        %v2958 = vrot.slane %v2830, 1
        %v2959 = vrot.slane %v2831, 1
        %v2960 = vrot.slane %v2832, 1
        %v2961 = vrot.slane %v2833, 1
        %v2962 = vrot.slane %v2834, 1
        %v2963 = vrot.slane %v2835, 1
        %v2964 = vrot.slane %v2836, 1
        %v2965 = vrot.slane %v2837, 1
        %v2966 = vrot.slane %v2838, 1
        %v2967 = vrot.slane %v2839, 1
        %v2968 = vrot.slane %v2840, 1
        %v2969 = vrot.slane %v2841, 1
        %v2970 = vrot.slane %v2842, 1
        %v2971 = vrot.slane %v2843, 1
        %v2972 = vrot.slane %v2844, 1
        %v2973 = vrot.slane %v2845, 1
        %v2974 = vrot.slane %v2846, 1
        %v2975 = vrot.slane %v2847, 1
        %v2976 = vrot.slane %v2848, 1
        %v2977 = vrot.slane %v2849, 1
        %v2978 = vrot.slane %v2850, 1
        %v2979 = vrot.slane %v2851, 1
        %v2980 = vrot.slane %v2852, 1
        %v2981 = vrot.slane %v2853, 1
        %v2982 = vrot.slane %v2854, 1
        %v2983 = vrot.slane %v2855, 1
        %v2984 = vrot.slane %v2856, 1
        %v2985 = vrot.slane %v2857, 1
        %v2986 = vrot.slane %v2858, 1
        %v2987 = vsel %vm881, %v2985, %v2986
        %v2988 = vsel %vm881, %v2984, %v2985
        %v2989 = vsel %vm881, %v2983, %v2984
        %v2990 = vsel %vm881, %v2982, %v2983
        %v2991 = vsel %vm881, %v2981, %v2982
        %v2992 = vsel %vm881, %v2980, %v2981
        %v2993 = vsel %vm881, %v2979, %v2980
        %v2994 = vsel %vm881, %v2978, %v2979
        %v2995 = vsel %vm881, %v2977, %v2978
        %v2996 = vsel %vm881, %v2976, %v2977
        %v2997 = vsel %vm881, %v2975, %v2976
        %v2998 = vsel %vm881, %v2974, %v2975
        %v2999 = vsel %vm881, %v2973, %v2974
        %v3000 = vsel %vm881, %v2972, %v2973
        %v3001 = vsel %vm881, %v2971, %v2972
        %v3002 = vsel %vm881, %v2970, %v2971
        %v3003 = vsel %vm881, %v2969, %v2970
        %v3004 = vsel %vm881, %v2968, %v2969
        %v3005 = vsel %vm881, %v2967, %v2968
        %v3006 = vsel %vm881, %v2966, %v2967
        %v3007 = vsel %vm881, %v2965, %v2966
        %v3008 = vsel %vm881, %v2964, %v2965
        %v3009 = vsel %vm881, %v2963, %v2964
        %v3010 = vsel %vm881, %v2962, %v2963
        %v3011 = vsel %vm881, %v2961, %v2962
        %v3012 = vsel %vm881, %v2960, %v2961
        %v3013 = vsel %vm881, %v2959, %v2960
        %v3014 = vsel %vm881, %v2958, %v2959
        %v3015 = vsel %vm881, %v2957, %v2958
        %v3016 = vsel %vm881, %v2956, %v2957
        %v3017 = vsel %vm881, %v2955, %v2956
        %v3018 = vsel %vm881, %v2986, %v2955
        %v3019 = vmul.f32 %v3017, %v917
        %v3020 = vmul.f32 %v3016, %v922
        %v3021 = vmul.f32 %v3015, %v927
        %v3022 = vmul.f32 %v3014, %v932
        %v3023 = vmul.f32 %v3013, %v937
        %v3024 = vmul.f32 %v3012, %v942
        %v3025 = vmul.f32 %v3011, %v947
        %v3026 = vmul.f32 %v3010, %v952
        %v3027 = vmul.f32 %v3009, %v957
        %v3028 = vmul.f32 %v3008, %v962
        %v3029 = vmul.f32 %v3007, %v967
        %v3030 = vmul.f32 %v3006, %v972
        %v3031 = vmul.f32 %v3005, %v977
        %v3032 = vmul.f32 %v3004, %v982
        %v3033 = vmul.f32 %v3003, %v987
        %v3034 = vmul.f32 %v3002, %v992
        %v3035 = vmul.f32 %v3001, %v997
        %v3036 = vmul.f32 %v3000, %v1002
        %v3037 = vmul.f32 %v2999, %v1007
        %v3038 = vmul.f32 %v2998, %v1012
        %v3039 = vmul.f32 %v2997, %v1017
        %v3040 = vmul.f32 %v2996, %v1022
        %v3041 = vmul.f32 %v2995, %v1027
        %v3042 = vmul.f32 %v2994, %v1032
        %v3043 = vmul.f32 %v2993, %v1037
        %v3044 = vmul.f32 %v2992, %v1042
        %v3045 = vmul.f32 %v2991, %v1047
        %v3046 = vmul.f32 %v2990, %v1052
        %v3047 = vmul.f32 %v2989, %v1057
        %v3048 = vmul.f32 %v2988, %v1062
        %v3049 = vmul.f32 %v2987, %v1067
        %v3050 = vmul.f32 %v3018, %v1072
        %v3051 = vpack.c.bf16 %v2924, %v2923
        %v3052 = vpack.c.bf16 %v2926, %v2925
        %v3053 = vpack.c.bf16 %v2928, %v2927
        %v3054 = vpack.c.bf16 %v2930, %v2929
        %v3055 = vpack.c.bf16 %v2932, %v2931
        %v3056 = vpack.c.bf16 %v2934, %v2933
        %v3057 = vpack.c.bf16 %v2936, %v2935
        %v3058 = vpack.c.bf16 %v2938, %v2937
        %v3059 = vpack.c.bf16 %v2940, %v2939
        %v3060 = vpack.c.bf16 %v2942, %v2941
        %v3061 = vpack.c.bf16 %v2944, %v2943
        %v3062 = vpack.c.bf16 %v2946, %v2945
        %v3063 = vpack.c.bf16 %v2948, %v2947
        %v3064 = vpack.c.bf16 %v2950, %v2949
        %v3065 = vpack.c.bf16 %v2952, %v2951
        %v3066 = vpack.c.bf16 %v2954, %v2953
        %v3067 = vld [vmem:[%s7] sm:$0xf]
        %v3068 = vld [vmem:[%s7 + $0x4] sm:$0xf]
        %v3069 = vld [vmem:[%s7 + $0x8] sm:$0xf]
        %v3070 = vld [vmem:[%s7 + $0xc] sm:$0xf]
        %v3071 = vpack.c.bf16 %v2828, %v2827
        %v3072 = vpack.c.bf16 %v2830, %v2829
        %v3073 = vpack.c.bf16 %v2832, %v2831
        %v3074 = vpack.c.bf16 %v2834, %v2833
        %v3075 = vpack.c.bf16 %v2836, %v2835
        %v3076 = vpack.c.bf16 %v2838, %v2837
        %v3077 = vpack.c.bf16 %v2840, %v2839
        %v3078 = vpack.c.bf16 %v2842, %v2841
        %v3079 = vpack.c.bf16 %v2844, %v2843
        %v3080 = vpack.c.bf16 %v2846, %v2845
        %v3081 = vpack.c.bf16 %v2848, %v2847
        %v3082 = vpack.c.bf16 %v2850, %v2849
        %v3083 = vpack.c.bf16 %v2852, %v2851
        %v3084 = vpack.c.bf16 %v2854, %v2853
        %v3085 = vpack.c.bf16 %v2856, %v2855
        %v3086 = vpack.c.bf16 %v2858, %v2857
        %v3087 = vld [vmem:[%s8] sm:$0xf]
        %v3088 = vld [vmem:[%s8 + $0x4] sm:$0xf]
        %v3089 = vld [vmem:[%s8 + $0x8] sm:$0xf]
        %v3090 = vld [vmem:[%s8 + $0xc] sm:$0xf]
        %v3095 = vunpack.c.l.b16 %v3087
        %v3096 = vunpack.c.l.b16 %v3088
        %v3097 = vunpack.c.l.b16 %v3089
        %v3098 = vunpack.c.l.b16 %v3090
        %v3099 = vpack.c.b16 %v3096, %v3095
        %v3100 = vpack.c.b16 %v3098, %v3097
        %v3104 = vsel %vm2617, %v3071, 0
        %v3107 = vsel %vm2617, %v3072, 0
        %v3110 = vsel %vm2617, %v3073, 0
        %v3113 = vsel %vm2617, %v3074, 0
        %v3116 = vsel %vm2617, %v3075, 0
        %v3119 = vsel %vm2617, %v3076, 0
        %v3122 = vsel %vm2617, %v3077, 0
        %v3125 = vsel %vm2617, %v3078, 0
        %v3128 = vsel %vm2617, %v3079, 0
        %v3131 = vsel %vm2617, %v3080, 0
        %v3134 = vsel %vm2617, %v3081, 0
        %v3137 = vsel %vm2617, %v3082, 0
        %v3140 = vsel %vm2617, %v3083, 0
        %v3143 = vsel %vm2617, %v3084, 0
        %v3146 = vsel %vm2617, %v3085, 0
        %v3149 = vsel %vm2617, %v3086, 0
        %3151 = vmatprep.subr.bf16.mxu0 0
        %3152 = vmatpush1.bf16.msra.mxu0 %v3099
        %3153 = vmatprep.subr.bf16.mxu0 0
        %3154 = vmatpush1.bf16.msra.mxu0 %v3100
        %3155 = vmatprep.subr.bf16.mxu0 0
        %3156 = vmatpush1.bf16.msra.mxu0 0
        %3157 = vmatprep.subr.bf16.mxu0 0
        %3158 = vmatpush1.bf16.msra.mxu0 0
        %3159 = vmatprep.subr.bf16.mxu0 0
        %3160 = vmatpush1.bf16.msra.mxu0 0
        %3161 = vmatprep.subr.bf16.mxu0 0
        %3162 = vmatpush1.bf16.msra.mxu0 0
        %3163 = vmatprep.subr.bf16.mxu0 0
        %3164 = vmatpush1.bf16.msra.mxu0 0
        %3165 = vmatprep.subr.bf16.mxu0 0
        %3166 = vmatpush1.bf16.msra.mxu0 0
        %3167 = vmatprep.subr.bf16.mxu0 0
        %3168 = vmatpush1.bf16.msra.mxu0 0
        %3169 = vmatprep.subr.bf16.mxu0 0
        %3170 = vmatpush1.bf16.msra.mxu0 0
        %3171 = vmatprep.subr.bf16.mxu0 0
        %3172 = vmatpush1.bf16.msra.mxu0 0
        %3173 = vmatprep.subr.bf16.mxu0 0
        %3174 = vmatpush1.bf16.msra.mxu0 0
        %3175 = vmatprep.subr.bf16.mxu0 0
        %3176 = vmatpush1.bf16.msra.mxu0 0
        %3177 = vmatprep.subr.bf16.mxu0 0
        %3178 = vmatpush1.bf16.msra.mxu0 0
        %3179 = vmatprep.subr.bf16.mxu0 0
        %3180 = vmatpush1.bf16.msra.mxu0 0
        %3181 = vmatprep.subr.bf16.mxu0 0
        %3182 = vmatpush1.bf16.msra.mxu0 0
        %3183 = vmatprep.mubr.bf16.mxu0 0
        %3184 = vmatmul.mubr.bf16.gmra.mrb[0].mxu0 %v3104
        %v3185 = vpop.f32.mrb[0].mxu0
        %v3186 = vadd.f32 0.0, %v3185
        %v3187 = vpop.f32.mrb[0].mxu0
        %v3188 = vpop.f32.mrb[0].mxu0
        %v3189 = vadd.f32 0.0, %v3188
        %v3190 = vpop.f32.mrb[0].mxu0
        %3191 = vmatprep.mubr.bf16.mxu0 0
        %3192 = vmatmul.mubr.bf16.gmra.mrb[0].mxu0 %v3107
        %v3193 = vpop.f32.mrb[0].mxu0
        %v3194 = vadd.f32 0.0, %v3193
        %v3195 = vpop.f32.mrb[0].mxu0
        %v3196 = vpop.f32.mrb[0].mxu0
        %v3197 = vadd.f32 0.0, %v3196
        %v3198 = vpop.f32.mrb[0].mxu0
        %3199 = vmatprep.mubr.bf16.mxu0 0
        %3200 = vmatmul.mubr.bf16.gmra.mrb[0].mxu0 %v3110
        %v3201 = vpop.f32.mrb[0].mxu0
        %v3202 = vadd.f32 0.0, %v3201
        %v3203 = vpop.f32.mrb[0].mxu0
        %v3204 = vpop.f32.mrb[0].mxu0
        %v3205 = vadd.f32 0.0, %v3204
        %v3206 = vpop.f32.mrb[0].mxu0
        %3207 = vmatprep.mubr.bf16.mxu0 0
        %3208 = vmatmul.mubr.bf16.gmra.mrb[0].mxu0 %v3113
        %v3209 = vpop.f32.mrb[0].mxu0
        %v3210 = vadd.f32 0.0, %v3209
        %v3211 = vpop.f32.mrb[0].mxu0
        %v3212 = vpop.f32.mrb[0].mxu0
        %v3213 = vadd.f32 0.0, %v3212
        %v3214 = vpop.f32.mrb[0].mxu0
        %3215 = vmatprep.mubr.bf16.mxu0 0
        %3216 = vmatmul.mubr.bf16.gmra.mrb[0].mxu0 %v3116
        %v3217 = vpop.f32.mrb[0].mxu0
        %v3218 = vadd.f32 0.0, %v3217
        %v3219 = vpop.f32.mrb[0].mxu0
        %v3220 = vpop.f32.mrb[0].mxu0
        %v3221 = vadd.f32 0.0, %v3220
        %v3222 = vpop.f32.mrb[0].mxu0
        %3223 = vmatprep.mubr.bf16.mxu0 0
        %3224 = vmatmul.mubr.bf16.gmra.mrb[0].mxu0 %v3119
        %v3225 = vpop.f32.mrb[0].mxu0
        %v3226 = vadd.f32 0.0, %v3225
        %v3227 = vpop.f32.mrb[0].mxu0
        %v3228 = vpop.f32.mrb[0].mxu0
        %v3229 = vadd.f32 0.0, %v3228
        %v3230 = vpop.f32.mrb[0].mxu0
        %3231 = vmatprep.mubr.bf16.mxu0 0
        %3232 = vmatmul.mubr.bf16.gmra.mrb[0].mxu0 %v3122
        %v3233 = vpop.f32.mrb[0].mxu0
        %v3234 = vadd.f32 0.0, %v3233
        %v3235 = vpop.f32.mrb[0].mxu0
        %v3236 = vpop.f32.mrb[0].mxu0
        %v3237 = vadd.f32 0.0, %v3236
        %v3238 = vpop.f32.mrb[0].mxu0
        %3239 = vmatprep.mubr.bf16.mxu0 0
        %3240 = vmatmul.mubr.bf16.gmra.mrb[0].mxu0 %v3125
        %v3241 = vpop.f32.mrb[0].mxu0
        %v3242 = vadd.f32 0.0, %v3241
        %v3243 = vpop.f32.mrb[0].mxu0
        %v3244 = vpop.f32.mrb[0].mxu0
        %v3245 = vadd.f32 0.0, %v3244
        %v3246 = vpop.f32.mrb[0].mxu0
        %3247 = vmatprep.mubr.bf16.mxu0 0
        %3248 = vmatmul.mubr.bf16.gmra.mrb[0].mxu0 %v3128
        %v3249 = vpop.f32.mrb[0].mxu0
        %v3250 = vadd.f32 0.0, %v3249
        %v3251 = vpop.f32.mrb[0].mxu0
        %v3252 = vpop.f32.mrb[0].mxu0
        %v3253 = vadd.f32 0.0, %v3252
        %v3254 = vpop.f32.mrb[0].mxu0
        %3255 = vmatprep.mubr.bf16.mxu0 0
        %3256 = vmatmul.mubr.bf16.gmra.mrb[0].mxu0 %v3131
        %v3257 = vpop.f32.mrb[0].mxu0
        %v3258 = vadd.f32 0.0, %v3257
        %v3259 = vpop.f32.mrb[0].mxu0
        %v3260 = vpop.f32.mrb[0].mxu0
        %v3261 = vadd.f32 0.0, %v3260
        %v3262 = vpop.f32.mrb[0].mxu0
        %3263 = vmatprep.mubr.bf16.mxu0 0
        %3264 = vmatmul.mubr.bf16.gmra.mrb[0].mxu0 %v3134
        %v3265 = vpop.f32.mrb[0].mxu0
        %v3266 = vadd.f32 0.0, %v3265
        %v3267 = vpop.f32.mrb[0].mxu0
        %v3268 = vpop.f32.mrb[0].mxu0
        %v3269 = vadd.f32 0.0, %v3268
        %v3270 = vpop.f32.mrb[0].mxu0
        %3271 = vmatprep.mubr.bf16.mxu0 0
        %3272 = vmatmul.mubr.bf16.gmra.mrb[0].mxu0 %v3137
        %v3273 = vpop.f32.mrb[0].mxu0
        %v3274 = vadd.f32 0.0, %v3273
        %v3275 = vpop.f32.mrb[0].mxu0
        %v3276 = vpop.f32.mrb[0].mxu0
        %v3277 = vadd.f32 0.0, %v3276
        %v3278 = vpop.f32.mrb[0].mxu0
        %3279 = vmatprep.mubr.bf16.mxu0 0
        %3280 = vmatmul.mubr.bf16.gmra.mrb[0].mxu0 %v3140
        %v3281 = vpop.f32.mrb[0].mxu0
        %v3282 = vadd.f32 0.0, %v3281
        %v3283 = vpop.f32.mrb[0].mxu0
        %v3284 = vpop.f32.mrb[0].mxu0
        %v3285 = vadd.f32 0.0, %v3284
        %v3286 = vpop.f32.mrb[0].mxu0
        %3287 = vmatprep.mubr.bf16.mxu0 0
        %3288 = vmatmul.mubr.bf16.gmra.mrb[0].mxu0 %v3143
        %v3289 = vpop.f32.mrb[0].mxu0
        %v3290 = vadd.f32 0.0, %v3289
        %v3291 = vpop.f32.mrb[0].mxu0
        %v3292 = vpop.f32.mrb[0].mxu0
        %v3293 = vadd.f32 0.0, %v3292
        %v3294 = vpop.f32.mrb[0].mxu0
        %3295 = vmatprep.mubr.bf16.mxu0 0
        %3296 = vmatmul.mubr.bf16.gmra.mrb[0].mxu0 %v3146
        %v3297 = vpop.f32.mrb[0].mxu0
        %v3298 = vadd.f32 0.0, %v3297
        %v3299 = vpop.f32.mrb[0].mxu0
        %v3300 = vpop.f32.mrb[0].mxu0
        %v3301 = vadd.f32 0.0, %v3300
        %v3302 = vpop.f32.mrb[0].mxu0
        %3303 = vmatprep.mubr.bf16.mxu0 0
        %3304 = vmatmul.mubr.bf16.gmra.mrb[0].mxu0 %v3149
        %v3305 = vpop.f32.mrb[0].mxu0
        %v3306 = vadd.f32 0.0, %v3305
        %v3307 = vpop.f32.mrb[0].mxu0
        %v3308 = vpop.f32.mrb[0].mxu0
        %v3309 = vadd.f32 0.0, %v3308
        %v3310 = vpop.f32.mrb[0].mxu0
        %3311 = vdwg.mxu0
        %v3316 = vunpack.c.l.b16 %v3067
        %v3317 = vunpack.c.l.b16 %v3068
        %v3318 = vunpack.c.l.b16 %v3069
        %v3319 = vunpack.c.l.b16 %v3070
        %v3320 = vpack.c.b16 %v3317, %v3316
        %v3321 = vpack.c.b16 %v3319, %v3318
        %v3325 = vsel %vm2617, %v3051, 0
        %v3328 = vsel %vm2617, %v3052, 0
        %v3331 = vsel %vm2617, %v3053, 0
        %v3334 = vsel %vm2617, %v3054, 0
        %v3337 = vsel %vm2617, %v3055, 0
        %v3340 = vsel %vm2617, %v3056, 0
        %v3343 = vsel %vm2617, %v3057, 0
        %v3346 = vsel %vm2617, %v3058, 0
        %v3349 = vsel %vm2617, %v3059, 0
        %v3352 = vsel %vm2617, %v3060, 0
        %v3355 = vsel %vm2617, %v3061, 0
        %v3358 = vsel %vm2617, %v3062, 0
        %v3361 = vsel %vm2617, %v3063, 0
        %v3364 = vsel %vm2617, %v3064, 0
        %v3367 = vsel %vm2617, %v3065, 0
        %v3370 = vsel %vm2617, %v3066, 0
        %3372 = vmatprep.subr.bf16.mxu0 0
        %3373 = vmatpush1.bf16.msra.mxu0 %v3320
        %3374 = vmatprep.subr.bf16.mxu0 0
        %3375 = vmatpush1.bf16.msra.mxu0 %v3321
        %3376 = vmatprep.subr.bf16.mxu0 0
        %3377 = vmatpush1.bf16.msra.mxu0 0
        %3378 = vmatprep.subr.bf16.mxu0 0
        %3379 = vmatpush1.bf16.msra.mxu0 0
        %3380 = vmatprep.subr.bf16.mxu0 0
        %3381 = vmatpush1.bf16.msra.mxu0 0
        %3382 = vmatprep.subr.bf16.mxu0 0
        %3383 = vmatpush1.bf16.msra.mxu0 0
        %3384 = vmatprep.subr.bf16.mxu0 0
        %3385 = vmatpush1.bf16.msra.mxu0 0
        %3386 = vmatprep.subr.bf16.mxu0 0
        %3387 = vmatpush1.bf16.msra.mxu0 0
        %3388 = vmatprep.subr.bf16.mxu0 0
        %3389 = vmatpush1.bf16.msra.mxu0 0
        %3390 = vmatprep.subr.bf16.mxu0 0
        %3391 = vmatpush1.bf16.msra.mxu0 0
        %3392 = vmatprep.subr.bf16.mxu0 0
        %3393 = vmatpush1.bf16.msra.mxu0 0
        %3394 = vmatprep.subr.bf16.mxu0 0
        %3395 = vmatpush1.bf16.msra.mxu0 0
        %3396 = vmatprep.subr.bf16.mxu0 0
        %3397 = vmatpush1.bf16.msra.mxu0 0
        %3398 = vmatprep.subr.bf16.mxu0 0
        %3399 = vmatpush1.bf16.msra.mxu0 0
        %3400 = vmatprep.subr.bf16.mxu0 0
        %3401 = vmatpush1.bf16.msra.mxu0 0
        %3402 = vmatprep.subr.bf16.mxu0 0
        %3403 = vmatpush1.bf16.msra.mxu0 0
        %3404 = vmatprep.mubr.bf16.mxu0 0
        %3405 = vmatmul.mubr.bf16.gmra.mrb[0].mxu0 %v3325
        %v3406 = vpop.f32.mrb[0].mxu0
        %v3407 = vadd.f32 %v3186, %v3406
        %v3408 = vpop.f32.mrb[0].mxu0
        %v3409 = vpop.f32.mrb[0].mxu0
        %v3410 = vadd.f32 %v3189, %v3409
        %v3411 = vpop.f32.mrb[0].mxu0
        %3412 = vmatprep.mubr.bf16.mxu0 0
        %3413 = vmatmul.mubr.bf16.gmra.mrb[0].mxu0 %v3328
        %v3414 = vpop.f32.mrb[0].mxu0
        %v3415 = vadd.f32 %v3194, %v3414
        %v3416 = vpop.f32.mrb[0].mxu0
        %v3417 = vpop.f32.mrb[0].mxu0
        %v3418 = vadd.f32 %v3197, %v3417
        %v3419 = vpop.f32.mrb[0].mxu0
        %3420 = vmatprep.mubr.bf16.mxu0 0
        %3421 = vmatmul.mubr.bf16.gmra.mrb[0].mxu0 %v3331
        %v3422 = vpop.f32.mrb[0].mxu0
        %v3423 = vadd.f32 %v3202, %v3422
        %v3424 = vpop.f32.mrb[0].mxu0
        %v3425 = vpop.f32.mrb[0].mxu0
        %v3426 = vadd.f32 %v3205, %v3425
        %v3427 = vpop.f32.mrb[0].mxu0
        %3428 = vmatprep.mubr.bf16.mxu0 0
        %3429 = vmatmul.mubr.bf16.gmra.mrb[0].mxu0 %v3334
        %v3430 = vpop.f32.mrb[0].mxu0
        %v3431 = vadd.f32 %v3210, %v3430
        %v3432 = vpop.f32.mrb[0].mxu0
        %v3433 = vpop.f32.mrb[0].mxu0
        %v3434 = vadd.f32 %v3213, %v3433
        %v3435 = vpop.f32.mrb[0].mxu0
        %3436 = vmatprep.mubr.bf16.mxu0 0
        %3437 = vmatmul.mubr.bf16.gmra.mrb[0].mxu0 %v3337
        %v3438 = vpop.f32.mrb[0].mxu0
        %v3439 = vadd.f32 %v3218, %v3438
        %v3440 = vpop.f32.mrb[0].mxu0
        %v3441 = vpop.f32.mrb[0].mxu0
        %v3442 = vadd.f32 %v3221, %v3441
        %v3443 = vpop.f32.mrb[0].mxu0
        %3444 = vmatprep.mubr.bf16.mxu0 0
        %3445 = vmatmul.mubr.bf16.gmra.mrb[0].mxu0 %v3340
        %v3446 = vpop.f32.mrb[0].mxu0
        %v3447 = vadd.f32 %v3226, %v3446
        %v3448 = vpop.f32.mrb[0].mxu0
        %v3449 = vpop.f32.mrb[0].mxu0
        %v3450 = vadd.f32 %v3229, %v3449
        %v3451 = vpop.f32.mrb[0].mxu0
        %3452 = vmatprep.mubr.bf16.mxu0 0
        %3453 = vmatmul.mubr.bf16.gmra.mrb[0].mxu0 %v3343
        %v3454 = vpop.f32.mrb[0].mxu0
        %v3455 = vadd.f32 %v3234, %v3454
        %v3456 = vpop.f32.mrb[0].mxu0
        %v3457 = vpop.f32.mrb[0].mxu0
        %v3458 = vadd.f32 %v3237, %v3457
        %v3459 = vpop.f32.mrb[0].mxu0
        %3460 = vmatprep.mubr.bf16.mxu0 0
        %3461 = vmatmul.mubr.bf16.gmra.mrb[0].mxu0 %v3346
        %v3462 = vpop.f32.mrb[0].mxu0
        %v3463 = vadd.f32 %v3242, %v3462
        %v3464 = vpop.f32.mrb[0].mxu0
        %v3465 = vpop.f32.mrb[0].mxu0
        %v3466 = vadd.f32 %v3245, %v3465
        %v3467 = vpop.f32.mrb[0].mxu0
        %3468 = vmatprep.mubr.bf16.mxu0 0
        %3469 = vmatmul.mubr.bf16.gmra.mrb[0].mxu0 %v3349
        %v3470 = vpop.f32.mrb[0].mxu0
        %v3471 = vadd.f32 %v3250, %v3470
        %v3472 = vpop.f32.mrb[0].mxu0
        %v3473 = vpop.f32.mrb[0].mxu0
        %v3474 = vadd.f32 %v3253, %v3473
        %v3475 = vpop.f32.mrb[0].mxu0
        %3476 = vmatprep.mubr.bf16.mxu0 0
        %3477 = vmatmul.mubr.bf16.gmra.mrb[0].mxu0 %v3352
        %v3478 = vpop.f32.mrb[0].mxu0
        %v3479 = vadd.f32 %v3258, %v3478
        %v3480 = vpop.f32.mrb[0].mxu0
        %v3481 = vpop.f32.mrb[0].mxu0
        %v3482 = vadd.f32 %v3261, %v3481
        %v3483 = vpop.f32.mrb[0].mxu0
        %3484 = vmatprep.mubr.bf16.mxu0 0
        %3485 = vmatmul.mubr.bf16.gmra.mrb[0].mxu0 %v3355
        %v3486 = vpop.f32.mrb[0].mxu0
        %v3487 = vadd.f32 %v3266, %v3486
        %v3488 = vpop.f32.mrb[0].mxu0
        %v3489 = vpop.f32.mrb[0].mxu0
        %v3490 = vadd.f32 %v3269, %v3489
        %v3491 = vpop.f32.mrb[0].mxu0
        %3492 = vmatprep.mubr.bf16.mxu0 0
        %3493 = vmatmul.mubr.bf16.gmra.mrb[0].mxu0 %v3358
        %v3494 = vpop.f32.mrb[0].mxu0
        %v3495 = vadd.f32 %v3274, %v3494
        %v3496 = vpop.f32.mrb[0].mxu0
        %v3497 = vpop.f32.mrb[0].mxu0
        %v3498 = vadd.f32 %v3277, %v3497
        %v3499 = vpop.f32.mrb[0].mxu0
        %3500 = vmatprep.mubr.bf16.mxu0 0
        %3501 = vmatmul.mubr.bf16.gmra.mrb[0].mxu0 %v3361
        %v3502 = vpop.f32.mrb[0].mxu0
        %v3503 = vadd.f32 %v3282, %v3502
        %v3504 = vpop.f32.mrb[0].mxu0
        %v3505 = vpop.f32.mrb[0].mxu0
        %v3506 = vadd.f32 %v3285, %v3505
        %v3507 = vpop.f32.mrb[0].mxu0
        %3508 = vmatprep.mubr.bf16.mxu0 0
        %3509 = vmatmul.mubr.bf16.gmra.mrb[0].mxu0 %v3364
        %v3510 = vpop.f32.mrb[0].mxu0
        %v3511 = vadd.f32 %v3290, %v3510
        %v3512 = vpop.f32.mrb[0].mxu0
        %v3513 = vpop.f32.mrb[0].mxu0
        %v3514 = vadd.f32 %v3293, %v3513
        %v3515 = vpop.f32.mrb[0].mxu0
        %3516 = vmatprep.mubr.bf16.mxu0 0
        %3517 = vmatmul.mubr.bf16.gmra.mrb[0].mxu0 %v3367
        %v3518 = vpop.f32.mrb[0].mxu0
        %v3519 = vadd.f32 %v3298, %v3518
        %v3520 = vpop.f32.mrb[0].mxu0
        %v3521 = vpop.f32.mrb[0].mxu0
        %v3522 = vadd.f32 %v3301, %v3521
        %v3523 = vpop.f32.mrb[0].mxu0
        %3524 = vmatprep.mubr.bf16.mxu0 0
        %3525 = vmatmul.mubr.bf16.gmra.mrb[0].mxu0 %v3370
        %v3526 = vpop.f32.mrb[0].mxu0
        %v3527 = vadd.f32 %v3306, %v3526
        %v3528 = vpop.f32.mrb[0].mxu0
        %v3529 = vpop.f32.mrb[0].mxu0
        %v3530 = vadd.f32 %v3309, %v3529
        %v3531 = vpop.f32.mrb[0].mxu0
        %3532 = vdwg.mxu0
        %v3533 = vpack.c.bf16 %v3020, %v3019
        %v3534 = vpack.c.bf16 %v3022, %v3021
        %v3535 = vpack.c.bf16 %v3024, %v3023
        %v3536 = vpack.c.bf16 %v3026, %v3025
        %v3537 = vpack.c.bf16 %v3028, %v3027
        %v3538 = vpack.c.bf16 %v3030, %v3029
        %v3539 = vpack.c.bf16 %v3032, %v3031
        %v3540 = vpack.c.bf16 %v3034, %v3033
        %v3541 = vpack.c.bf16 %v3036, %v3035
        %v3542 = vpack.c.bf16 %v3038, %v3037
        %v3543 = vpack.c.bf16 %v3040, %v3039
        %v3544 = vpack.c.bf16 %v3042, %v3041
        %v3545 = vpack.c.bf16 %v3044, %v3043
        %v3546 = vpack.c.bf16 %v3046, %v3045
        %v3547 = vpack.c.bf16 %v3048, %v3047
        %v3548 = vpack.c.bf16 %v3050, %v3049
        %v3549 = vld [vmem:[%s9] sm:$0xf]
        %v3550 = vld [vmem:[%s9 + $0x4] sm:$0xf]
        %v3551 = vld [vmem:[%s9 + $0x8] sm:$0xf]
        %v3552 = vld [vmem:[%s9 + $0xc] sm:$0xf]
        %v3557 = vunpack.c.l.b16 %v3549
        %v3558 = vunpack.c.l.b16 %v3550
        %v3559 = vunpack.c.l.b16 %v3551
        %v3560 = vunpack.c.l.b16 %v3552
        %v3561 = vpack.c.b16 %v3558, %v3557
        %v3562 = vpack.c.b16 %v3560, %v3559
        %v3566 = vsel %vm2617, %v3533, 0
        %v3569 = vsel %vm2617, %v3534, 0
        %v3572 = vsel %vm2617, %v3535, 0
        %v3575 = vsel %vm2617, %v3536, 0
        %v3578 = vsel %vm2617, %v3537, 0
        %v3581 = vsel %vm2617, %v3538, 0
        %v3584 = vsel %vm2617, %v3539, 0
        %v3587 = vsel %vm2617, %v3540, 0
        %v3590 = vsel %vm2617, %v3541, 0
        %v3593 = vsel %vm2617, %v3542, 0
        %v3596 = vsel %vm2617, %v3543, 0
        %v3599 = vsel %vm2617, %v3544, 0
        %v3602 = vsel %vm2617, %v3545, 0
        %v3605 = vsel %vm2617, %v3546, 0
        %v3608 = vsel %vm2617, %v3547, 0
        %v3611 = vsel %vm2617, %v3548, 0
        %3613 = vmatprep.subr.bf16.mxu0 0
        %3614 = vmatpush1.bf16.msra.mxu0 %v3561
        %3615 = vmatprep.subr.bf16.mxu0 0
        %3616 = vmatpush1.bf16.msra.mxu0 %v3562
        %3617 = vmatprep.subr.bf16.mxu0 0
        %3618 = vmatpush1.bf16.msra.mxu0 0
        %3619 = vmatprep.subr.bf16.mxu0 0
        %3620 = vmatpush1.bf16.msra.mxu0 0
        %3621 = vmatprep.subr.bf16.mxu0 0
        %3622 = vmatpush1.bf16.msra.mxu0 0
        %3623 = vmatprep.subr.bf16.mxu0 0
        %3624 = vmatpush1.bf16.msra.mxu0 0
        %3625 = vmatprep.subr.bf16.mxu0 0
        %3626 = vmatpush1.bf16.msra.mxu0 0
        %3627 = vmatprep.subr.bf16.mxu0 0
        %3628 = vmatpush1.bf16.msra.mxu0 0
        %3629 = vmatprep.subr.bf16.mxu0 0
        %3630 = vmatpush1.bf16.msra.mxu0 0
        %3631 = vmatprep.subr.bf16.mxu0 0
        %3632 = vmatpush1.bf16.msra.mxu0 0
        %3633 = vmatprep.subr.bf16.mxu0 0
        %3634 = vmatpush1.bf16.msra.mxu0 0
        %3635 = vmatprep.subr.bf16.mxu0 0
        %3636 = vmatpush1.bf16.msra.mxu0 0
        %3637 = vmatprep.subr.bf16.mxu0 0
        %3638 = vmatpush1.bf16.msra.mxu0 0
        %3639 = vmatprep.subr.bf16.mxu0 0
        %3640 = vmatpush1.bf16.msra.mxu0 0
        %3641 = vmatprep.subr.bf16.mxu0 0
        %3642 = vmatpush1.bf16.msra.mxu0 0
        %3643 = vmatprep.subr.bf16.mxu0 0
        %3644 = vmatpush1.bf16.msra.mxu0 0
        %3645 = vmatprep.mubr.bf16.mxu0 0
        %3646 = vmatmul.mubr.bf16.gmra.mrb[0].mxu0 %v3566
        %v3647 = vpop.f32.mrb[0].mxu0
        %v3648 = vadd.f32 0.0, %v3647
        %v3649 = vpop.f32.mrb[0].mxu0
        %v3650 = vpop.f32.mrb[0].mxu0
        %v3651 = vadd.f32 0.0, %v3650
        %v3652 = vpop.f32.mrb[0].mxu0
        %3653 = vmatprep.mubr.bf16.mxu0 0
        %3654 = vmatmul.mubr.bf16.gmra.mrb[0].mxu0 %v3569
        %v3655 = vpop.f32.mrb[0].mxu0
        %v3656 = vadd.f32 0.0, %v3655
        %v3657 = vpop.f32.mrb[0].mxu0
        %v3658 = vpop.f32.mrb[0].mxu0
        %v3659 = vadd.f32 0.0, %v3658
        %v3660 = vpop.f32.mrb[0].mxu0
        %3661 = vmatprep.mubr.bf16.mxu0 0
        %3662 = vmatmul.mubr.bf16.gmra.mrb[0].mxu0 %v3572
        %v3663 = vpop.f32.mrb[0].mxu0
        %v3664 = vadd.f32 0.0, %v3663
        %v3665 = vpop.f32.mrb[0].mxu0
        %v3666 = vpop.f32.mrb[0].mxu0
        %v3667 = vadd.f32 0.0, %v3666
        %v3668 = vpop.f32.mrb[0].mxu0
        %3669 = vmatprep.mubr.bf16.mxu0 0
        %3670 = vmatmul.mubr.bf16.gmra.mrb[0].mxu0 %v3575
        %v3671 = vpop.f32.mrb[0].mxu0
        %v3672 = vadd.f32 0.0, %v3671
        %v3673 = vpop.f32.mrb[0].mxu0
        %v3674 = vpop.f32.mrb[0].mxu0
        %v3675 = vadd.f32 0.0, %v3674
        %v3676 = vpop.f32.mrb[0].mxu0
        %3677 = vmatprep.mubr.bf16.mxu0 0
        %3678 = vmatmul.mubr.bf16.gmra.mrb[0].mxu0 %v3578
        %v3679 = vpop.f32.mrb[0].mxu0
        %v3680 = vadd.f32 0.0, %v3679
        %v3681 = vpop.f32.mrb[0].mxu0
        %v3682 = vpop.f32.mrb[0].mxu0
        %v3683 = vadd.f32 0.0, %v3682
        %v3684 = vpop.f32.mrb[0].mxu0
        %3685 = vmatprep.mubr.bf16.mxu0 0
        %3686 = vmatmul.mubr.bf16.gmra.mrb[0].mxu0 %v3581
        %v3687 = vpop.f32.mrb[0].mxu0
        %v3688 = vadd.f32 0.0, %v3687
        %v3689 = vpop.f32.mrb[0].mxu0
        %v3690 = vpop.f32.mrb[0].mxu0
        %v3691 = vadd.f32 0.0, %v3690
        %v3692 = vpop.f32.mrb[0].mxu0
        %3693 = vmatprep.mubr.bf16.mxu0 0
        %3694 = vmatmul.mubr.bf16.gmra.mrb[0].mxu0 %v3584
        %v3695 = vpop.f32.mrb[0].mxu0
        %v3696 = vadd.f32 0.0, %v3695
        %v3697 = vpop.f32.mrb[0].mxu0
        %v3698 = vpop.f32.mrb[0].mxu0
        %v3699 = vadd.f32 0.0, %v3698
        %v3700 = vpop.f32.mrb[0].mxu0
        %3701 = vmatprep.mubr.bf16.mxu0 0
        %3702 = vmatmul.mubr.bf16.gmra.mrb[0].mxu0 %v3587
        %v3703 = vpop.f32.mrb[0].mxu0
        %v3704 = vadd.f32 0.0, %v3703
        %v3705 = vpop.f32.mrb[0].mxu0
        %v3706 = vpop.f32.mrb[0].mxu0
        %v3707 = vadd.f32 0.0, %v3706
        %v3708 = vpop.f32.mrb[0].mxu0
        %3709 = vmatprep.mubr.bf16.mxu0 0
        %3710 = vmatmul.mubr.bf16.gmra.mrb[0].mxu0 %v3590
        %v3711 = vpop.f32.mrb[0].mxu0
        %v3712 = vadd.f32 0.0, %v3711
        %v3713 = vpop.f32.mrb[0].mxu0
        %v3714 = vpop.f32.mrb[0].mxu0
        %v3715 = vadd.f32 0.0, %v3714
        %v3716 = vpop.f32.mrb[0].mxu0
        %3717 = vmatprep.mubr.bf16.mxu0 0
        %3718 = vmatmul.mubr.bf16.gmra.mrb[0].mxu0 %v3593
        %v3719 = vpop.f32.mrb[0].mxu0
        %v3720 = vadd.f32 0.0, %v3719
        %v3721 = vpop.f32.mrb[0].mxu0
        %v3722 = vpop.f32.mrb[0].mxu0
        %v3723 = vadd.f32 0.0, %v3722
        %v3724 = vpop.f32.mrb[0].mxu0
        %3725 = vmatprep.mubr.bf16.mxu0 0
        %3726 = vmatmul.mubr.bf16.gmra.mrb[0].mxu0 %v3596
        %v3727 = vpop.f32.mrb[0].mxu0
        %v3728 = vadd.f32 0.0, %v3727
        %v3729 = vpop.f32.mrb[0].mxu0
        %v3730 = vpop.f32.mrb[0].mxu0
        %v3731 = vadd.f32 0.0, %v3730
        %v3732 = vpop.f32.mrb[0].mxu0
        %3733 = vmatprep.mubr.bf16.mxu0 0
        %3734 = vmatmul.mubr.bf16.gmra.mrb[0].mxu0 %v3599
        %v3735 = vpop.f32.mrb[0].mxu0
        %v3736 = vadd.f32 0.0, %v3735
        %v3737 = vpop.f32.mrb[0].mxu0
        %v3738 = vpop.f32.mrb[0].mxu0
        %v3739 = vadd.f32 0.0, %v3738
        %v3740 = vpop.f32.mrb[0].mxu0
        %3741 = vmatprep.mubr.bf16.mxu0 0
        %3742 = vmatmul.mubr.bf16.gmra.mrb[0].mxu0 %v3602
        %v3743 = vpop.f32.mrb[0].mxu0
        %v3744 = vadd.f32 0.0, %v3743
        %v3745 = vpop.f32.mrb[0].mxu0
        %v3746 = vpop.f32.mrb[0].mxu0
        %v3747 = vadd.f32 0.0, %v3746
        %v3748 = vpop.f32.mrb[0].mxu0
        %3749 = vmatprep.mubr.bf16.mxu0 0
        %3750 = vmatmul.mubr.bf16.gmra.mrb[0].mxu0 %v3605
        %v3751 = vpop.f32.mrb[0].mxu0
        %v3752 = vadd.f32 0.0, %v3751
        %v3753 = vpop.f32.mrb[0].mxu0
        %v3754 = vpop.f32.mrb[0].mxu0
        %v3755 = vadd.f32 0.0, %v3754
        %v3756 = vpop.f32.mrb[0].mxu0
        %3757 = vmatprep.mubr.bf16.mxu0 0
        %3758 = vmatmul.mubr.bf16.gmra.mrb[0].mxu0 %v3608
        %v3759 = vpop.f32.mrb[0].mxu0
        %v3760 = vadd.f32 0.0, %v3759
        %v3761 = vpop.f32.mrb[0].mxu0
        %v3762 = vpop.f32.mrb[0].mxu0
        %v3763 = vadd.f32 0.0, %v3762
        %v3764 = vpop.f32.mrb[0].mxu0
        %3765 = vmatprep.mubr.bf16.mxu0 0
        %3766 = vmatmul.mubr.bf16.gmra.mrb[0].mxu0 %v3611
        %v3767 = vpop.f32.mrb[0].mxu0
        %v3768 = vadd.f32 0.0, %v3767
        %v3769 = vpop.f32.mrb[0].mxu0
        %v3770 = vpop.f32.mrb[0].mxu0
        %v3771 = vadd.f32 0.0, %v3770
        %v3772 = vpop.f32.mrb[0].mxu0
        %3773 = vdwg.mxu0
        %v3774 = vadd.f32 %v3407, %v3648
        %v3775 = vadd.f32 %v3410, %v3651
        %v3776 = vadd.f32 %v3415, %v3656
        %v3777 = vadd.f32 %v3418, %v3659
        %v3778 = vadd.f32 %v3423, %v3664
        %v3779 = vadd.f32 %v3426, %v3667
        %v3780 = vadd.f32 %v3431, %v3672
        %v3781 = vadd.f32 %v3434, %v3675
        %v3782 = vadd.f32 %v3439, %v3680
        %v3783 = vadd.f32 %v3442, %v3683
        %v3784 = vadd.f32 %v3447, %v3688
        %v3785 = vadd.f32 %v3450, %v3691
        %v3786 = vadd.f32 %v3455, %v3696
        %v3787 = vadd.f32 %v3458, %v3699
        %v3788 = vadd.f32 %v3463, %v3704
        %v3789 = vadd.f32 %v3466, %v3707
        %v3790 = vadd.f32 %v3471, %v3712
        %v3791 = vadd.f32 %v3474, %v3715
        %v3792 = vadd.f32 %v3479, %v3720
        %v3793 = vadd.f32 %v3482, %v3723
        %v3794 = vadd.f32 %v3487, %v3728
        %v3795 = vadd.f32 %v3490, %v3731
        %v3796 = vadd.f32 %v3495, %v3736
        %v3797 = vadd.f32 %v3498, %v3739
        %v3798 = vadd.f32 %v3503, %v3744
        %v3799 = vadd.f32 %v3506, %v3747
        %v3800 = vadd.f32 %v3511, %v3752
        %v3801 = vadd.f32 %v3514, %v3755
        %v3802 = vadd.f32 %v3519, %v3760
        %v3803 = vadd.f32 %v3522, %v3763
        %v3804 = vadd.f32 %v3527, %v3768
        %v3805 = vadd.f32 %v3530, %v3771
        %v3806 = vld [vmem:[%s10] sm:$0x7]
        %v3807 = vlaneseq
        %v3808 = vshrl.u32 %v3807, 7
        %v3809 = vsub.s32 0, %v3808
        %v3810 = vrot.slane %v3806, %v3809
        %v3811 = vadd.f32 %v3774, %v3810
        %v3812 = vadd.f32 %v3775, %v3810
        %v3813 = vadd.f32 %v3776, %v3810
        %v3814 = vadd.f32 %v3777, %v3810
        %v3815 = vadd.f32 %v3778, %v3810
        %v3816 = vadd.f32 %v3779, %v3810
        %v3817 = vadd.f32 %v3780, %v3810
        %v3818 = vadd.f32 %v3781, %v3810
        %v3819 = vadd.f32 %v3782, %v3810
        %v3820 = vadd.f32 %v3783, %v3810
        %v3821 = vadd.f32 %v3784, %v3810
        %v3822 = vadd.f32 %v3785, %v3810
        %v3823 = vadd.f32 %v3786, %v3810
        %v3824 = vadd.f32 %v3787, %v3810
        %v3825 = vadd.f32 %v3788, %v3810
        %v3826 = vadd.f32 %v3789, %v3810
        %v3827 = vadd.f32 %v3790, %v3810
        %v3828 = vadd.f32 %v3791, %v3810
        %v3829 = vadd.f32 %v3792, %v3810
        %v3830 = vadd.f32 %v3793, %v3810
        %v3831 = vadd.f32 %v3794, %v3810
        %v3832 = vadd.f32 %v3795, %v3810
        %v3833 = vadd.f32 %v3796, %v3810
        %v3834 = vadd.f32 %v3797, %v3810
        %v3835 = vadd.f32 %v3798, %v3810
        %v3836 = vadd.f32 %v3799, %v3810
        %v3837 = vadd.f32 %v3800, %v3810
        %v3838 = vadd.f32 %v3801, %v3810
        %v3839 = vadd.f32 %v3802, %v3810
        %v3840 = vadd.f32 %v3803, %v3810
        %v3841 = vadd.f32 %v3804, %v3810
        %v3842 = vadd.f32 %v3805, %v3810
        %v3843 = vxor.u32 %v3811, 2147483648
        %v3844 = vxor.u32 %v3812, 2147483648
        %v3845 = vxor.u32 %v3813, 2147483648
        %v3846 = vxor.u32 %v3814, 2147483648
        %v3847 = vxor.u32 %v3815, 2147483648
        %v3848 = vxor.u32 %v3816, 2147483648
        %v3849 = vxor.u32 %v3817, 2147483648
        %v3850 = vxor.u32 %v3818, 2147483648
        %v3851 = vxor.u32 %v3819, 2147483648
        %v3852 = vxor.u32 %v3820, 2147483648
        %v3853 = vxor.u32 %v3821, 2147483648
        %v3854 = vxor.u32 %v3822, 2147483648
        %v3855 = vxor.u32 %v3823, 2147483648
        %v3856 = vxor.u32 %v3824, 2147483648
        %v3857 = vxor.u32 %v3825, 2147483648
        %v3858 = vxor.u32 %v3826, 2147483648
        %v3859 = vxor.u32 %v3827, 2147483648
        %v3860 = vxor.u32 %v3828, 2147483648
        %v3861 = vxor.u32 %v3829, 2147483648
        %v3862 = vxor.u32 %v3830, 2147483648
        %v3863 = vxor.u32 %v3831, 2147483648
        %v3864 = vxor.u32 %v3832, 2147483648
        %v3865 = vxor.u32 %v3833, 2147483648
        %v3866 = vxor.u32 %v3834, 2147483648
        %v3867 = vxor.u32 %v3835, 2147483648
        %v3868 = vxor.u32 %v3836, 2147483648
        %v3869 = vxor.u32 %v3837, 2147483648
        %v3870 = vxor.u32 %v3838, 2147483648
        %v3871 = vxor.u32 %v3839, 2147483648
        %v3872 = vxor.u32 %v3840, 2147483648
        %v3873 = vxor.u32 %v3841, 2147483648
        %v3874 = vxor.u32 %v3842, 2147483648
        %v3875 = vmul.f32 %v3843, 1.442695
        %v3876 = vpow.pop %v3875
        %v3877 = vmul.f32 %v3844, 1.442695
        %v3878 = vpow.pop %v3877
        %v3879 = vmul.f32 %v3845, 1.442695
        %v3880 = vpow.pop %v3879
        %v3881 = vmul.f32 %v3846, 1.442695
        %v3882 = vpow.pop %v3881
        %v3883 = vmul.f32 %v3847, 1.442695
        %v3884 = vpow.pop %v3883
        %v3885 = vmul.f32 %v3848, 1.442695
        %v3886 = vpow.pop %v3885
        %v3887 = vmul.f32 %v3849, 1.442695
        %v3888 = vpow.pop %v3887
        %v3889 = vmul.f32 %v3850, 1.442695
        %v3890 = vpow.pop %v3889
        %v3891 = vmul.f32 %v3851, 1.442695
        %v3892 = vpow.pop %v3891
        %v3893 = vmul.f32 %v3852, 1.442695
        %v3894 = vpow.pop %v3893
        %v3895 = vmul.f32 %v3853, 1.442695
        %v3896 = vpow.pop %v3895
        %v3897 = vmul.f32 %v3854, 1.442695
        %v3898 = vpow.pop %v3897
        %v3899 = vmul.f32 %v3855, 1.442695
        %v3900 = vpow.pop %v3899
        %v3901 = vmul.f32 %v3856, 1.442695
        %v3902 = vpow.pop %v3901
        %v3903 = vmul.f32 %v3857, 1.442695
        %v3904 = vpow.pop %v3903
        %v3905 = vmul.f32 %v3858, 1.442695
        %v3906 = vpow.pop %v3905
        %v3907 = vmul.f32 %v3859, 1.442695
        %v3908 = vpow.pop %v3907
        %v3909 = vmul.f32 %v3860, 1.442695
        %v3910 = vpow.pop %v3909
        %v3911 = vmul.f32 %v3861, 1.442695
        %v3912 = vpow.pop %v3911
        %v3913 = vmul.f32 %v3862, 1.442695
        %v3914 = vpow.pop %v3913
        %v3915 = vmul.f32 %v3863, 1.442695
        %v3916 = vpow.pop %v3915
        %v3917 = vmul.f32 %v3864, 1.442695
        %v3918 = vpow.pop %v3917
        %v3919 = vmul.f32 %v3865, 1.442695
        %v3920 = vpow.pop %v3919
        %v3921 = vmul.f32 %v3866, 1.442695
        %v3922 = vpow.pop %v3921
        %v3923 = vmul.f32 %v3867, 1.442695
        %v3924 = vpow.pop %v3923
        %v3925 = vmul.f32 %v3868, 1.442695
        %v3926 = vpow.pop %v3925
        %v3927 = vmul.f32 %v3869, 1.442695
        %v3928 = vpow.pop %v3927
        %v3929 = vmul.f32 %v3870, 1.442695
        %v3930 = vpow.pop %v3929
        %v3931 = vmul.f32 %v3871, 1.442695
        %v3932 = vpow.pop %v3931
        %v3933 = vmul.f32 %v3872, 1.442695
        %v3934 = vpow.pop %v3933
        %v3935 = vmul.f32 %v3873, 1.442695
        %v3936 = vpow.pop %v3935
        %v3937 = vmul.f32 %v3874, 1.442695
        %v3938 = vpow.pop %v3937
        %v3939 = vadd.f32 %v3876, 1.0
        %v3940 = vadd.f32 %v3878, 1.0
        %v3941 = vadd.f32 %v3880, 1.0
        %v3942 = vadd.f32 %v3882, 1.0
        %v3943 = vadd.f32 %v3884, 1.0
        %v3944 = vadd.f32 %v3886, 1.0
        %v3945 = vadd.f32 %v3888, 1.0
        %v3946 = vadd.f32 %v3890, 1.0
        %v3947 = vadd.f32 %v3892, 1.0
        %v3948 = vadd.f32 %v3894, 1.0
        %v3949 = vadd.f32 %v3896, 1.0
        %v3950 = vadd.f32 %v3898, 1.0
        %v3951 = vadd.f32 %v3900, 1.0
        %v3952 = vadd.f32 %v3902, 1.0
        %v3953 = vadd.f32 %v3904, 1.0
        %v3954 = vadd.f32 %v3906, 1.0
        %v3955 = vadd.f32 %v3908, 1.0
        %v3956 = vadd.f32 %v3910, 1.0
        %v3957 = vadd.f32 %v3912, 1.0
        %v3958 = vadd.f32 %v3914, 1.0
        %v3959 = vadd.f32 %v3916, 1.0
        %v3960 = vadd.f32 %v3918, 1.0
        %v3961 = vadd.f32 %v3920, 1.0
        %v3962 = vadd.f32 %v3922, 1.0
        %v3963 = vadd.f32 %v3924, 1.0
        %v3964 = vadd.f32 %v3926, 1.0
        %v3965 = vadd.f32 %v3928, 1.0
        %v3966 = vadd.f32 %v3930, 1.0
        %v3967 = vadd.f32 %v3932, 1.0
        %v3968 = vadd.f32 %v3934, 1.0
        %v3969 = vadd.f32 %v3936, 1.0
        %v3970 = vadd.f32 %v3938, 1.0
        %v3971 = vrcp.pop %v3939
        %v3972 = vmul.f32 1.0, %v3971
        %v3973 = vrcp.pop %v3940
        %v3974 = vmul.f32 1.0, %v3973
        %v3975 = vrcp.pop %v3941
        %v3976 = vmul.f32 1.0, %v3975
        %v3977 = vrcp.pop %v3942
        %v3978 = vmul.f32 1.0, %v3977
        %v3979 = vrcp.pop %v3943
        %v3980 = vmul.f32 1.0, %v3979
        %v3981 = vrcp.pop %v3944
        %v3982 = vmul.f32 1.0, %v3981
        %v3983 = vrcp.pop %v3945
        %v3984 = vmul.f32 1.0, %v3983
        %v3985 = vrcp.pop %v3946
        %v3986 = vmul.f32 1.0, %v3985
        %v3987 = vrcp.pop %v3947
        %v3988 = vmul.f32 1.0, %v3987
        %v3989 = vrcp.pop %v3948
        %v3990 = vmul.f32 1.0, %v3989
        %v3991 = vrcp.pop %v3949
        %v3992 = vmul.f32 1.0, %v3991
        %v3993 = vrcp.pop %v3950
        %v3994 = vmul.f32 1.0, %v3993
        %v3995 = vrcp.pop %v3951
        %v3996 = vmul.f32 1.0, %v3995
        %v3997 = vrcp.pop %v3952
        %v3998 = vmul.f32 1.0, %v3997
        %v3999 = vrcp.pop %v3953
        %v4000 = vmul.f32 1.0, %v3999
        %v4001 = vrcp.pop %v3954
        %v4002 = vmul.f32 1.0, %v4001
        %v4003 = vrcp.pop %v3955
        %v4004 = vmul.f32 1.0, %v4003
        %v4005 = vrcp.pop %v3956
        %v4006 = vmul.f32 1.0, %v4005
        %v4007 = vrcp.pop %v3957
        %v4008 = vmul.f32 1.0, %v4007
        %v4009 = vrcp.pop %v3958
        %v4010 = vmul.f32 1.0, %v4009
        %v4011 = vrcp.pop %v3959
        %v4012 = vmul.f32 1.0, %v4011
        %v4013 = vrcp.pop %v3960
        %v4014 = vmul.f32 1.0, %v4013
        %v4015 = vrcp.pop %v3961
        %v4016 = vmul.f32 1.0, %v4015
        %v4017 = vrcp.pop %v3962
        %v4018 = vmul.f32 1.0, %v4017
        %v4019 = vrcp.pop %v3963
        %v4020 = vmul.f32 1.0, %v4019
        %v4021 = vrcp.pop %v3964
        %v4022 = vmul.f32 1.0, %v4021
        %v4023 = vrcp.pop %v3965
        %v4024 = vmul.f32 1.0, %v4023
        %v4025 = vrcp.pop %v3966
        %v4026 = vmul.f32 1.0, %v4025
        %v4027 = vrcp.pop %v3967
        %v4028 = vmul.f32 1.0, %v4027
        %v4029 = vrcp.pop %v3968
        %v4030 = vmul.f32 1.0, %v4029
        %v4031 = vrcp.pop %v3969
        %v4032 = vmul.f32 1.0, %v4031
        %v4033 = vrcp.pop %v3970
        %v4034 = vmul.f32 1.0, %v4033
        %4067 = vrot.lane.b32.xlu0 %v3972, 64
        %v4068 = vpop.permute.xlu0 %4067
        %4069 = vrot.lane.b32.xlu0 %v3974, 64
        %v4070 = vpop.permute.xlu0 %4069
        %4071 = vrot.lane.b32.xlu0 %v3976, 64
        %v4072 = vpop.permute.xlu0 %4071
        %4073 = vrot.lane.b32.xlu0 %v3978, 64
        %v4074 = vpop.permute.xlu0 %4073
        %4075 = vrot.lane.b32.xlu0 %v3980, 64
        %v4076 = vpop.permute.xlu0 %4075
        %4077 = vrot.lane.b32.xlu0 %v3982, 64
        %v4078 = vpop.permute.xlu0 %4077
        %4079 = vrot.lane.b32.xlu0 %v3984, 64
        %v4080 = vpop.permute.xlu0 %4079
        %4081 = vrot.lane.b32.xlu0 %v3986, 64
        %v4082 = vpop.permute.xlu0 %4081
        %4083 = vrot.lane.b32.xlu0 %v3988, 64
        %v4084 = vpop.permute.xlu0 %4083
        %4085 = vrot.lane.b32.xlu0 %v3990, 64
        %v4086 = vpop.permute.xlu0 %4085
        %4087 = vrot.lane.b32.xlu0 %v3992, 64
        %v4088 = vpop.permute.xlu0 %4087
        %4089 = vrot.lane.b32.xlu0 %v3994, 64
        %v4090 = vpop.permute.xlu0 %4089
        %4091 = vrot.lane.b32.xlu0 %v3996, 64
        %v4092 = vpop.permute.xlu0 %4091
        %4093 = vrot.lane.b32.xlu0 %v3998, 64
        %v4094 = vpop.permute.xlu0 %4093
        %4095 = vrot.lane.b32.xlu0 %v4000, 64
        %v4096 = vpop.permute.xlu0 %4095
        %4097 = vrot.lane.b32.xlu0 %v4002, 64
        %v4098 = vpop.permute.xlu0 %4097
        %4099 = vrot.lane.b32.xlu0 %v4004, 64
        %v4100 = vpop.permute.xlu0 %4099
        %4101 = vrot.lane.b32.xlu0 %v4006, 64
        %v4102 = vpop.permute.xlu0 %4101
        %4103 = vrot.lane.b32.xlu0 %v4008, 64
        %v4104 = vpop.permute.xlu0 %4103
        %4105 = vrot.lane.b32.xlu0 %v4010, 64
        %v4106 = vpop.permute.xlu0 %4105
        %4107 = vrot.lane.b32.xlu0 %v4012, 64
        %v4108 = vpop.permute.xlu0 %4107
        %4109 = vrot.lane.b32.xlu0 %v4014, 64
        %v4110 = vpop.permute.xlu0 %4109
        %4111 = vrot.lane.b32.xlu0 %v4016, 64
        %v4112 = vpop.permute.xlu0 %4111
        %4113 = vrot.lane.b32.xlu0 %v4018, 64
        %v4114 = vpop.permute.xlu0 %4113
        %4115 = vrot.lane.b32.xlu0 %v4020, 64
        %v4116 = vpop.permute.xlu0 %4115
        %4117 = vrot.lane.b32.xlu0 %v4022, 64
        %v4118 = vpop.permute.xlu0 %4117
        %4119 = vrot.lane.b32.xlu0 %v4024, 64
        %v4120 = vpop.permute.xlu0 %4119
        %4121 = vrot.lane.b32.xlu0 %v4026, 64
        %v4122 = vpop.permute.xlu0 %4121
        %4123 = vrot.lane.b32.xlu0 %v4028, 64
        %v4124 = vpop.permute.xlu0 %4123
        %4125 = vrot.lane.b32.xlu0 %v4030, 64
        %v4126 = vpop.permute.xlu0 %4125
        %4127 = vrot.lane.b32.xlu0 %v4032, 64
        %v4128 = vpop.permute.xlu0 %4127
        %4129 = vrot.lane.b32.xlu0 %v4034, 64
        %v4130 = vpop.permute.xlu0 %4129
        %v4163 = vmul.f32 %v3811, %v4068
        %v4164 = vmul.f32 %v3812, %v4070
        %v4165 = vmul.f32 %v3813, %v4072
        %v4166 = vmul.f32 %v3814, %v4074
        %v4167 = vmul.f32 %v3815, %v4076
        %v4168 = vmul.f32 %v3816, %v4078
        %v4169 = vmul.f32 %v3817, %v4080
        %v4170 = vmul.f32 %v3818, %v4082
        %v4171 = vmul.f32 %v3819, %v4084
        %v4172 = vmul.f32 %v3820, %v4086
        %v4173 = vmul.f32 %v3821, %v4088
        %v4174 = vmul.f32 %v3822, %v4090
        %v4175 = vmul.f32 %v3823, %v4092
        %v4176 = vmul.f32 %v3824, %v4094
        %v4177 = vmul.f32 %v3825, %v4096
        %v4178 = vmul.f32 %v3826, %v4098
        %v4179 = vmul.f32 %v3827, %v4100
        %v4180 = vmul.f32 %v3828, %v4102
        %v4181 = vmul.f32 %v3829, %v4104
        %v4182 = vmul.f32 %v3830, %v4106
        %v4183 = vmul.f32 %v3831, %v4108
        %v4184 = vmul.f32 %v3832, %v4110
        %v4185 = vmul.f32 %v3833, %v4112
        %v4186 = vmul.f32 %v3834, %v4114
        %v4187 = vmul.f32 %v3835, %v4116
        %v4188 = vmul.f32 %v3836, %v4118
        %v4189 = vmul.f32 %v3837, %v4120
        %v4190 = vmul.f32 %v3838, %v4122
        %v4191 = vmul.f32 %v3839, %v4124
        %v4192 = vmul.f32 %v3840, %v4126
        %v4193 = vmul.f32 %v3841, %v4128
        %v4194 = vmul.f32 %v3842, %v4130
        %v4195 = vld [vmem:[%s13] sm:$0xff]
        %v4196 = vld [vmem:[%s13 + $0x8] sm:$0xff]
        %v4197 = vld [vmem:[%s13 + $0x10] sm:$0xff]
        %v4198 = vld [vmem:[%s13 + $0x18] sm:$0xff]
        %v4199 = vld [vmem:[%s13 + $0x20] sm:$0xff]
        %v4200 = vld [vmem:[%s13 + $0x28] sm:$0xff]
        %v4201 = vld [vmem:[%s13 + $0x30] sm:$0xff]
        %v4202 = vld [vmem:[%s13 + $0x38] sm:$0xff]
        %v4203 = vld [vmem:[%s13 + $0x40] sm:$0xff]
        %v4204 = vld [vmem:[%s13 + $0x48] sm:$0xff]
        %v4205 = vld [vmem:[%s13 + $0x50] sm:$0xff]
        %v4206 = vld [vmem:[%s13 + $0x58] sm:$0xff]
        %v4207 = vld [vmem:[%s13 + $0x60] sm:$0xff]
        %v4208 = vld [vmem:[%s13 + $0x68] sm:$0xff]
        %v4209 = vld [vmem:[%s13 + $0x70] sm:$0xff]
        %v4210 = vld [vmem:[%s13 + $0x78] sm:$0xff]
        %v4211 = vld [vmem:[%s13 + $0x80] sm:$0xff]
        %v4212 = vld [vmem:[%s13 + $0x88] sm:$0xff]
        %v4213 = vld [vmem:[%s13 + $0x90] sm:$0xff]
        %v4214 = vld [vmem:[%s13 + $0x98] sm:$0xff]
        %v4215 = vld [vmem:[%s13 + $0xa0] sm:$0xff]
        %v4216 = vld [vmem:[%s13 + $0xa8] sm:$0xff]
        %v4217 = vld [vmem:[%s13 + $0xb0] sm:$0xff]
        %v4218 = vld [vmem:[%s13 + $0xb8] sm:$0xff]
        %v4219 = vld [vmem:[%s13 + $0xc0] sm:$0xff]
        %v4220 = vld [vmem:[%s13 + $0xc8] sm:$0xff]
        %v4221 = vld [vmem:[%s13 + $0xd0] sm:$0xff]
        %v4222 = vld [vmem:[%s13 + $0xd8] sm:$0xff]
        %v4223 = vld [vmem:[%s13 + $0xe0] sm:$0xff]
        %v4224 = vld [vmem:[%s13 + $0xe8] sm:$0xff]
        %v4225 = vld [vmem:[%s13 + $0xf0] sm:$0xff]
        %v4226 = vld [vmem:[%s13 + $0xf8] sm:$0xff]
        %4228 = vset.pattern.permute.xlu0 0
        %4229 = vperm.xlu0 %4228, %v4195
        %v4230 = vpop.permute.xlu0 %4229
        %4233 = vset.pattern.permute.xlu0 0
        %4234 = vperm.xlu0 %4233, %v4196
        %v4235 = vpop.permute.xlu0 %4234
        %4238 = vset.pattern.permute.xlu0 0
        %4239 = vperm.xlu0 %4238, %v4197
        %v4240 = vpop.permute.xlu0 %4239
        %4243 = vset.pattern.permute.xlu0 0
        %4244 = vperm.xlu0 %4243, %v4198
        %v4245 = vpop.permute.xlu0 %4244
        %4248 = vset.pattern.permute.xlu0 0
        %4249 = vperm.xlu0 %4248, %v4199
        %v4250 = vpop.permute.xlu0 %4249
        %4253 = vset.pattern.permute.xlu0 0
        %4254 = vperm.xlu0 %4253, %v4200
        %v4255 = vpop.permute.xlu0 %4254
        %4258 = vset.pattern.permute.xlu0 0
        %4259 = vperm.xlu0 %4258, %v4201
        %v4260 = vpop.permute.xlu0 %4259
        %4263 = vset.pattern.permute.xlu0 0
        %4264 = vperm.xlu0 %4263, %v4202
        %v4265 = vpop.permute.xlu0 %4264
        %4268 = vset.pattern.permute.xlu0 0
        %4269 = vperm.xlu0 %4268, %v4203
        %v4270 = vpop.permute.xlu0 %4269
        %4273 = vset.pattern.permute.xlu0 0
        %4274 = vperm.xlu0 %4273, %v4204
        %v4275 = vpop.permute.xlu0 %4274
        %4278 = vset.pattern.permute.xlu0 0
        %4279 = vperm.xlu0 %4278, %v4205
        %v4280 = vpop.permute.xlu0 %4279
        %4283 = vset.pattern.permute.xlu0 0
        %4284 = vperm.xlu0 %4283, %v4206
        %v4285 = vpop.permute.xlu0 %4284
        %4288 = vset.pattern.permute.xlu0 0
        %4289 = vperm.xlu0 %4288, %v4207
        %v4290 = vpop.permute.xlu0 %4289
        %4293 = vset.pattern.permute.xlu0 0
        %4294 = vperm.xlu0 %4293, %v4208
        %v4295 = vpop.permute.xlu0 %4294
        %4298 = vset.pattern.permute.xlu0 0
        %4299 = vperm.xlu0 %4298, %v4209
        %v4300 = vpop.permute.xlu0 %4299
        %4303 = vset.pattern.permute.xlu0 0
        %4304 = vperm.xlu0 %4303, %v4210
        %v4305 = vpop.permute.xlu0 %4304
        %4308 = vset.pattern.permute.xlu0 0
        %4309 = vperm.xlu0 %4308, %v4211
        %v4310 = vpop.permute.xlu0 %4309
        %4313 = vset.pattern.permute.xlu0 0
        %4314 = vperm.xlu0 %4313, %v4212
        %v4315 = vpop.permute.xlu0 %4314
        %4318 = vset.pattern.permute.xlu0 0
        %4319 = vperm.xlu0 %4318, %v4213
        %v4320 = vpop.permute.xlu0 %4319
        %4323 = vset.pattern.permute.xlu0 0
        %4324 = vperm.xlu0 %4323, %v4214
        %v4325 = vpop.permute.xlu0 %4324
        %4328 = vset.pattern.permute.xlu0 0
        %4329 = vperm.xlu0 %4328, %v4215
        %v4330 = vpop.permute.xlu0 %4329
        %4333 = vset.pattern.permute.xlu0 0
        %4334 = vperm.xlu0 %4333, %v4216
        %v4335 = vpop.permute.xlu0 %4334
        %4338 = vset.pattern.permute.xlu0 0
        %4339 = vperm.xlu0 %4338, %v4217
        %v4340 = vpop.permute.xlu0 %4339
        %4343 = vset.pattern.permute.xlu0 0
        %4344 = vperm.xlu0 %4343, %v4218
        %v4345 = vpop.permute.xlu0 %4344
        %4348 = vset.pattern.permute.xlu0 0
        %4349 = vperm.xlu0 %4348, %v4219
        %v4350 = vpop.permute.xlu0 %4349
        %4353 = vset.pattern.permute.xlu0 0
        %4354 = vperm.xlu0 %4353, %v4220
        %v4355 = vpop.permute.xlu0 %4354
        %4358 = vset.pattern.permute.xlu0 0
        %4359 = vperm.xlu0 %4358, %v4221
        %v4360 = vpop.permute.xlu0 %4359
        %4363 = vset.pattern.permute.xlu0 0
        %4364 = vperm.xlu0 %4363, %v4222
        %v4365 = vpop.permute.xlu0 %4364
        %4368 = vset.pattern.permute.xlu0 0
        %4369 = vperm.xlu0 %4368, %v4223
        %v4370 = vpop.permute.xlu0 %4369
        %4373 = vset.pattern.permute.xlu0 0
        %4374 = vperm.xlu0 %4373, %v4224
        %v4375 = vpop.permute.xlu0 %4374
        %4378 = vset.pattern.permute.xlu0 0
        %4379 = vperm.xlu0 %4378, %v4225
        %v4380 = vpop.permute.xlu0 %4379
        %4383 = vset.pattern.permute.xlu0 0
        %4384 = vperm.xlu0 %4383, %v4226
        %v4385 = vpop.permute.xlu0 %4384
        %v4387 = vmul.f32 %v4163, %v4230
        %v4388 = vmul.f32 %v4164, %v4235
        %v4389 = vmul.f32 %v4165, %v4240
        %v4390 = vmul.f32 %v4166, %v4245
        %v4391 = vmul.f32 %v4167, %v4250
        %v4392 = vmul.f32 %v4168, %v4255
        %v4393 = vmul.f32 %v4169, %v4260
        %v4394 = vmul.f32 %v4170, %v4265
        %v4395 = vmul.f32 %v4171, %v4270
        %v4396 = vmul.f32 %v4172, %v4275
        %v4397 = vmul.f32 %v4173, %v4280
        %v4398 = vmul.f32 %v4174, %v4285
        %v4399 = vmul.f32 %v4175, %v4290
        %v4400 = vmul.f32 %v4176, %v4295
        %v4401 = vmul.f32 %v4177, %v4300
        %v4402 = vmul.f32 %v4178, %v4305
        %v4403 = vmul.f32 %v4179, %v4310
        %v4404 = vmul.f32 %v4180, %v4315
        %v4405 = vmul.f32 %v4181, %v4320
        %v4406 = vmul.f32 %v4182, %v4325
        %v4407 = vmul.f32 %v4183, %v4330
        %v4408 = vmul.f32 %v4184, %v4335
        %v4409 = vmul.f32 %v4185, %v4340
        %v4410 = vmul.f32 %v4186, %v4345
        %v4411 = vmul.f32 %v4187, %v4350
        %v4412 = vmul.f32 %v4188, %v4355
        %v4413 = vmul.f32 %v4189, %v4360
        %v4414 = vmul.f32 %v4190, %v4365
        %v4415 = vmul.f32 %v4191, %v4370
        %v4416 = vmul.f32 %v4192, %v4375
        %v4417 = vmul.f32 %v4193, %v4380
        %v4418 = vmul.f32 %v4194, %v4385
        %v4419 = vld [vmem:[%s14] sm:$0xff]
        %v4420 = vld [vmem:[%s14 + $0x8] sm:$0xff]
        %v4421 = vld [vmem:[%s14 + $0x10] sm:$0xff]
        %v4422 = vld [vmem:[%s14 + $0x18] sm:$0xff]
        %v4423 = vld [vmem:[%s14 + $0x20] sm:$0xff]
        %v4424 = vld [vmem:[%s14 + $0x28] sm:$0xff]
        %v4425 = vld [vmem:[%s14 + $0x30] sm:$0xff]
        %v4426 = vld [vmem:[%s14 + $0x38] sm:$0xff]
        %v4427 = vld [vmem:[%s14 + $0x40] sm:$0xff]
        %v4428 = vld [vmem:[%s14 + $0x48] sm:$0xff]
        %v4429 = vld [vmem:[%s14 + $0x50] sm:$0xff]
        %v4430 = vld [vmem:[%s14 + $0x58] sm:$0xff]
        %v4431 = vld [vmem:[%s14 + $0x60] sm:$0xff]
        %v4432 = vld [vmem:[%s14 + $0x68] sm:$0xff]
        %v4433 = vld [vmem:[%s14 + $0x70] sm:$0xff]
        %v4434 = vld [vmem:[%s14 + $0x78] sm:$0xff]
        %v4435 = vld [vmem:[%s14 + $0x80] sm:$0xff]
        %v4436 = vld [vmem:[%s14 + $0x88] sm:$0xff]
        %v4437 = vld [vmem:[%s14 + $0x90] sm:$0xff]
        %v4438 = vld [vmem:[%s14 + $0x98] sm:$0xff]
        %v4439 = vld [vmem:[%s14 + $0xa0] sm:$0xff]
        %v4440 = vld [vmem:[%s14 + $0xa8] sm:$0xff]
        %v4441 = vld [vmem:[%s14 + $0xb0] sm:$0xff]
        %v4442 = vld [vmem:[%s14 + $0xb8] sm:$0xff]
        %v4443 = vld [vmem:[%s14 + $0xc0] sm:$0xff]
        %v4444 = vld [vmem:[%s14 + $0xc8] sm:$0xff]
        %v4445 = vld [vmem:[%s14 + $0xd0] sm:$0xff]
        %v4446 = vld [vmem:[%s14 + $0xd8] sm:$0xff]
        %v4447 = vld [vmem:[%s14 + $0xe0] sm:$0xff]
        %v4448 = vld [vmem:[%s14 + $0xe8] sm:$0xff]
        %v4449 = vld [vmem:[%s14 + $0xf0] sm:$0xff]
        %v4450 = vld [vmem:[%s14 + $0xf8] sm:$0xff]
        %4452 = vset.pattern.permute.xlu0 0
        %4453 = vperm.xlu0 %4452, %v4419
        %v4454 = vpop.permute.xlu0 %4453
        %4457 = vset.pattern.permute.xlu0 0
        %4458 = vperm.xlu0 %4457, %v4420
        %v4459 = vpop.permute.xlu0 %4458
        %4462 = vset.pattern.permute.xlu0 0
        %4463 = vperm.xlu0 %4462, %v4421
        %v4464 = vpop.permute.xlu0 %4463
        %4467 = vset.pattern.permute.xlu0 0
        %4468 = vperm.xlu0 %4467, %v4422
        %v4469 = vpop.permute.xlu0 %4468
        %4472 = vset.pattern.permute.xlu0 0
        %4473 = vperm.xlu0 %4472, %v4423
        %v4474 = vpop.permute.xlu0 %4473
        %4477 = vset.pattern.permute.xlu0 0
        %4478 = vperm.xlu0 %4477, %v4424
        %v4479 = vpop.permute.xlu0 %4478
        %4482 = vset.pattern.permute.xlu0 0
        %4483 = vperm.xlu0 %4482, %v4425
        %v4484 = vpop.permute.xlu0 %4483
        %4487 = vset.pattern.permute.xlu0 0
        %4488 = vperm.xlu0 %4487, %v4426
        %v4489 = vpop.permute.xlu0 %4488
        %4492 = vset.pattern.permute.xlu0 0
        %4493 = vperm.xlu0 %4492, %v4427
        %v4494 = vpop.permute.xlu0 %4493
        %4497 = vset.pattern.permute.xlu0 0
        %4498 = vperm.xlu0 %4497, %v4428
        %v4499 = vpop.permute.xlu0 %4498
        %4502 = vset.pattern.permute.xlu0 0
        %4503 = vperm.xlu0 %4502, %v4429
        %v4504 = vpop.permute.xlu0 %4503
        %4507 = vset.pattern.permute.xlu0 0
        %4508 = vperm.xlu0 %4507, %v4430
        %v4509 = vpop.permute.xlu0 %4508
        %4512 = vset.pattern.permute.xlu0 0
        %4513 = vperm.xlu0 %4512, %v4431
        %v4514 = vpop.permute.xlu0 %4513
        %4517 = vset.pattern.permute.xlu0 0
        %4518 = vperm.xlu0 %4517, %v4432
        %v4519 = vpop.permute.xlu0 %4518
        %4522 = vset.pattern.permute.xlu0 0
        %4523 = vperm.xlu0 %4522, %v4433
        %v4524 = vpop.permute.xlu0 %4523
        %4527 = vset.pattern.permute.xlu0 0
        %4528 = vperm.xlu0 %4527, %v4434
        %v4529 = vpop.permute.xlu0 %4528
        %4532 = vset.pattern.permute.xlu0 0
        %4533 = vperm.xlu0 %4532, %v4435
        %v4534 = vpop.permute.xlu0 %4533
        %4537 = vset.pattern.permute.xlu0 0
        %4538 = vperm.xlu0 %4537, %v4436
        %v4539 = vpop.permute.xlu0 %4538
        %4542 = vset.pattern.permute.xlu0 0
        %4543 = vperm.xlu0 %4542, %v4437
        %v4544 = vpop.permute.xlu0 %4543
        %4547 = vset.pattern.permute.xlu0 0
        %4548 = vperm.xlu0 %4547, %v4438
        %v4549 = vpop.permute.xlu0 %4548
        %4552 = vset.pattern.permute.xlu0 0
        %4553 = vperm.xlu0 %4552, %v4439
        %v4554 = vpop.permute.xlu0 %4553
        %4557 = vset.pattern.permute.xlu0 0
        %4558 = vperm.xlu0 %4557, %v4440
        %v4559 = vpop.permute.xlu0 %4558
        %4562 = vset.pattern.permute.xlu0 0
        %4563 = vperm.xlu0 %4562, %v4441
        %v4564 = vpop.permute.xlu0 %4563
        %4567 = vset.pattern.permute.xlu0 0
        %4568 = vperm.xlu0 %4567, %v4442
        %v4569 = vpop.permute.xlu0 %4568
        %4572 = vset.pattern.permute.xlu0 0
        %4573 = vperm.xlu0 %4572, %v4443
        %v4574 = vpop.permute.xlu0 %4573
        %4577 = vset.pattern.permute.xlu0 0
        %4578 = vperm.xlu0 %4577, %v4444
        %v4579 = vpop.permute.xlu0 %4578
        %4582 = vset.pattern.permute.xlu0 0
        %4583 = vperm.xlu0 %4582, %v4445
        %v4584 = vpop.permute.xlu0 %4583
        %4587 = vset.pattern.permute.xlu0 0
        %4588 = vperm.xlu0 %4587, %v4446
        %v4589 = vpop.permute.xlu0 %4588
        %4592 = vset.pattern.permute.xlu0 0
        %4593 = vperm.xlu0 %4592, %v4447
        %v4594 = vpop.permute.xlu0 %4593
        %4597 = vset.pattern.permute.xlu0 0
        %4598 = vperm.xlu0 %4597, %v4448
        %v4599 = vpop.permute.xlu0 %4598
        %4602 = vset.pattern.permute.xlu0 0
        %4603 = vperm.xlu0 %4602, %v4449
        %v4604 = vpop.permute.xlu0 %4603
        %4607 = vset.pattern.permute.xlu0 0
        %4608 = vperm.xlu0 %4607, %v4450
        %v4609 = vpop.permute.xlu0 %4608
        %v4611 = vadd.f32 %v4387, %v4454
        %v4612 = vadd.f32 %v4388, %v4459
        %v4613 = vadd.f32 %v4389, %v4464
        %v4614 = vadd.f32 %v4390, %v4469
        %v4615 = vadd.f32 %v4391, %v4474
        %v4616 = vadd.f32 %v4392, %v4479
        %v4617 = vadd.f32 %v4393, %v4484
        %v4618 = vadd.f32 %v4394, %v4489
        %v4619 = vadd.f32 %v4395, %v4494
        %v4620 = vadd.f32 %v4396, %v4499
        %v4621 = vadd.f32 %v4397, %v4504
        %v4622 = vadd.f32 %v4398, %v4509
        %v4623 = vadd.f32 %v4399, %v4514
        %v4624 = vadd.f32 %v4400, %v4519
        %v4625 = vadd.f32 %v4401, %v4524
        %v4626 = vadd.f32 %v4402, %v4529
        %v4627 = vadd.f32 %v4403, %v4534
        %v4628 = vadd.f32 %v4404, %v4539
        %v4629 = vadd.f32 %v4405, %v4544
        %v4630 = vadd.f32 %v4406, %v4549
        %v4631 = vadd.f32 %v4407, %v4554
        %v4632 = vadd.f32 %v4408, %v4559
        %v4633 = vadd.f32 %v4409, %v4564
        %v4634 = vadd.f32 %v4410, %v4569
        %v4635 = vadd.f32 %v4411, %v4574
        %v4636 = vadd.f32 %v4412, %v4579
        %v4637 = vadd.f32 %v4413, %v4584
        %v4638 = vadd.f32 %v4414, %v4589
        %v4639 = vadd.f32 %v4415, %v4594
        %v4640 = vadd.f32 %v4416, %v4599
        %v4641 = vadd.f32 %v4417, %v4604
        %v4642 = vadd.f32 %v4418, %v4609
        %vm4643 = vcmask 523264
        %4644 = vst.msk [vmem:[%s487] sm:$0xff] %vm4643, %v4611
        %4645 = vst.msk [vmem:[%s487 + $0x8] sm:$0xff] %vm4643, %v4612
        %4646 = vst.msk [vmem:[%s487 + $0x10] sm:$0xff] %vm4643, %v4613
        %4647 = vst.msk [vmem:[%s487 + $0x18] sm:$0xff] %vm4643, %v4614
        %4648 = vst.msk [vmem:[%s487 + $0x20] sm:$0xff] %vm4643, %v4615
        %4649 = vst.msk [vmem:[%s487 + $0x28] sm:$0xff] %vm4643, %v4616
        %4650 = vst.msk [vmem:[%s487 + $0x30] sm:$0xff] %vm4643, %v4617
        %4651 = vst.msk [vmem:[%s487 + $0x38] sm:$0xff] %vm4643, %v4618
        %4652 = vst.msk [vmem:[%s487 + $0x40] sm:$0xff] %vm4643, %v4619
        %4653 = vst.msk [vmem:[%s487 + $0x48] sm:$0xff] %vm4643, %v4620
        %4654 = vst.msk [vmem:[%s487 + $0x50] sm:$0xff] %vm4643, %v4621
        %4655 = vst.msk [vmem:[%s487 + $0x58] sm:$0xff] %vm4643, %v4622
        %4656 = vst.msk [vmem:[%s487 + $0x60] sm:$0xff] %vm4643, %v4623
        %4657 = vst.msk [vmem:[%s487 + $0x68] sm:$0xff] %vm4643, %v4624
        %4658 = vst.msk [vmem:[%s487 + $0x70] sm:$0xff] %vm4643, %v4625
        %4659 = vst.msk [vmem:[%s487 + $0x78] sm:$0xff] %vm4643, %v4626
        %4660 = vst.msk [vmem:[%s487 + $0x80] sm:$0xff] %vm4643, %v4627
        %4661 = vst.msk [vmem:[%s487 + $0x88] sm:$0xff] %vm4643, %v4628
        %4662 = vst.msk [vmem:[%s487 + $0x90] sm:$0xff] %vm4643, %v4629
        %4663 = vst.msk [vmem:[%s487 + $0x98] sm:$0xff] %vm4643, %v4630
        %4664 = vst.msk [vmem:[%s487 + $0xa0] sm:$0xff] %vm4643, %v4631
        %4665 = vst.msk [vmem:[%s487 + $0xa8] sm:$0xff] %vm4643, %v4632
        %4666 = vst.msk [vmem:[%s487 + $0xb0] sm:$0xff] %vm4643, %v4633
        %4667 = vst.msk [vmem:[%s487 + $0xb8] sm:$0xff] %vm4643, %v4634
        %4668 = vst.msk [vmem:[%s487 + $0xc0] sm:$0xff] %vm4643, %v4635
        %4669 = vst.msk [vmem:[%s487 + $0xc8] sm:$0xff] %vm4643, %v4636
        %4670 = vst.msk [vmem:[%s487 + $0xd0] sm:$0xff] %vm4643, %v4637
        %4671 = vst.msk [vmem:[%s487 + $0xd8] sm:$0xff] %vm4643, %v4638
        %4672 = vst.msk [vmem:[%s487 + $0xe0] sm:$0xff] %vm4643, %v4639
        %4673 = vst.msk [vmem:[%s487 + $0xe8] sm:$0xff] %vm4643, %v4640
        %4674 = vst.msk [vmem:[%s487 + $0xf0] sm:$0xff] %vm4643, %v4641
        %4675 = vst.msk [vmem:[%s487 + $0xf8] sm:$0xff] %vm4643, %v4642
        %s4676 = sand.u32 %s357, 1
        %s4677 = scalar_lea.sflag [#allocation3], %s4676
        %s4678 = sand.u32 %s357, 1
        %s4679 = smul.addr %s4678, 256
        %s4680 = scalar_lea.vmem [#allocation2], %s4679
        // Predicated region
        $region81: #{st_block_4.1} parent=79 // pred_check
          %p4681 = pneg %p367
        $region82: #{st_block_4.1} parent=79 // pred_check_branch
          %4683 = sbr.rel (%p4681) target = $region84
        $region83: #{st_block_4.1} parent=79 // pred_region
          %s4685 = ssub.s32 4096, 4096
          %4686 = vsyncadd %s4677, %s4685
          %s4687 = smul.addr %s29, 32
          %s4688 = smul.addr %s4687, 128
          %s4689 = scalar_lea.hbm %s15, %s4688
          %s4690 = sshll.u32 %s4680, 4
          %s4691 = int_to_ptr.vmem [resolvable:$true] %s4690
          %4696 = dma.vmem_to_hbm [thread:$0]  %s4691, 4096, %s4689, %s4677, 128, 128, 8
        $region84: #{st_block_4.1} parent=79 // pred_fallthru
          _
      $region80: #{st_block_4.1} parent=5 // pred_fallthru
        _
      %p4697 = scmp.le.s32.totalorder 2, %s24
      // Predicated region
      $region85: #{st_block_4.1} parent=5 // pred_check
        %p4698 = pneg %p4697
      $region86: #{st_block_4.1} parent=5 // pred_check_branch
        %4700 = sbr.rel (%p4698) target = $region88
      $region87: #{st_block_4.1} parent=5 // pred_region
        %s4701 = ssub.s32 %s24, 2
        // Predicated region
        $region89: #{st_block_4.1} parent=87 // pred_check
          %p4702 = pneg %p373
        $region90: #{st_block_4.1} parent=87 // pred_check_branch
          %4704 = sbr.rel (%p4702) target = $region92
        $region91: #{st_block_4.1} parent=87 // pred_region
          %s4705 = sand.u32 %s358, 1
          %s4706 = scalar_lea.sflag [#allocation3], %s4705
          %s4707 = sand.u32 %s358, 1
          %s4708 = smul.addr %s4707, 256
          %s4709 = scalar_lea.vmem [#allocation2], %s4708
          %4710 = dma.done %s4706, 4096
        $region92: #{st_block_4.1} parent=87 // pred_fallthru
          _
      $region88: #{st_block_4.1} parent=5 // pred_fallthru
        _
    $region6: #{st_block_4.1} parent=1 // loop_footer
      %s28 = sadd.s32 1, %s24
    $region7: #{st_block_4.1} parent=1 // loop_footer_branch
      %23 = sbr.rel target = $region3
    $region8: #{st_block_4.1} parent=1 // loop_exit
      _
    %4711 = vsyncpa [#allocation3], 1
    %s4712 = scalar_lea.sflag [#allocation3], 1
    %4713 = vsyncpa %s4712, 1

</llo_original>
